<compile_context>
chip_gen: v7x
topology: tpu7x:2x2x1
jax: 0.10.0
libtpu: 0.0.40
codegen_flags: <defaults>
</compile_context>

<pallas_src>
import functools

import jax
import jax.numpy as jnp
from jax import lax
from jax.experimental import pallas as pl
from jax.experimental.pallas import tpu as pltpu


_VMEM_LIMIT = 64 * 1024 * 1024   # <= physical VMEM on v5e/v6e (128 MiB) and v7x (64 MiB)
_L2N_EPS = 1e-12                 # guards rsqrt on a degenerate all-zero row


def _round_up(x, m):
    return ((x + m - 1) // m) * m


# ----------------------------------------------------------------------------
# Kernel 1: fused conv3x3(pad=1)+bias+ReLU -> lwhiten linear -> GeMmp pooling
#           (per-channel learnable p, eps clamp, 1/p root).
#   One grid step per image; the grid axis is "parallel" so v7x's two
#   TensorCores each take half the batch.  The conv is 9 accumulated shifted
#   matmuls over a resident padded NHWC block -- no im2col expansion in HBM.
#   NOTE: the pooled-vector L2N is NOT done here -- it is folded into the
#   whiten kernel (exactly), which keeps this kernel free of the cross-channel
#   reduction and channel-tileable.
# ----------------------------------------------------------------------------
def _conv_lwhiten_gemmp_kernel(x_ref, wc_ref, bc_ref, wl_ref, bl_ref, p_ref,
                               o_ref, *, H, W, Cin, eps):
    x = x_ref[0]                                   # (H+2, W+2, Cin) bf16
    HW = H * W
    Cf = wc_ref.shape[-1]

    # conv3x3 as 9 shifted matmuls, fp32 accumulation on the MXU.
    acc = jnp.zeros((HW, Cf), jnp.float32)
    for tap in range(9):
        dy, dx = tap // 3, tap % 3
        xs = x[dy:dy + H, dx:dx + W, :].reshape(HW, Cin)
        acc = acc + jnp.dot(xs, wc_ref[tap],
                            preferred_element_type=jnp.float32)

    h = jnp.maximum(acc + bc_ref[...], 0.0)        # bias + ReLU (f32)
    feat = jnp.dot(h.astype(wl_ref.dtype), wl_ref[...],       # fused lwhiten
                   preferred_element_type=jnp.float32) + bl_ref[...]

    # GeMmp: mean(clamp(x, eps)^p)^(1/p) with a runtime per-channel p, so the
    # pow goes through exp/log on the EUP (cannot be specialized to x*x*x).
    # TODO(synk): on v6e/v7x the exp/log could use the bf16 EUP path for ~2x
    # transcendental rate if accuracy tolerances allow.
    p = p_ref[...]                                              # (1, Clw) f32
    xf = jnp.maximum(feat, eps)
    s = jnp.sum(jnp.exp(p * jnp.log(xf)), axis=0, keepdims=True)  # (1, Clw)
    o_ref[0] = jnp.exp(jnp.log(s * (1.0 / HW)) / p)               # mean^(1/p)


def conv_lwhiten_gemmp(xpad, w_conv, b_conv, w_lw, b_lw, p_gem, *, H, W,
                       eps=1e-6):
    N, Hp, Wp, Cin = xpad.shape
    assert Hp == H + 2 and Wp == W + 2
    KC, Cf = w_conv.shape
    assert KC == 9 * Cin
    Cf2, Clw = w_lw.shape
    assert Cf == Cf2

    wc3 = w_conv.reshape(9, Cin, Cf).astype(jnp.bfloat16)
    wl = w_lw.astype(jnp.bfloat16)
    bc = b_conv.reshape(1, Cf).astype(jnp.float32)
    bl = b_lw.reshape(1, Clw).astype(jnp.float32)
    p2 = p_gem.reshape(1, Clw).astype(jnp.float32)

    kernel = functools.partial(_conv_lwhiten_gemmp_kernel,
                               H=H, W=W, Cin=Cin, eps=eps)
    # TODO(synk): for production image sizes, add a second ("arbitrary")
    # spatial-band reduction axis with halo loads (memory_space=pl.ANY +
    # manual DMA) so the (H*W, Cf) intermediate stays bounded in VMEM.
    # TODO(synk): on v7x, pipeline_mode=pl.Buffered(1) on the grid-invariant
    # weight/bias blocks reclaims their second pipeline buffer.
    pooled = pl.pallas_call(
        kernel,
        out_shape=jax.ShapeDtypeStruct((N, 1, Clw), jnp.float32),
        grid=(N,),
        in_specs=[
            pl.BlockSpec((1, Hp, Wp, Cin), lambda n: (n, 0, 0, 0)),
            pl.BlockSpec((9, Cin, Cf), lambda n: (0, 0, 0)),   # resident
            pl.BlockSpec((1, Cf), lambda n: (0, 0)),           # resident
            pl.BlockSpec((Cf, Clw), lambda n: (0, 0)),         # resident
            pl.BlockSpec((1, Clw), lambda n: (0, 0)),          # resident
            pl.BlockSpec((1, Clw), lambda n: (0, 0)),          # resident
        ],
        out_specs=pl.BlockSpec((1, 1, Clw), lambda n: (n, 0, 0)),
        compiler_params=pltpu.CompilerParams(
            dimension_semantics=("parallel",),
            vmem_limit_bytes=_VMEM_LIMIT),
    )(xpad, wc3, bc, wl, bl, p2)
    return pooled.reshape(N, Clw)


# ----------------------------------------------------------------------------
# Kernel 2: whitening Linear with the pooled-vector L2N fused in (ssq is
#           accumulated alongside the K-tiled matmul partials), followed by the
#           final descriptor L2N.  K is zero-padded to the tile size (exact).
# ----------------------------------------------------------------------------
def _whiten_l2n_kernel(x_ref, w_ref, b_ref, o_ref, acc_ref, ssq_ref):
    k = pl.program_id(0)

    @pl.when(k == 0)
    def _init():
        acc_ref[...] = jnp.zeros_like(acc_ref)
        ssq_ref[...] = jnp.zeros_like(ssq_ref)

    x = x_ref[...]                                             # (N, tk) f32
    acc_ref[...] += jnp.dot(x.astype(w_ref.dtype), w_ref[...],
                            preferred_element_type=jnp.float32)
    ssq_ref[...] += jnp.sum(x * x, axis=1, keepdims=True)

    @pl.when(k == pl.num_programs(0) - 1)
    def _finalize():
        # fused input L2N: L2N(x) @ W == (x @ W) * rsqrt(sum x^2)   (exact)
        y = acc_ref[...] * lax.rsqrt(ssq_ref[...] + _L2N_EPS) + b_ref[...]
        nrm = lax.rsqrt(jnp.sum(y * y, axis=1, keepdims=True) + _L2N_EPS)
        o_ref[...] = (y * nrm).astype(o_ref.dtype)


def whiten_l2n(x, w, b, *, tk_target=512):
    N, K = x.shape
    K2, D = w.shape
    assert K == K2
    if K > tk_target:
        Kp = _round_up(K, tk_target)
        if Kp != K:                        # zero-pad the contraction (exact)
            x = jnp.pad(x, ((0, 0), (0, Kp - K)))
            w = jnp.pad(w, ((0, Kp - K), (0, 0)))
        tk = tk_target
    else:
        Kp, tk = K, K
    nk = Kp // tk
    b2 = b.reshape(1, D).astype(jnp.float32)
    return pl.pallas_call(
        _whiten_l2n_kernel,
        out_shape=jax.ShapeDtypeStruct((N, D), jnp.float32),
        grid=(nk,),
        in_specs=[
            pl.BlockSpec((N, tk), lambda k: (0, k)),
            pl.BlockSpec((tk, D), lambda k: (k, 0)),
            pl.BlockSpec((1, D), lambda k: (0, 0)),            # resident
        ],
        out_specs=pl.BlockSpec((N, D), lambda k: (0, 0)),
        scratch_shapes=[pltpu.VMEM((N, D), jnp.float32),
                        pltpu.VMEM((N, 1), jnp.float32)],
        compiler_params=pltpu.CompilerParams(
            dimension_semantics=("arbitrary",),
            vmem_limit_bytes=_VMEM_LIMIT),
    )(x.astype(jnp.float32), w.astype(jnp.bfloat16), b2)


# ----------------------------------------------------------------------------
# Full forward pass.
# ----------------------------------------------------------------------------
def image_retrieval_net_forward(x_nchw, params):
    N, Cin, H, W = x_nchw.shape
    # NCHW -> NHWC + spatial pad=1.  This is the only HBM-side data prep; the
    # 9x im2col expansion of the previous version is gone.
    xn = jnp.transpose(x_nchw, (0, 2, 3, 1)).astype(jnp.bfloat16)
    xpad = jnp.pad(xn, ((0, 0), (1, 1), (1, 1), (0, 0)))
    pooled = conv_lwhiten_gemmp(xpad, params["w_conv"], params["b_conv"],
                                params["w_lw"], params["b_lw"],
                                params["p_gem"], H=H, W=W)      # (N, Clw) f32
    desc = whiten_l2n(pooled, params["w_wh"], params["b_wh"])   # (N, D) f32
    return desc.T                                               # (D, N)


if __name__ == "__main__":
    key = jax.random.PRNGKey(0)
    kx, k1, k2, k3, k4, k5, k6 = jax.random.split(key, 7)

    # small shapes: batch=2, Cin=4, H=W=16, features Cf=32, lwhiten 32, whiten 24
    N, Cin, H, W = 2, 4, 16, 16
    Cf, Clw, Dout = 32, 32, 24

    x = jax.random.normal(kx, (N, Cin, H, W), dtype=jnp.float32)

    params = {
        "w_conv": 0.1 * jax.random.normal(k1, (9 * Cin, Cf), dtype=jnp.float32),
        "b_conv": 0.1 * jax.random.normal(k2, (Cf,), dtype=jnp.float32),
        "w_lw":   0.1 * jax.random.normal(k3, (Cf, Clw), dtype=jnp.float32),
        "b_lw":   0.1 * jax.random.normal(k4, (Clw,), dtype=jnp.float32),
        # GeMmp: per-channel learnable power p (mp = Clw), initialized to 3.0
        "p_gem":  3.0 * jnp.ones((Clw,), dtype=jnp.float32),
        "w_wh":   0.1 * jax.random.normal(k5, (Clw, Dout), dtype=jnp.float32),
        "b_wh":   0.1 * jax.random.normal(k6, (Dout,), dtype=jnp.float32),
    }

    out = jax.block_until_ready(image_retrieval_net_forward(x, params))

    # pure-JAX reference mirroring the kernel numerics (bf16 matmul operands,
    # fp32 accumulation / pooling / norms).  The whiten step uses the same
    # exact identity as the kernel: L2N(x) @ W == (x @ W) * rsqrt(sum x^2).
    def ref_forward(x, prm):
        f32, bf16 = jnp.float32, jnp.bfloat16
        Nb, Ci, Hh, Ww = x.shape
        xn = jnp.transpose(x, (0, 2, 3, 1)).astype(bf16).astype(f32)
        xp = jnp.pad(xn, ((0, 0), (1, 1), (1, 1), (0, 0)))
        cols = jnp.concatenate(
            [xp[:, dy:dy + Hh, dx:dx + Ww, :]
             for dy in range(3) for dx in range(3)],
            axis=-1).reshape(Nb * Hh * Ww, 9 * Ci)
        wc = prm["w_conv"].astype(bf16).astype(f32)
        wl = prm["w_lw"].astype(bf16).astype(f32)
        ww = prm["w_wh"].astype(bf16).astype(f32)
        h = jnp.maximum(cols @ wc + prm["b_conv"], 0.0)
        f = h.astype(bf16).astype(f32) @ wl + prm["b_lw"]
        f = f.reshape(Nb, Hh * Ww, -1)
        pv = prm["p_gem"].reshape(1, 1, -1)
        pooled = jnp.mean(jnp.maximum(f, 1e-6) ** pv, axis=1) ** (
            1.0 / prm["p_gem"].reshape(1, -1))
        ssq = jnp.sum(pooled * pooled, axis=1, keepdims=True)
        z = pooled.astype(bf16).astype(f32) @ ww
        d = z * lax.rsqrt(ssq + _L2N_EPS) + prm["b_wh"]
        d = d * lax.rsqrt(jnp.sum(d * d, axis=1, keepdims=True) + _L2N_EPS)
        return d.T

    ref = ref_forward(x, params)
    assert out.shape == (Dout, N), out.shape
    assert bool(jnp.all(jnp.isfinite(out)))
    assert bool(jnp.allclose(out, ref, rtol=1e-2, atol=1e-3)), \
        float(jnp.max(jnp.abs(out - ref)))
    print("KERNEL_OK")
</pallas_src>

<mosaic_0001>
module attributes {stable_mosaic.version = 11 : i64} {
  func.func @_conv_lwhiten_gemmp_kernel(%arg0: i32, %arg1: memref<1x18x18x4xbf16, #tpu.memory_space<vmem>>, %arg2: memref<9x4x32xbf16, #tpu.memory_space<vmem>>, %arg3: memref<1x32xf32, #tpu.memory_space<vmem>>, %arg4: memref<32x32xbf16, #tpu.memory_space<vmem>>, %arg5: memref<1x32xf32, #tpu.memory_space<vmem>>, %arg6: memref<1x32xf32, #tpu.memory_space<vmem>>, %arg7: memref<1x1x32xf32, #tpu.memory_space<vmem>>) attributes {dimension_semantics = [#tpu.dimension_semantics<parallel>], iteration_bounds = array<i64: 2>, scalar_prefetch = 0 : i64, scratch_operands = 0 : i64, tpu.core_type = #tpu.core_type<tc>, window_params = [{transform_indices = @transform_0, window_bounds = array<i64: 1, 18, 18, 4>}, {pipeline_mode = #tpu.pipeline_mode<synchronous>, transform_indices = @transform_1, window_bounds = array<i64: 9, 4, 32>}, {pipeline_mode = #tpu.pipeline_mode<synchronous>, transform_indices = @transform_2, window_bounds = array<i64: 1, 32>}, {pipeline_mode = #tpu.pipeline_mode<synchronous>, transform_indices = @transform_3, window_bounds = array<i64: 32, 32>}, {pipeline_mode = #tpu.pipeline_mode<synchronous>, transform_indices = @transform_4, window_bounds = array<i64: 1, 32>}, {pipeline_mode = #tpu.pipeline_mode<synchronous>, transform_indices = @transform_5, window_bounds = array<i64: 1, 32>}, {transform_indices = @transform_6, window_bounds = array<i64: 1, 1, 32>}]} {
    %c0 = arith.constant 0 : index
    %c0_0 = arith.constant 0 : index
    %c0_1 = arith.constant 0 : index
    %c0_2 = arith.constant 0 : index
    %0 = vector.load %arg1[%c0, %c0_0, %c0_1, %c0_2] : memref<1x18x18x4xbf16, #tpu.memory_space<vmem>>, vector<1x18x18x4xbf16>
    %1 = vector.shape_cast %0 : vector<1x18x18x4xbf16> to vector<18x18x4xbf16>
    %cst = arith.constant 0.000000e+00 : f32
    %2 = vector.broadcast %cst : f32 to vector<256x32xf32>
    %3 = vector.extract_strided_slice %1 {offsets = [0, 0, 0], sizes = [16, 16, 4], strides = [1, 1, 1]} : vector<18x18x4xbf16> to vector<16x16x4xbf16>
    %4 = vector.shape_cast %3 : vector<16x16x4xbf16> to vector<256x4xbf16>
    %c0_3 = arith.constant 0 : index
    %c0_4 = arith.constant 0 : index
    %c0_5 = arith.constant 0 : index
    %5 = vector.load %arg2[%c0_3, %c0_4, %c0_5] : memref<9x4x32xbf16, #tpu.memory_space<vmem>>, vector<1x4x32xbf16>
    %6 = vector.shape_cast %5 : vector<1x4x32xbf16> to vector<4x32xbf16>
    %cst_6 = arith.constant dense<0.000000e+00> : vector<256x32xf32>
    %7 = tpu.matmul %4, %6, %cst_6 {dimension_numbers = #tpu.dot_dimension_numbers<[1], [0], [0], [1], [0, 0, 1, 1], [], []>} : vector<256x4xbf16>, vector<4x32xbf16>, vector<256x32xf32> -> vector<256x32xf32>
    %8 = arith.addf %2, %7 : vector<256x32xf32>
    %9 = vector.extract_strided_slice %1 {offsets = [0, 1, 0], sizes = [16, 16, 4], strides = [1, 1, 1]} : vector<18x18x4xbf16> to vector<16x16x4xbf16>
    %10 = vector.shape_cast %9 : vector<16x16x4xbf16> to vector<256x4xbf16>
    %c1 = arith.constant 1 : index
    %c0_7 = arith.constant 0 : index
    %c0_8 = arith.constant 0 : index
    %11 = vector.load %arg2[%c1, %c0_7, %c0_8] : memref<9x4x32xbf16, #tpu.memory_space<vmem>>, vector<1x4x32xbf16>
    %12 = vector.shape_cast %11 : vector<1x4x32xbf16> to vector<4x32xbf16>
    %cst_9 = arith.constant dense<0.000000e+00> : vector<256x32xf32>
    %13 = tpu.matmul %10, %12, %cst_9 {dimension_numbers = #tpu.dot_dimension_numbers<[1], [0], [0], [1], [0, 0, 1, 1], [], []>} : vector<256x4xbf16>, vector<4x32xbf16>, vector<256x32xf32> -> vector<256x32xf32>
    %14 = arith.addf %8, %13 : vector<256x32xf32>
    %15 = vector.extract_strided_slice %1 {offsets = [0, 2, 0], sizes = [16, 16, 4], strides = [1, 1, 1]} : vector<18x18x4xbf16> to vector<16x16x4xbf16>
    %16 = vector.shape_cast %15 : vector<16x16x4xbf16> to vector<256x4xbf16>
    %c2 = arith.constant 2 : index
    %c0_10 = arith.constant 0 : index
    %c0_11 = arith.constant 0 : index
    %17 = vector.load %arg2[%c2, %c0_10, %c0_11] : memref<9x4x32xbf16, #tpu.memory_space<vmem>>, vector<1x4x32xbf16>
    %18 = vector.shape_cast %17 : vector<1x4x32xbf16> to vector<4x32xbf16>
    %cst_12 = arith.constant dense<0.000000e+00> : vector<256x32xf32>
    %19 = tpu.matmul %16, %18, %cst_12 {dimension_numbers = #tpu.dot_dimension_numbers<[1], [0], [0], [1], [0, 0, 1, 1], [], []>} : vector<256x4xbf16>, vector<4x32xbf16>, vector<256x32xf32> -> vector<256x32xf32>
    %20 = arith.addf %14, %19 : vector<256x32xf32>
    %21 = vector.extract_strided_slice %1 {offsets = [1, 0, 0], sizes = [16, 16, 4], strides = [1, 1, 1]} : vector<18x18x4xbf16> to vector<16x16x4xbf16>
    %22 = vector.shape_cast %21 : vector<16x16x4xbf16> to vector<256x4xbf16>
    %c3 = arith.constant 3 : index
    %c0_13 = arith.constant 0 : index
    %c0_14 = arith.constant 0 : index
    %23 = vector.load %arg2[%c3, %c0_13, %c0_14] : memref<9x4x32xbf16, #tpu.memory_space<vmem>>, vector<1x4x32xbf16>
    %24 = vector.shape_cast %23 : vector<1x4x32xbf16> to vector<4x32xbf16>
    %cst_15 = arith.constant dense<0.000000e+00> : vector<256x32xf32>
    %25 = tpu.matmul %22, %24, %cst_15 {dimension_numbers = #tpu.dot_dimension_numbers<[1], [0], [0], [1], [0, 0, 1, 1], [], []>} : vector<256x4xbf16>, vector<4x32xbf16>, vector<256x32xf32> -> vector<256x32xf32>
    %26 = arith.addf %20, %25 : vector<256x32xf32>
    %27 = vector.extract_strided_slice %1 {offsets = [1, 1, 0], sizes = [16, 16, 4], strides = [1, 1, 1]} : vector<18x18x4xbf16> to vector<16x16x4xbf16>
    %28 = vector.shape_cast %27 : vector<16x16x4xbf16> to vector<256x4xbf16>
    %c4 = arith.constant 4 : index
    %c0_16 = arith.constant 0 : index
    %c0_17 = arith.constant 0 : index
    %29 = vector.load %arg2[%c4, %c0_16, %c0_17] : memref<9x4x32xbf16, #tpu.memory_space<vmem>>, vector<1x4x32xbf16>
    %30 = vector.shape_cast %29 : vector<1x4x32xbf16> to vector<4x32xbf16>
    %cst_18 = arith.constant dense<0.000000e+00> : vector<256x32xf32>
    %31 = tpu.matmul %28, %30, %cst_18 {dimension_numbers = #tpu.dot_dimension_numbers<[1], [0], [0], [1], [0, 0, 1, 1], [], []>} : vector<256x4xbf16>, vector<4x32xbf16>, vector<256x32xf32> -> vector<256x32xf32>
    %32 = arith.addf %26, %31 : vector<256x32xf32>
    %33 = vector.extract_strided_slice %1 {offsets = [1, 2, 0], sizes = [16, 16, 4], strides = [1, 1, 1]} : vector<18x18x4xbf16> to vector<16x16x4xbf16>
    %34 = vector.shape_cast %33 : vector<16x16x4xbf16> to vector<256x4xbf16>
    %c5 = arith.constant 5 : index
    %c0_19 = arith.constant 0 : index
    %c0_20 = arith.constant 0 : index
    %35 = vector.load %arg2[%c5, %c0_19, %c0_20] : memref<9x4x32xbf16, #tpu.memory_space<vmem>>, vector<1x4x32xbf16>
    %36 = vector.shape_cast %35 : vector<1x4x32xbf16> to vector<4x32xbf16>
    %cst_21 = arith.constant dense<0.000000e+00> : vector<256x32xf32>
    %37 = tpu.matmul %34, %36, %cst_21 {dimension_numbers = #tpu.dot_dimension_numbers<[1], [0], [0], [1], [0, 0, 1, 1], [], []>} : vector<256x4xbf16>, vector<4x32xbf16>, vector<256x32xf32> -> vector<256x32xf32>
    %38 = arith.addf %32, %37 : vector<256x32xf32>
    %39 = vector.extract_strided_slice %1 {offsets = [2, 0, 0], sizes = [16, 16, 4], strides = [1, 1, 1]} : vector<18x18x4xbf16> to vector<16x16x4xbf16>
    %40 = vector.shape_cast %39 : vector<16x16x4xbf16> to vector<256x4xbf16>
    %c6 = arith.constant 6 : index
    %c0_22 = arith.constant 0 : index
    %c0_23 = arith.constant 0 : index
    %41 = vector.load %arg2[%c6, %c0_22, %c0_23] : memref<9x4x32xbf16, #tpu.memory_space<vmem>>, vector<1x4x32xbf16>
    %42 = vector.shape_cast %41 : vector<1x4x32xbf16> to vector<4x32xbf16>
    %cst_24 = arith.constant dense<0.000000e+00> : vector<256x32xf32>
    %43 = tpu.matmul %40, %42, %cst_24 {dimension_numbers = #tpu.dot_dimension_numbers<[1], [0], [0], [1], [0, 0, 1, 1], [], []>} : vector<256x4xbf16>, vector<4x32xbf16>, vector<256x32xf32> -> vector<256x32xf32>
    %44 = arith.addf %38, %43 : vector<256x32xf32>
    %45 = vector.extract_strided_slice %1 {offsets = [2, 1, 0], sizes = [16, 16, 4], strides = [1, 1, 1]} : vector<18x18x4xbf16> to vector<16x16x4xbf16>
    %46 = vector.shape_cast %45 : vector<16x16x4xbf16> to vector<256x4xbf16>
    %c7 = arith.constant 7 : index
    %c0_25 = arith.constant 0 : index
    %c0_26 = arith.constant 0 : index
    %47 = vector.load %arg2[%c7, %c0_25, %c0_26] : memref<9x4x32xbf16, #tpu.memory_space<vmem>>, vector<1x4x32xbf16>
    %48 = vector.shape_cast %47 : vector<1x4x32xbf16> to vector<4x32xbf16>
    %cst_27 = arith.constant dense<0.000000e+00> : vector<256x32xf32>
    %49 = tpu.matmul %46, %48, %cst_27 {dimension_numbers = #tpu.dot_dimension_numbers<[1], [0], [0], [1], [0, 0, 1, 1], [], []>} : vector<256x4xbf16>, vector<4x32xbf16>, vector<256x32xf32> -> vector<256x32xf32>
    %50 = arith.addf %44, %49 : vector<256x32xf32>
    %51 = vector.extract_strided_slice %1 {offsets = [2, 2, 0], sizes = [16, 16, 4], strides = [1, 1, 1]} : vector<18x18x4xbf16> to vector<16x16x4xbf16>
    %52 = vector.shape_cast %51 : vector<16x16x4xbf16> to vector<256x4xbf16>
    %c8 = arith.constant 8 : index
    %c0_28 = arith.constant 0 : index
    %c0_29 = arith.constant 0 : index
    %53 = vector.load %arg2[%c8, %c0_28, %c0_29] : memref<9x4x32xbf16, #tpu.memory_space<vmem>>, vector<1x4x32xbf16>
    %54 = vector.shape_cast %53 : vector<1x4x32xbf16> to vector<4x32xbf16>
    %cst_30 = arith.constant dense<0.000000e+00> : vector<256x32xf32>
    %55 = tpu.matmul %52, %54, %cst_30 {dimension_numbers = #tpu.dot_dimension_numbers<[1], [0], [0], [1], [0, 0, 1, 1], [], []>} : vector<256x4xbf16>, vector<4x32xbf16>, vector<256x32xf32> -> vector<256x32xf32>
    %56 = arith.addf %50, %55 : vector<256x32xf32>
    %c0_31 = arith.constant 0 : index
    %c0_32 = arith.constant 0 : index
    %57 = vector.load %arg3[%c0_31, %c0_32] : memref<1x32xf32, #tpu.memory_space<vmem>>, vector<1x32xf32>
    %58 = vector.broadcast %57 : vector<1x32xf32> to vector<256x32xf32>
    %59 = arith.addf %56, %58 : vector<256x32xf32>
    %cst_33 = arith.constant 0.000000e+00 : f32
    %60 = vector.broadcast %cst_33 : f32 to vector<256x32xf32>
    %61 = arith.maximumf %59, %60 : vector<256x32xf32>
    %62 = arith.truncf %61 : vector<256x32xf32> to vector<256x32xbf16>
    %c0_34 = arith.constant 0 : index
    %c0_35 = arith.constant 0 : index
    %63 = vector.load %arg4[%c0_34, %c0_35] : memref<32x32xbf16, #tpu.memory_space<vmem>>, vector<32x32xbf16>
    %cst_36 = arith.constant dense<0.000000e+00> : vector<256x32xf32>
    %64 = tpu.matmul %62, %63, %cst_36 {dimension_numbers = #tpu.dot_dimension_numbers<[1], [0], [0], [1], [0, 0, 1, 1], [], []>} : vector<256x32xbf16>, vector<32x32xbf16>, vector<256x32xf32> -> vector<256x32xf32>
    %c0_37 = arith.constant 0 : index
    %c0_38 = arith.constant 0 : index
    %65 = vector.load %arg5[%c0_37, %c0_38] : memref<1x32xf32, #tpu.memory_space<vmem>>, vector<1x32xf32>
    %66 = vector.broadcast %65 : vector<1x32xf32> to vector<256x32xf32>
    %67 = arith.addf %64, %66 : vector<256x32xf32>
    %c0_39 = arith.constant 0 : index
    %c0_40 = arith.constant 0 : index
    %68 = vector.load %arg6[%c0_39, %c0_40] : memref<1x32xf32, #tpu.memory_space<vmem>>, vector<1x32xf32>
    %cst_41 = arith.constant 9.99999997E-7 : f32
    %69 = vector.broadcast %cst_41 : f32 to vector<256x32xf32>
    %70 = arith.maximumf %67, %69 : vector<256x32xf32>
    %71 = math.log %70 : vector<256x32xf32>
    %72 = vector.broadcast %68 : vector<1x32xf32> to vector<256x32xf32>
    %73 = arith.mulf %72, %71 : vector<256x32xf32>
    %74 = math.exp %73 : vector<256x32xf32>
    %cst_42 = arith.constant dense<0.000000e+00> : vector<32xf32>
    %75 = vector.multi_reduction <add>, %74, %cst_42 [0] : vector<256x32xf32> to vector<32xf32>
    %76 = vector.shape_cast %75 : vector<32xf32> to vector<1x32xf32>
    %cst_43 = arith.constant 3.906250e-03 : f32
    %77 = vector.broadcast %cst_43 : f32 to vector<1x32xf32>
    %78 = arith.mulf %76, %77 : vector<1x32xf32>
    %79 = math.log %78 : vector<1x32xf32>
    %80 = arith.divf %79, %68 : vector<1x32xf32>
    %81 = math.exp %80 : vector<1x32xf32>
    %c0_44 = arith.constant 0 : index
    %c0_45 = arith.constant 0 : index
    %c0_46 = arith.constant 0 : index
    %82 = vector.load %arg7[%c0_44, %c0_45, %c0_46] : memref<1x1x32xf32, #tpu.memory_space<vmem>>, vector<1x1x32xf32>
    %83 = vector.shape_cast %82 : vector<1x1x32xf32> to vector<1x32xf32>
    %84 = vector.shape_cast %81 : vector<1x32xf32> to vector<1x1x32xf32>
    tpu.vector_store %arg7[%c0_44, %c0_45, %c0_46], %84 {strides = array<i32>} : memref<1x1x32xf32, #tpu.memory_space<vmem>>, vector<1x1x32xf32>,
    return
  }
  func.func @transform_0(%arg0: i32) -> (i32, i32, i32, i32) {
    %c0_i32 = arith.constant 0 : i32
    %c0_i32_0 = arith.constant 0 : i32
    %c0_i32_1 = arith.constant 0 : i32
    %c0_i32_2 = arith.constant 0 : i32
    return %arg0, %c0_i32, %c0_i32_0, %c0_i32_1 : i32, i32, i32, i32
  }
  func.func @transform_1(%arg0: i32) -> (i32, i32, i32) {
    %c0_i32 = arith.constant 0 : i32
    %c0_i32_0 = arith.constant 0 : i32
    %c0_i32_1 = arith.constant 0 : i32
    %c0_i32_2 = arith.constant 0 : i32
    return %c0_i32, %c0_i32_0, %c0_i32_1 : i32, i32, i32
  }
  func.func @transform_2(%arg0: i32) -> (i32, i32) {
    %c0_i32 = arith.constant 0 : i32
    %c0_i32_0 = arith.constant 0 : i32
    %c0_i32_1 = arith.constant 0 : i32
    return %c0_i32, %c0_i32_0 : i32, i32
  }
  func.func @transform_3(%arg0: i32) -> (i32, i32) {
    %c0_i32 = arith.constant 0 : i32
    %c0_i32_0 = arith.constant 0 : i32
    %c0_i32_1 = arith.constant 0 : i32
    return %c0_i32, %c0_i32_0 : i32, i32
  }
  func.func @transform_4(%arg0: i32) -> (i32, i32) {
    %c0_i32 = arith.constant 0 : i32
    %c0_i32_0 = arith.constant 0 : i32
    %c0_i32_1 = arith.constant 0 : i32
    return %c0_i32, %c0_i32_0 : i32, i32
  }
  func.func @transform_5(%arg0: i32) -> (i32, i32) {
    %c0_i32 = arith.constant 0 : i32
    %c0_i32_0 = arith.constant 0 : i32
    %c0_i32_1 = arith.constant 0 : i32
    return %c0_i32, %c0_i32_0 : i32, i32
  }
  func.func @transform_6(%arg0: i32) -> (i32, i32, i32) {
    %c0_i32 = arith.constant 0 : i32
    %c0_i32_0 = arith.constant 0 : i32
    %c0_i32_1 = arith.constant 0 : i32
    return %arg0, %c0_i32, %c0_i32_0 : i32, i32, i32
  }
}

</mosaic_0001>

<llo_original>
// kernel: tpu_custom_call.1
$region0: #{tpu_custom_call.1}
  #allocation0 [shape = 'u32[]', space=smem, size = 0x4, offset = 0x4, fixed_abs, tag = 'smem constant byte address 0x4 - core index']
  #allocation1 [shape = 'u32[144,128]{1,0:T(1,128)}', space=vmem, size = 0x12000, scoped, tag = 'internal scratch']
  %s0 = inlined_call_operand.hbm [shape: bf16[2,18,18,4], index: 0, kind: input, shape index: {}]
  %s1 = inlined_call_operand.hbm [shape: bf16[9,4,32], index: 1, kind: input, shape index: {}]
  %s2 = inlined_call_operand.hbm [shape: f32[1,32], index: 2, kind: input, shape index: {}]
  %s3 = inlined_call_operand.hbm [shape: bf16[32,32], index: 3, kind: input, shape index: {}]
  %s4 = inlined_call_operand.hbm [shape: f32[1,32], index: 4, kind: input, shape index: {}]
  %s5 = inlined_call_operand.hbm [shape: f32[1,32], index: 5, kind: input, shape index: {}]
  %s6 = inlined_call_operand.hbm [shape: f32[2,1,32], index: 6, kind: output, shape index: {}]
  %s7 = sld [smem:[#allocation0]]
  $region81: #{tpu_custom_call.1} parent=0
    _
  %s9 = ssub.s32 1, %s7
  %s10 = scalar_select 0, %s9, %s7
  $region1: #{tpu_custom_call.1} parent=0
    #allocation2 [shape = 'u8[221184]{0}', space=vmem, size = 0x36000, scoped, tag = 'input window, operand 0']
    #allocation3 [shape = 's32[2]{0}', space=sflag, size = 0x8, scoped, tag = 'scoped memory for tpu_custom_call.1']
    #allocation4 [shape = 's32[2]{0}', space=sflag, size = 0x8, scoped, tag = 'scoped memory for tpu_custom_call.1']
    #allocation5 [shape = 'u8[9216]{0}', space=vmem, size = 0x2400, scoped, tag = 'input window, operand 1, single buffered']
    #allocation6 [shape = 's32[1]{0}', space=sflag, size = 0x4, scoped, tag = 'scoped memory for tpu_custom_call.1']
    #allocation7 [shape = 'u8[512]{0}', space=vmem, size = 0x400, scoped, tag = 'input window, operand 2, single buffered']
    #allocation8 [shape = 'u8[8192]{0}', space=vmem, size = 0x2000, scoped, tag = 'input window, operand 3, single buffered']
    #allocation9 [shape = 's32[1]{0}', space=sflag, size = 0x4, scoped, tag = 'scoped memory for tpu_custom_call.1']
    #allocation10 [shape = 'u8[512]{0}', space=vmem, size = 0x400, scoped, tag = 'input window, operand 4, single buffered']
    #allocation11 [shape = 'u8[512]{0}', space=vmem, size = 0x400, scoped, tag = 'input window, operand 5, single buffered']
    #allocation12 [shape = 's32[1]{0}', space=sflag, size = 0x4, scoped, tag = 'scoped memory for tpu_custom_call.1']
    #allocation13 [shape = 'u8[1024]{0}', space=vmem, size = 0x400, scoped, tag = 'output window, operand 0']
    %11 = vsyncpa [#allocation3], 0
    %s12 = scalar_lea.sflag [#allocation3], 1
    %13 = vsyncpa %s12, 0
    %14 = vsyncpa [#allocation6], 0
    %15 = vsyncpa [#allocation9], 0
    %16 = vsyncpa [#allocation12], 0
    %17 = vsyncpa [#allocation4], 0
    %s18 = scalar_lea.sflag [#allocation4], 1
    %19 = vsyncpa %s18, 0
    loop: start=0, step=1, limit=4
    $region2: #{tpu_custom_call.1} parent=1 // loop_pre_header
      _
    $region3: #{tpu_custom_call.1} parent=1 // loop_header
      %s21 = sphi 0, %s25
      %p22 = scmp.ge.s32.totalorder %s21, 4
      %s31 = sphi 0, %s33
      %s34 = sphi 0, %s31
      %s35 = sphi 0, %s34
      %s51 = sphi 0, %s35
      %s55 = sphi 0, %s55
      %s57 = sphi 0, %s55
      %s58 = sphi 0, %s57
      %s72 = sphi 0, %s58
      %s76 = sphi 0, %s76
      %s78 = sphi 0, %s76
      %s79 = sphi 0, %s78
      %s93 = sphi 0, %s79
      %s97 = sphi 0, %s97
      %s99 = sphi 0, %s97
      %s100 = sphi 0, %s99
      %s114 = sphi 0, %s100
      %s118 = sphi 0, %s118
      %s120 = sphi 0, %s118
      %s121 = sphi 0, %s120
      %s135 = sphi 0, %s121
      %s139 = sphi 0, %s139
      %s141 = sphi 0, %s139
      %s142 = sphi 0, %s141
      %s156 = sphi 0, %s142
      %s162 = sphi 0, %s164
      %s165 = sphi 0, %s162
      %s166 = sphi 0, %s165
      %s182 = sphi 0, %s166
    $region4: #{tpu_custom_call.1} parent=1 // loop_header_branch
      %24 = sbr.rel (%p22) target = $region8
    $region5: #{tpu_custom_call.1} parent=1 // loop_body
      %s26 = ssub.s32 %s21, 1
      %s27 = ssub.s32 %s21, 2
      %s28 = sadd.s32 %s21, 1
      %s29 = ssub.s32 %s21, %s28
      %p30 = scmp.eq.s32.totalorder %s29, 0
      %s32 = sadd.s32 %s31, 1
      %s33 = scalar_select %p30, %s31, %s32
      %p36 = pneg %p30
      %p37 = scmp.eq.s32.totalorder %s21, 1
      %p38 = por %p36, %p37
      %p39 = scmp.ne.s32.totalorder %s31, %s34
      %p40 = scmp.eq.s32.totalorder %s21, 0
      %p41 = por %p39, %p40
      %p42 = scmp.ne.s32.totalorder %s31, %s34
      %p43 = scmp.eq.s32.totalorder %s26, 1
      %p44 = por %p42, %p43
      %p45 = scmp.ne.s32.totalorder %s34, %s35
      %p46 = scmp.eq.s32.totalorder %s26, 0
      %p47 = por %p45, %p46
      %p48 = scmp.ne.s32.totalorder %s34, %s35
      %p49 = scmp.eq.s32.totalorder %s27, 1
      %p50 = por %p48, %p49
      %p52 = scmp.ne.s32.totalorder %s35, %s51
      %p53 = scmp.eq.s32.totalorder %s27, 0
      %p54 = por %p52, %p53
      %s56 = sadd.s32 %s55, 1
      %p59 = scmp.eq.s32.totalorder %s21, 1
      %p60 = scmp.ne.s32.totalorder %s55, %s57
      %p61 = scmp.eq.s32.totalorder %s21, 0
      %p62 = por %p60, %p61
      %p63 = scmp.ne.s32.totalorder %s55, %s57
      %p64 = scmp.eq.s32.totalorder %s26, 1
      %p65 = por %p63, %p64
      %p66 = scmp.ne.s32.totalorder %s57, %s58
      %p67 = scmp.eq.s32.totalorder %s26, 0
      %p68 = por %p66, %p67
      %p69 = scmp.ne.s32.totalorder %s57, %s58
      %p70 = scmp.eq.s32.totalorder %s27, 1
      %p71 = por %p69, %p70
      %p73 = scmp.ne.s32.totalorder %s58, %s72
      %p74 = scmp.eq.s32.totalorder %s27, 0
      %p75 = por %p73, %p74
      %s77 = sadd.s32 %s76, 1
      %p80 = scmp.eq.s32.totalorder %s21, 1
      %p81 = scmp.ne.s32.totalorder %s76, %s78
      %p82 = scmp.eq.s32.totalorder %s21, 0
      %p83 = por %p81, %p82
      %p84 = scmp.ne.s32.totalorder %s76, %s78
      %p85 = scmp.eq.s32.totalorder %s26, 1
      %p86 = por %p84, %p85
      %p87 = scmp.ne.s32.totalorder %s78, %s79
      %p88 = scmp.eq.s32.totalorder %s26, 0
      %p89 = por %p87, %p88
      %p90 = scmp.ne.s32.totalorder %s78, %s79
      %p91 = scmp.eq.s32.totalorder %s27, 1
      %p92 = por %p90, %p91
      %p94 = scmp.ne.s32.totalorder %s79, %s93
      %p95 = scmp.eq.s32.totalorder %s27, 0
      %p96 = por %p94, %p95
      %s98 = sadd.s32 %s97, 1
      %p101 = scmp.eq.s32.totalorder %s21, 1
      %p102 = scmp.ne.s32.totalorder %s97, %s99
      %p103 = scmp.eq.s32.totalorder %s21, 0
      %p104 = por %p102, %p103
      %p105 = scmp.ne.s32.totalorder %s97, %s99
      %p106 = scmp.eq.s32.totalorder %s26, 1
      %p107 = por %p105, %p106
      %p108 = scmp.ne.s32.totalorder %s99, %s100
      %p109 = scmp.eq.s32.totalorder %s26, 0
      %p110 = por %p108, %p109
      %p111 = scmp.ne.s32.totalorder %s99, %s100
      %p112 = scmp.eq.s32.totalorder %s27, 1
      %p113 = por %p111, %p112
      %p115 = scmp.ne.s32.totalorder %s100, %s114
      %p116 = scmp.eq.s32.totalorder %s27, 0
      %p117 = por %p115, %p116
      %s119 = sadd.s32 %s118, 1
      %p122 = scmp.eq.s32.totalorder %s21, 1
      %p123 = scmp.ne.s32.totalorder %s118, %s120
      %p124 = scmp.eq.s32.totalorder %s21, 0
      %p125 = por %p123, %p124
      %p126 = scmp.ne.s32.totalorder %s118, %s120
      %p127 = scmp.eq.s32.totalorder %s26, 1
      %p128 = por %p126, %p127
      %p129 = scmp.ne.s32.totalorder %s120, %s121
      %p130 = scmp.eq.s32.totalorder %s26, 0
      %p131 = por %p129, %p130
      %p132 = scmp.ne.s32.totalorder %s120, %s121
      %p133 = scmp.eq.s32.totalorder %s27, 1
      %p134 = por %p132, %p133
      %p136 = scmp.ne.s32.totalorder %s121, %s135
      %p137 = scmp.eq.s32.totalorder %s27, 0
      %p138 = por %p136, %p137
      %s140 = sadd.s32 %s139, 1
      %p143 = scmp.eq.s32.totalorder %s21, 1
      %p144 = scmp.ne.s32.totalorder %s139, %s141
      %p145 = scmp.eq.s32.totalorder %s21, 0
      %p146 = por %p144, %p145
      %p147 = scmp.ne.s32.totalorder %s139, %s141
      %p148 = scmp.eq.s32.totalorder %s26, 1
      %p149 = por %p147, %p148
      %p150 = scmp.ne.s32.totalorder %s141, %s142
      %p151 = scmp.eq.s32.totalorder %s26, 0
      %p152 = por %p150, %p151
      %p153 = scmp.ne.s32.totalorder %s141, %s142
      %p154 = scmp.eq.s32.totalorder %s27, 1
      %p155 = por %p153, %p154
      %p157 = scmp.ne.s32.totalorder %s142, %s156
      %p158 = scmp.eq.s32.totalorder %s27, 0
      %p159 = por %p157, %p158
      %s160 = ssub.s32 %s21, %s28
      %p161 = scmp.eq.s32.totalorder %s160, 0
      %s163 = sadd.s32 %s162, 1
      %s164 = scalar_select %p161, %s162, %s163
      %p167 = pneg %p161
      %p168 = scmp.eq.s32.totalorder %s21, 1
      %p169 = por %p167, %p168
      %p170 = scmp.ne.s32.totalorder %s162, %s165
      %p171 = scmp.eq.s32.totalorder %s21, 0
      %p172 = por %p170, %p171
      %p173 = scmp.ne.s32.totalorder %s162, %s165
      %p174 = scmp.eq.s32.totalorder %s26, 1
      %p175 = por %p173, %p174
      %p176 = scmp.ne.s32.totalorder %s165, %s166
      %p177 = scmp.eq.s32.totalorder %s26, 0
      %p178 = por %p176, %p177
      %p179 = scmp.ne.s32.totalorder %s165, %s166
      %p180 = scmp.eq.s32.totalorder %s27, 1
      %p181 = por %p179, %p180
      %p183 = scmp.ne.s32.totalorder %s166, %s182
      %p184 = scmp.eq.s32.totalorder %s27, 0
      %p185 = por %p183, %p184
      %p186 = scmp.le.s32.totalorder 1, %s21
      %p187 = scmp.lt.s32.totalorder %s21, 3
      %p188 = pnand %p186, %p187
      %p189 = pneg %p188
      // Predicated region
      $region9: #{tpu_custom_call.1} parent=5 // pred_check
        _
      $region10: #{tpu_custom_call.1} parent=5 // pred_check_branch
        %191 = sbr.rel (%p188) target = $region12
      $region11: #{tpu_custom_call.1} parent=5 // pred_region
        %s192 = ssub.s32 %s21, 1
        // Predicated region
        $region13: #{tpu_custom_call.1} parent=11 // pred_check
          %p193 = pneg %p68
        $region14: #{tpu_custom_call.1} parent=11 // pred_check_branch
          %195 = sbr.rel (%p193) target = $region16
        $region15: #{tpu_custom_call.1} parent=11 // pred_region
          %s197 = ssub.s32 288, 288
          %198 = vsyncadd [#allocation6], %s197
          %s199 = sshll.u32 [#allocation5], 4
          %s200 = int_to_ptr.vmem [resolvable:$true] %s199
          %205 = dma.hbm_to_vmem [thread:$0]  %s1, 288, %s200, [#allocation6], 32, 32, 2
        $region16: #{tpu_custom_call.1} parent=11 // pred_fallthru
          _
        // Predicated region
        $region17: #{tpu_custom_call.1} parent=11 // pred_check
          %p206 = pneg %p89
        $region18: #{tpu_custom_call.1} parent=11 // pred_check_branch
          %208 = sbr.rel (%p206) target = $region20
        $region19: #{tpu_custom_call.1} parent=11 // pred_region
          %s210 = ssub.s32 16, 16
          %211 = vsyncadd [#allocation6], %s210
          %s213 = sshll.u32 [#allocation7], 4
          %s214 = int_to_ptr.vmem [resolvable:$true] %s213
          %216 = dma.hbm_to_vmem [thread:$0]  %s2, 16, %s214, [#allocation6]
        $region20: #{tpu_custom_call.1} parent=11 // pred_fallthru
          _
        // Predicated region
        $region21: #{tpu_custom_call.1} parent=11 // pred_check
          %p217 = pneg %p110
        $region22: #{tpu_custom_call.1} parent=11 // pred_check_branch
          %219 = sbr.rel (%p217) target = $region24
        $region23: #{tpu_custom_call.1} parent=11 // pred_region
          %s221 = ssub.s32 256, 256
          %222 = vsyncadd [#allocation9], %s221
          %s223 = sshll.u32 [#allocation8], 4
          %s224 = int_to_ptr.vmem [resolvable:$true] %s223
          %229 = dma.hbm_to_vmem [thread:$0]  %s3, 256, %s224, [#allocation9], 64, 64, 4
        $region24: #{tpu_custom_call.1} parent=11 // pred_fallthru
          _
        // Predicated region
        $region25: #{tpu_custom_call.1} parent=11 // pred_check
          %p230 = pneg %p131
        $region26: #{tpu_custom_call.1} parent=11 // pred_check_branch
          %232 = sbr.rel (%p230) target = $region28
        $region27: #{tpu_custom_call.1} parent=11 // pred_region
          %s234 = ssub.s32 16, 16
          %235 = vsyncadd [#allocation9], %s234
          %s237 = sshll.u32 [#allocation10], 4
          %s238 = int_to_ptr.vmem [resolvable:$true] %s237
          %240 = dma.hbm_to_vmem [thread:$0]  %s4, 16, %s238, [#allocation9]
        $region28: #{tpu_custom_call.1} parent=11 // pred_fallthru
          _
        // Predicated region
        $region29: #{tpu_custom_call.1} parent=11 // pred_check
          %p241 = pneg %p152
        $region30: #{tpu_custom_call.1} parent=11 // pred_check_branch
          %243 = sbr.rel (%p241) target = $region32
        $region31: #{tpu_custom_call.1} parent=11 // pred_region
          %s245 = ssub.s32 16, 16
          %246 = vsyncadd [#allocation12], %s245
          %s248 = sshll.u32 [#allocation11], 4
          %s249 = int_to_ptr.vmem [resolvable:$true] %s248
          %251 = dma.hbm_to_vmem [thread:$0]  %s5, 16, %s249, [#allocation12]
        $region32: #{tpu_custom_call.1} parent=11 // pred_fallthru
          _
      $region12: #{tpu_custom_call.1} parent=5 // pred_fallthru
        _
      %p252 = scmp.lt.s32.totalorder %s21, 2
      // Predicated region
      $region33: #{tpu_custom_call.1} parent=5 // pred_check
        %p253 = pneg %p252
      $region34: #{tpu_custom_call.1} parent=5 // pred_check_branch
        %255 = sbr.rel (%p253) target = $region36
      $region35: #{tpu_custom_call.1} parent=5 // pred_region
        // Predicated region
        $region37: #{tpu_custom_call.1} parent=35 // pred_check
          %p256 = pneg %p41
        $region38: #{tpu_custom_call.1} parent=35 // pred_check_branch
          %258 = sbr.rel (%p256) target = $region40
        $region39: #{tpu_custom_call.1} parent=35 // pred_region
          %s259 = sand.u32 %s31, 1
          %s260 = scalar_lea.sflag [#allocation3], %s259
          %s261 = sand.u32 %s31, 1
          %s262 = smul.addr %s261, 216
          %s263 = scalar_lea.vmem [#allocation2], %s262
          %s265 = ssub.s32 3456, 3456
          %266 = vsyncadd %s260, %s265
          %s267 = smul.addr %s21, 54
          %s268 = smul.addr %s267, 64
          %s269 = scalar_lea.hbm %s0, %s268
          %s270 = sshll.u32 %s263, 4
          %s271 = int_to_ptr.vmem [resolvable:$true] %s270
          %276 = dma.hbm_to_vmem [thread:$0]  %s269, 3456, %s271, %s260, 64, 64, 4
        $region40: #{tpu_custom_call.1} parent=35 // pred_fallthru
          _
      $region36: #{tpu_custom_call.1} parent=5 // pred_fallthru
        _
      %p277 = scmp.le.s32.totalorder 1, %s21
      %p278 = scmp.lt.s32.totalorder %s21, 3
      %p279 = pnand %p277, %p278
      %p280 = pneg %p279
      // Predicated region
      $region41: #{tpu_custom_call.1} parent=5 // pred_check
        _
      $region42: #{tpu_custom_call.1} parent=5 // pred_check_branch
        %282 = sbr.rel (%p279) target = $region44
      $region43: #{tpu_custom_call.1} parent=5 // pred_region
        %s283 = ssub.s32 %s21, 1
        %s284 = sand.u32 %s34, 1
        %s285 = scalar_lea.sflag [#allocation3], %s284
        %s286 = sand.u32 %s34, 1
        %s287 = smul.addr %s286, 216
        %s288 = scalar_lea.vmem [#allocation2], %s287
        // Predicated region
        $region45: #{tpu_custom_call.1} parent=43 // pred_check
          %p289 = pneg %p47
        $region46: #{tpu_custom_call.1} parent=43 // pred_check_branch
          %291 = sbr.rel (%p289) target = $region48
        $region47: #{tpu_custom_call.1} parent=43 // pred_region
          %292 = dma.done %s285, 3456
        $region48: #{tpu_custom_call.1} parent=43 // pred_fallthru
          _
        // Predicated region
        $region49: #{tpu_custom_call.1} parent=43 // pred_check
          %p293 = pneg %p68
        $region50: #{tpu_custom_call.1} parent=43 // pred_check_branch
          %295 = sbr.rel (%p293) target = $region52
        $region51: #{tpu_custom_call.1} parent=43 // pred_region
          %296 = dma.done [#allocation6], 288
        $region52: #{tpu_custom_call.1} parent=43 // pred_fallthru
          _
        // Predicated region
        $region53: #{tpu_custom_call.1} parent=43 // pred_check
          %p297 = pneg %p89
        $region54: #{tpu_custom_call.1} parent=43 // pred_check_branch
          %299 = sbr.rel (%p297) target = $region56
        $region55: #{tpu_custom_call.1} parent=43 // pred_region
          %300 = dma.done [#allocation6], 16
        $region56: #{tpu_custom_call.1} parent=43 // pred_fallthru
          _
        // Predicated region
        $region57: #{tpu_custom_call.1} parent=43 // pred_check
          %p301 = pneg %p110
        $region58: #{tpu_custom_call.1} parent=43 // pred_check_branch
          %303 = sbr.rel (%p301) target = $region60
        $region59: #{tpu_custom_call.1} parent=43 // pred_region
          %304 = dma.done [#allocation9], 256
        $region60: #{tpu_custom_call.1} parent=43 // pred_fallthru
          _
        // Predicated region
        $region61: #{tpu_custom_call.1} parent=43 // pred_check
          %p305 = pneg %p131
        $region62: #{tpu_custom_call.1} parent=43 // pred_check_branch
          %307 = sbr.rel (%p305) target = $region64
        $region63: #{tpu_custom_call.1} parent=43 // pred_region
          %308 = dma.done [#allocation9], 16
        $region64: #{tpu_custom_call.1} parent=43 // pred_fallthru
          _
        // Predicated region
        $region65: #{tpu_custom_call.1} parent=43 // pred_check
          %p309 = pneg %p152
        $region66: #{tpu_custom_call.1} parent=43 // pred_check_branch
          %311 = sbr.rel (%p309) target = $region68
        $region67: #{tpu_custom_call.1} parent=43 // pred_region
          %312 = dma.done [#allocation12], 16
        $region68: #{tpu_custom_call.1} parent=43 // pred_fallthru
          _
        %s313 = sand.u32 %s34, 1
        %s314 = scalar_lea.sflag [#allocation3], %s313
        %s315 = sand.u32 %s34, 1
        %s316 = smul.addr %s315, 216
        %s317 = scalar_lea.vmem [#allocation2], %s316
        %p318 = pneg %p47
        %p319 = pneg %p44
        %p320 = pneg %p68
        %p321 = pneg %p65
        %p322 = pneg %p89
        %p323 = pneg %p86
        %p324 = pneg %p110
        %p325 = pneg %p107
        %p326 = pneg %p131
        %p327 = pneg %p128
        %p328 = pneg %p152
        %p329 = pneg %p149
        %p330 = pneg %p178
        %p331 = pneg %p175
        %s332 = sand.u32 %s165, 1
        %s333 = scalar_lea.sflag [#allocation4], %s332
        %s334 = sand.u32 %s165, 1
        %s335 = scalar_lea.vmem [#allocation13], %s334
        %v337 = vld [vmem:[%s288] sm:$0xf]
        %v338 = vld [vmem:[%s288 + $0x4] sm:$0xf]
        %v339 = vld [vmem:[%s288 + $0x8] sm:$0x1]
        %v340 = vld [vmem:[%s288 + $0xc] sm:$0xf]
        %v341 = vld [vmem:[%s288 + $0x10] sm:$0xf]
        %v342 = vld [vmem:[%s288 + $0x14] sm:$0x1]
        %v343 = vld [vmem:[%s288 + $0x18] sm:$0xf]
        %v344 = vld [vmem:[%s288 + $0x1c] sm:$0xf]
        %v345 = vld [vmem:[%s288 + $0x20] sm:$0x1]
        %v346 = vld [vmem:[%s288 + $0x24] sm:$0xf]
        %v347 = vld [vmem:[%s288 + $0x28] sm:$0xf]
        %v348 = vld [vmem:[%s288 + $0x2c] sm:$0x1]
        %v349 = vld [vmem:[%s288 + $0x30] sm:$0xf]
        %v350 = vld [vmem:[%s288 + $0x34] sm:$0xf]
        %v351 = vld [vmem:[%s288 + $0x38] sm:$0x1]
        %v352 = vld [vmem:[%s288 + $0x3c] sm:$0xf]
        %v353 = vld [vmem:[%s288 + $0x40] sm:$0xf]
        %v354 = vld [vmem:[%s288 + $0x44] sm:$0x1]
        %v355 = vld [vmem:[%s288 + $0x48] sm:$0xf]
        %v356 = vld [vmem:[%s288 + $0x4c] sm:$0xf]
        %v357 = vld [vmem:[%s288 + $0x50] sm:$0x1]
        %v358 = vld [vmem:[%s288 + $0x54] sm:$0xf]
        %v359 = vld [vmem:[%s288 + $0x58] sm:$0xf]
        %v360 = vld [vmem:[%s288 + $0x5c] sm:$0x1]
        %v361 = vld [vmem:[%s288 + $0x60] sm:$0xf]
        %v362 = vld [vmem:[%s288 + $0x64] sm:$0xf]
        %v363 = vld [vmem:[%s288 + $0x68] sm:$0x1]
        %v364 = vld [vmem:[%s288 + $0x6c] sm:$0xf]
        %v365 = vld [vmem:[%s288 + $0x70] sm:$0xf]
        %v366 = vld [vmem:[%s288 + $0x74] sm:$0x1]
        %v367 = vld [vmem:[%s288 + $0x78] sm:$0xf]
        %v368 = vld [vmem:[%s288 + $0x7c] sm:$0xf]
        %v369 = vld [vmem:[%s288 + $0x80] sm:$0x1]
        %v370 = vld [vmem:[%s288 + $0x84] sm:$0xf]
        %v371 = vld [vmem:[%s288 + $0x88] sm:$0xf]
        %v372 = vld [vmem:[%s288 + $0x8c] sm:$0x1]
        %v373 = vld [vmem:[%s288 + $0x90] sm:$0xf]
        %v374 = vld [vmem:[%s288 + $0x94] sm:$0xf]
        %v375 = vld [vmem:[%s288 + $0x98] sm:$0x1]
        %v376 = vld [vmem:[%s288 + $0x9c] sm:$0xf]
        %v377 = vld [vmem:[%s288 + $0xa0] sm:$0xf]
        %v378 = vld [vmem:[%s288 + $0xa4] sm:$0x1]
        %v379 = vld [vmem:[%s288 + $0xa8] sm:$0xf]
        %v380 = vld [vmem:[%s288 + $0xac] sm:$0xf]
        %v381 = vld [vmem:[%s288 + $0xb0] sm:$0x1]
        %v382 = vld [vmem:[%s288 + $0xb4] sm:$0xf]
        %v383 = vld [vmem:[%s288 + $0xb8] sm:$0xf]
        %v384 = vld [vmem:[%s288 + $0xbc] sm:$0x1]
        %v385 = vld [vmem:[%s288 + $0xc0] sm:$0xf]
        %v386 = vld [vmem:[%s288 + $0xc4] sm:$0xf]
        %v387 = vld [vmem:[%s288 + $0xc8] sm:$0x1]
        %v388 = vld [vmem:[%s288 + $0xcc] sm:$0xf]
        %v389 = vld [vmem:[%s288 + $0xd0] sm:$0xf]
        %v390 = vld [vmem:[%s288 + $0xd4] sm:$0x1]
        %v391 = vld [vmem:[#allocation5] sm:$0x3]
        %vm392 = vsmask.f32 3328
        %vm393 = vsmask.f32 7440
        %vm394 = vmor %vm392, %vm393
        %v396 = vshrl.u32 %v337, 16
        %v398 = vrot.slane %v396, 4
        %v399 = vshll.u32 %v337, 16
        %v401 = vrot.slane %v399, 5
        %v402 = vor.u32 %v398, %v401
        %v403 = vrot.slane %v402, 4
        %v405 = vshll.u32 %v338, 16
        %v407 = vrot.slane %v405, 5
        %v408 = vsel %vm394, %v403, %v407
        %v409 = vshrl.u32 %v338, 16
        %v411 = vrot.slane %v409, 4
        %v412 = vor.u32 %v411, %v407
        %v413 = vrot.slane %v412, 4
        %v415 = vshll.u32 %v339, 16
        %v417 = vrot.slane %v415, 5
        %v418 = vsel %vm394, %v413, %v417
        %v420 = vshrl.u32 %v340, 16
        %v422 = vrot.slane %v420, 4
        %v423 = vshll.u32 %v340, 16
        %v425 = vrot.slane %v423, 5
        %v426 = vor.u32 %v422, %v425
        %v427 = vrot.slane %v426, 4
        %v429 = vshll.u32 %v341, 16
        %v431 = vrot.slane %v429, 5
        %v432 = vsel %vm394, %v427, %v431
        %v433 = vshrl.u32 %v341, 16
        %v435 = vrot.slane %v433, 4
        %v436 = vor.u32 %v435, %v431
        %v437 = vrot.slane %v436, 4
        %v439 = vshll.u32 %v342, 16
        %v441 = vrot.slane %v439, 5
        %v442 = vsel %vm394, %v437, %v441
        %v444 = vshrl.u32 %v343, 16
        %v446 = vrot.slane %v444, 4
        %v447 = vshll.u32 %v343, 16
        %v449 = vrot.slane %v447, 5
        %v450 = vor.u32 %v446, %v449
        %v451 = vrot.slane %v450, 4
        %v453 = vshll.u32 %v344, 16
        %v455 = vrot.slane %v453, 5
        %v456 = vsel %vm394, %v451, %v455
        %v457 = vshrl.u32 %v344, 16
        %v459 = vrot.slane %v457, 4
        %v460 = vor.u32 %v459, %v455
        %v461 = vrot.slane %v460, 4
        %v463 = vshll.u32 %v345, 16
        %v465 = vrot.slane %v463, 5
        %v466 = vsel %vm394, %v461, %v465
        %v468 = vshrl.u32 %v346, 16
        %v470 = vrot.slane %v468, 4
        %v471 = vshll.u32 %v346, 16
        %v473 = vrot.slane %v471, 5
        %v474 = vor.u32 %v470, %v473
        %v475 = vrot.slane %v474, 4
        %v477 = vshll.u32 %v347, 16
        %v479 = vrot.slane %v477, 5
        %v480 = vsel %vm394, %v475, %v479
        %v481 = vshrl.u32 %v347, 16
        %v483 = vrot.slane %v481, 4
        %v484 = vor.u32 %v483, %v479
        %v485 = vrot.slane %v484, 4
        %v487 = vshll.u32 %v348, 16
        %v489 = vrot.slane %v487, 5
        %v490 = vsel %vm394, %v485, %v489
        %v492 = vshrl.u32 %v349, 16
        %v494 = vrot.slane %v492, 4
        %v495 = vshll.u32 %v349, 16
        %v497 = vrot.slane %v495, 5
        %v498 = vor.u32 %v494, %v497
        %v499 = vrot.slane %v498, 4
        %v501 = vshll.u32 %v350, 16
        %v503 = vrot.slane %v501, 5
        %v504 = vsel %vm394, %v499, %v503
        %v505 = vshrl.u32 %v350, 16
        %v507 = vrot.slane %v505, 4
        %v508 = vor.u32 %v507, %v503
        %v509 = vrot.slane %v508, 4
        %v511 = vshll.u32 %v351, 16
        %v513 = vrot.slane %v511, 5
        %v514 = vsel %vm394, %v509, %v513
        %v516 = vshrl.u32 %v352, 16
        %v518 = vrot.slane %v516, 4
        %v519 = vshll.u32 %v352, 16
        %v521 = vrot.slane %v519, 5
        %v522 = vor.u32 %v518, %v521
        %v523 = vrot.slane %v522, 4
        %v525 = vshll.u32 %v353, 16
        %v527 = vrot.slane %v525, 5
        %v528 = vsel %vm394, %v523, %v527
        %v529 = vshrl.u32 %v353, 16
        %v531 = vrot.slane %v529, 4
        %v532 = vor.u32 %v531, %v527
        %v533 = vrot.slane %v532, 4
        %v535 = vshll.u32 %v354, 16
        %v537 = vrot.slane %v535, 5
        %v538 = vsel %vm394, %v533, %v537
        %v540 = vshrl.u32 %v355, 16
        %v542 = vrot.slane %v540, 4
        %v543 = vshll.u32 %v355, 16
        %v545 = vrot.slane %v543, 5
        %v546 = vor.u32 %v542, %v545
        %v547 = vrot.slane %v546, 4
        %v549 = vshll.u32 %v356, 16
        %v551 = vrot.slane %v549, 5
        %v552 = vsel %vm394, %v547, %v551
        %v553 = vshrl.u32 %v356, 16
        %v555 = vrot.slane %v553, 4
        %v556 = vor.u32 %v555, %v551
        %v557 = vrot.slane %v556, 4
        %v559 = vshll.u32 %v357, 16
        %v561 = vrot.slane %v559, 5
        %v562 = vsel %vm394, %v557, %v561
        %v564 = vshrl.u32 %v358, 16
        %v566 = vrot.slane %v564, 4
        %v567 = vshll.u32 %v358, 16
        %v569 = vrot.slane %v567, 5
        %v570 = vor.u32 %v566, %v569
        %v571 = vrot.slane %v570, 4
        %v573 = vshll.u32 %v359, 16
        %v575 = vrot.slane %v573, 5
        %v576 = vsel %vm394, %v571, %v575
        %v577 = vshrl.u32 %v359, 16
        %v579 = vrot.slane %v577, 4
        %v580 = vor.u32 %v579, %v575
        %v581 = vrot.slane %v580, 4
        %v583 = vshll.u32 %v360, 16
        %v585 = vrot.slane %v583, 5
        %v586 = vsel %vm394, %v581, %v585
        %v588 = vshrl.u32 %v361, 16
        %v590 = vrot.slane %v588, 4
        %v591 = vshll.u32 %v361, 16
        %v593 = vrot.slane %v591, 5
        %v594 = vor.u32 %v590, %v593
        %v595 = vrot.slane %v594, 4
        %v597 = vshll.u32 %v362, 16
        %v599 = vrot.slane %v597, 5
        %v600 = vsel %vm394, %v595, %v599
        %v601 = vshrl.u32 %v362, 16
        %v603 = vrot.slane %v601, 4
        %v604 = vor.u32 %v603, %v599
        %v605 = vrot.slane %v604, 4
        %v607 = vshll.u32 %v363, 16
        %v609 = vrot.slane %v607, 5
        %v610 = vsel %vm394, %v605, %v609
        %v612 = vshrl.u32 %v364, 16
        %v614 = vrot.slane %v612, 4
        %v615 = vshll.u32 %v364, 16
        %v617 = vrot.slane %v615, 5
        %v618 = vor.u32 %v614, %v617
        %v619 = vrot.slane %v618, 4
        %v621 = vshll.u32 %v365, 16
        %v623 = vrot.slane %v621, 5
        %v624 = vsel %vm394, %v619, %v623
        %v625 = vshrl.u32 %v365, 16
        %v627 = vrot.slane %v625, 4
        %v628 = vor.u32 %v627, %v623
        %v629 = vrot.slane %v628, 4
        %v631 = vshll.u32 %v366, 16
        %v633 = vrot.slane %v631, 5
        %v634 = vsel %vm394, %v629, %v633
        %v636 = vshrl.u32 %v367, 16
        %v638 = vrot.slane %v636, 4
        %v639 = vshll.u32 %v367, 16
        %v641 = vrot.slane %v639, 5
        %v642 = vor.u32 %v638, %v641
        %v643 = vrot.slane %v642, 4
        %v645 = vshll.u32 %v368, 16
        %v647 = vrot.slane %v645, 5
        %v648 = vsel %vm394, %v643, %v647
        %v649 = vshrl.u32 %v368, 16
        %v651 = vrot.slane %v649, 4
        %v652 = vor.u32 %v651, %v647
        %v653 = vrot.slane %v652, 4
        %v655 = vshll.u32 %v369, 16
        %v657 = vrot.slane %v655, 5
        %v658 = vsel %vm394, %v653, %v657
        %v660 = vshrl.u32 %v370, 16
        %v662 = vrot.slane %v660, 4
        %v663 = vshll.u32 %v370, 16
        %v665 = vrot.slane %v663, 5
        %v666 = vor.u32 %v662, %v665
        %v667 = vrot.slane %v666, 4
        %v669 = vshll.u32 %v371, 16
        %v671 = vrot.slane %v669, 5
        %v672 = vsel %vm394, %v667, %v671
        %v673 = vshrl.u32 %v371, 16
        %v675 = vrot.slane %v673, 4
        %v676 = vor.u32 %v675, %v671
        %v677 = vrot.slane %v676, 4
        %v679 = vshll.u32 %v372, 16
        %v681 = vrot.slane %v679, 5
        %v682 = vsel %vm394, %v677, %v681
        %v684 = vshrl.u32 %v373, 16
        %v686 = vrot.slane %v684, 4
        %v687 = vshll.u32 %v373, 16
        %v689 = vrot.slane %v687, 5
        %v690 = vor.u32 %v686, %v689
        %v691 = vrot.slane %v690, 4
        %v693 = vshll.u32 %v374, 16
        %v695 = vrot.slane %v693, 5
        %v696 = vsel %vm394, %v691, %v695
        %v697 = vshrl.u32 %v374, 16
        %v699 = vrot.slane %v697, 4
        %v700 = vor.u32 %v699, %v695
        %v701 = vrot.slane %v700, 4
        %v703 = vshll.u32 %v375, 16
        %v705 = vrot.slane %v703, 5
        %v706 = vsel %vm394, %v701, %v705
        %v708 = vshrl.u32 %v376, 16
        %v710 = vrot.slane %v708, 4
        %v711 = vshll.u32 %v376, 16
        %v713 = vrot.slane %v711, 5
        %v714 = vor.u32 %v710, %v713
        %v715 = vrot.slane %v714, 4
        %v717 = vshll.u32 %v377, 16
        %v719 = vrot.slane %v717, 5
        %v720 = vsel %vm394, %v715, %v719
        %v721 = vshrl.u32 %v377, 16
        %v723 = vrot.slane %v721, 4
        %v724 = vor.u32 %v723, %v719
        %v725 = vrot.slane %v724, 4
        %v727 = vshll.u32 %v378, 16
        %v729 = vrot.slane %v727, 5
        %v730 = vsel %vm394, %v725, %v729
        %v732 = vshrl.u32 %v379, 16
        %v734 = vrot.slane %v732, 4
        %v735 = vshll.u32 %v379, 16
        %v737 = vrot.slane %v735, 5
        %v738 = vor.u32 %v734, %v737
        %v739 = vrot.slane %v738, 4
        %v741 = vshll.u32 %v380, 16
        %v743 = vrot.slane %v741, 5
        %v744 = vsel %vm394, %v739, %v743
        %v745 = vshrl.u32 %v380, 16
        %v747 = vrot.slane %v745, 4
        %v748 = vor.u32 %v747, %v743
        %v749 = vrot.slane %v748, 4
        %v751 = vshll.u32 %v381, 16
        %v753 = vrot.slane %v751, 5
        %v754 = vsel %vm394, %v749, %v753
        %v756 = vshrl.u32 %v382, 16
        %v758 = vrot.slane %v756, 4
        %v759 = vshll.u32 %v382, 16
        %v761 = vrot.slane %v759, 5
        %v762 = vor.u32 %v758, %v761
        %v763 = vrot.slane %v762, 4
        %v765 = vshll.u32 %v383, 16
        %v767 = vrot.slane %v765, 5
        %v768 = vsel %vm394, %v763, %v767
        %v769 = vshrl.u32 %v383, 16
        %v771 = vrot.slane %v769, 4
        %v772 = vor.u32 %v771, %v767
        %v773 = vrot.slane %v772, 4
        %v775 = vshll.u32 %v384, 16
        %v777 = vrot.slane %v775, 5
        %v778 = vsel %vm394, %v773, %v777
        %s779 = scalar_lea.vmem [#allocation5], 2
        %v780 = vld [vmem:[%s779] sm:$0x3]
        %v781 = vunpack.c.l.b16 %v408
        %v782 = vunpack.c.l.b16 %v418
        %v783 = vunpack.c.l.b16 %v432
        %v784 = vunpack.c.l.b16 %v442
        %v785 = vunpack.c.l.b16 %v456
        %v786 = vunpack.c.l.b16 %v466
        %v787 = vunpack.c.l.b16 %v480
        %v788 = vunpack.c.l.b16 %v490
        %v789 = vunpack.c.l.b16 %v504
        %v790 = vunpack.c.l.b16 %v514
        %v791 = vunpack.c.l.b16 %v528
        %v792 = vunpack.c.l.b16 %v538
        %v793 = vunpack.c.l.b16 %v552
        %v794 = vunpack.c.l.b16 %v562
        %v795 = vunpack.c.l.b16 %v576
        %v796 = vunpack.c.l.b16 %v586
        %v797 = vunpack.c.l.b16 %v600
        %v798 = vunpack.c.l.b16 %v610
        %v799 = vunpack.c.l.b16 %v624
        %v800 = vunpack.c.l.b16 %v634
        %v801 = vunpack.c.l.b16 %v648
        %v802 = vunpack.c.l.b16 %v658
        %v803 = vunpack.c.l.b16 %v672
        %v804 = vunpack.c.l.b16 %v682
        %v805 = vunpack.c.l.b16 %v696
        %v806 = vunpack.c.l.b16 %v706
        %v807 = vunpack.c.l.b16 %v720
        %v808 = vunpack.c.l.b16 %v730
        %v809 = vunpack.c.l.b16 %v744
        %v810 = vunpack.c.l.b16 %v754
        %v811 = vunpack.c.l.b16 %v768
        %v812 = vunpack.c.l.b16 %v778
        %v813 = vpack.c.b16 %v782, %v781
        %v814 = vpack.c.b16 %v784, %v783
        %v815 = vpack.c.b16 %v786, %v785
        %v816 = vpack.c.b16 %v788, %v787
        %v817 = vpack.c.b16 %v790, %v789
        %v818 = vpack.c.b16 %v792, %v791
        %v819 = vpack.c.b16 %v794, %v793
        %v820 = vpack.c.b16 %v796, %v795
        %v821 = vpack.c.b16 %v798, %v797
        %v822 = vpack.c.b16 %v800, %v799
        %v823 = vpack.c.b16 %v802, %v801
        %v824 = vpack.c.b16 %v804, %v803
        %v825 = vpack.c.b16 %v806, %v805
        %v826 = vpack.c.b16 %v808, %v807
        %v827 = vpack.c.b16 %v810, %v809
        %v828 = vpack.c.b16 %v812, %v811
        %vm829 = vcmask 31744
        %v831 = vsel %vm829, %v813, 0
        %v834 = vsel %vm829, %v814, 0
        %v837 = vsel %vm829, %v815, 0
        %v840 = vsel %vm829, %v816, 0
        %v843 = vsel %vm829, %v817, 0
        %v846 = vsel %vm829, %v818, 0
        %v849 = vsel %vm829, %v819, 0
        %v852 = vsel %vm829, %v820, 0
        %v855 = vsel %vm829, %v821, 0
        %v858 = vsel %vm829, %v822, 0
        %v861 = vsel %vm829, %v823, 0
        %v864 = vsel %vm829, %v824, 0
        %v867 = vsel %vm829, %v825, 0
        %v870 = vsel %vm829, %v826, 0
        %v873 = vsel %vm829, %v827, 0
        %v876 = vsel %vm829, %v828, 0
        %vm878 = vcmask 1041408
        %v880 = vsel %vm878, %v780, 0
        %882 = vmatprep.subr.bf16.mxu0 0
        %883 = vmatpush1.bf16.msra.mxu0 %v880
        %884 = vmatprep.subr.bf16.mxu0 0
        %885 = vmatpush1.bf16.msra.mxu0 0
        %886 = vmatprep.subr.bf16.mxu0 0
        %887 = vmatpush1.bf16.msra.mxu0 0
        %888 = vmatprep.subr.bf16.mxu0 0
        %889 = vmatpush1.bf16.msra.mxu0 0
        %890 = vmatprep.subr.bf16.mxu0 0
        %891 = vmatpush1.bf16.msra.mxu0 0
        %892 = vmatprep.subr.bf16.mxu0 0
        %893 = vmatpush1.bf16.msra.mxu0 0
        %894 = vmatprep.subr.bf16.mxu0 0
        %895 = vmatpush1.bf16.msra.mxu0 0
        %896 = vmatprep.subr.bf16.mxu0 0
        %897 = vmatpush1.bf16.msra.mxu0 0
        %898 = vmatprep.subr.bf16.mxu0 0
        %899 = vmatpush1.bf16.msra.mxu0 0
        %900 = vmatprep.subr.bf16.mxu0 0
        %901 = vmatpush1.bf16.msra.mxu0 0
        %902 = vmatprep.subr.bf16.mxu0 0
        %903 = vmatpush1.bf16.msra.mxu0 0
        %904 = vmatprep.subr.bf16.mxu0 0
        %905 = vmatpush1.bf16.msra.mxu0 0
        %906 = vmatprep.subr.bf16.mxu0 0
        %907 = vmatpush1.bf16.msra.mxu0 0
        %908 = vmatprep.subr.bf16.mxu0 0
        %909 = vmatpush1.bf16.msra.mxu0 0
        %910 = vmatprep.subr.bf16.mxu0 0
        %911 = vmatpush1.bf16.msra.mxu0 0
        %912 = vmatprep.subr.bf16.mxu0 0
        %913 = vmatpush1.bf16.msra.mxu0 0
        %914 = vmatprep.mubr.bf16.mxu0 0
        %915 = vmatmul.mubr.bf16.gmra.mrb[0].mxu0 %v831
        %v916 = vpop.f32.mrb[0].mxu0
        %v917 = vadd.f32 0.0, %v916
        %v918 = vpop.f32.mrb[0].mxu0
        %v919 = vpop.f32.mrb[0].mxu0
        %v920 = vadd.f32 0.0, %v919
        %v921 = vpop.f32.mrb[0].mxu0
        %922 = vmatprep.mubr.bf16.mxu0 0
        %923 = vmatmul.mubr.bf16.gmra.mrb[0].mxu0 %v834
        %v924 = vpop.f32.mrb[0].mxu0
        %v925 = vadd.f32 0.0, %v924
        %v926 = vpop.f32.mrb[0].mxu0
        %v927 = vpop.f32.mrb[0].mxu0
        %v928 = vadd.f32 0.0, %v927
        %v929 = vpop.f32.mrb[0].mxu0
        %930 = vmatprep.mubr.bf16.mxu0 0
        %931 = vmatmul.mubr.bf16.gmra.mrb[0].mxu0 %v837
        %v932 = vpop.f32.mrb[0].mxu0
        %v933 = vadd.f32 0.0, %v932
        %v934 = vpop.f32.mrb[0].mxu0
        %v935 = vpop.f32.mrb[0].mxu0
        %v936 = vadd.f32 0.0, %v935
        %v937 = vpop.f32.mrb[0].mxu0
        %938 = vmatprep.mubr.bf16.mxu0 0
        %939 = vmatmul.mubr.bf16.gmra.mrb[0].mxu0 %v840
        %v940 = vpop.f32.mrb[0].mxu0
        %v941 = vadd.f32 0.0, %v940
        %v942 = vpop.f32.mrb[0].mxu0
        %v943 = vpop.f32.mrb[0].mxu0
        %v944 = vadd.f32 0.0, %v943
        %v945 = vpop.f32.mrb[0].mxu0
        %946 = vmatprep.mubr.bf16.mxu0 0
        %947 = vmatmul.mubr.bf16.gmra.mrb[0].mxu0 %v843
        %v948 = vpop.f32.mrb[0].mxu0
        %v949 = vadd.f32 0.0, %v948
        %v950 = vpop.f32.mrb[0].mxu0
        %v951 = vpop.f32.mrb[0].mxu0
        %v952 = vadd.f32 0.0, %v951
        %v953 = vpop.f32.mrb[0].mxu0
        %954 = vmatprep.mubr.bf16.mxu0 0
        %955 = vmatmul.mubr.bf16.gmra.mrb[0].mxu0 %v846
        %v956 = vpop.f32.mrb[0].mxu0
        %v957 = vadd.f32 0.0, %v956
        %v958 = vpop.f32.mrb[0].mxu0
        %v959 = vpop.f32.mrb[0].mxu0
        %v960 = vadd.f32 0.0, %v959
        %v961 = vpop.f32.mrb[0].mxu0
        %962 = vmatprep.mubr.bf16.mxu0 0
        %963 = vmatmul.mubr.bf16.gmra.mrb[0].mxu0 %v849
        %v964 = vpop.f32.mrb[0].mxu0
        %v965 = vadd.f32 0.0, %v964
        %v966 = vpop.f32.mrb[0].mxu0
        %v967 = vpop.f32.mrb[0].mxu0
        %v968 = vadd.f32 0.0, %v967
        %v969 = vpop.f32.mrb[0].mxu0
        %970 = vmatprep.mubr.bf16.mxu0 0
        %971 = vmatmul.mubr.bf16.gmra.mrb[0].mxu0 %v852
        %v972 = vpop.f32.mrb[0].mxu0
        %v973 = vadd.f32 0.0, %v972
        %v974 = vpop.f32.mrb[0].mxu0
        %v975 = vpop.f32.mrb[0].mxu0
        %v976 = vadd.f32 0.0, %v975
        %v977 = vpop.f32.mrb[0].mxu0
        %978 = vmatprep.mubr.bf16.mxu0 0
        %979 = vmatmul.mubr.bf16.gmra.mrb[0].mxu0 %v855
        %v980 = vpop.f32.mrb[0].mxu0
        %v981 = vadd.f32 0.0, %v980
        %v982 = vpop.f32.mrb[0].mxu0
        %v983 = vpop.f32.mrb[0].mxu0
        %v984 = vadd.f32 0.0, %v983
        %v985 = vpop.f32.mrb[0].mxu0
        %986 = vmatprep.mubr.bf16.mxu0 0
        %987 = vmatmul.mubr.bf16.gmra.mrb[0].mxu0 %v858
        %v988 = vpop.f32.mrb[0].mxu0
        %v989 = vadd.f32 0.0, %v988
        %v990 = vpop.f32.mrb[0].mxu0
        %v991 = vpop.f32.mrb[0].mxu0
        %v992 = vadd.f32 0.0, %v991
        %v993 = vpop.f32.mrb[0].mxu0
        %994 = vmatprep.mubr.bf16.mxu0 0
        %995 = vmatmul.mubr.bf16.gmra.mrb[0].mxu0 %v861
        %v996 = vpop.f32.mrb[0].mxu0
        %v997 = vadd.f32 0.0, %v996
        %v998 = vpop.f32.mrb[0].mxu0
        %v999 = vpop.f32.mrb[0].mxu0
        %v1000 = vadd.f32 0.0, %v999
        %v1001 = vpop.f32.mrb[0].mxu0
        %1002 = vmatprep.mubr.bf16.mxu0 0
        %1003 = vmatmul.mubr.bf16.gmra.mrb[0].mxu0 %v864
        %v1004 = vpop.f32.mrb[0].mxu0
        %v1005 = vadd.f32 0.0, %v1004
        %v1006 = vpop.f32.mrb[0].mxu0
        %v1007 = vpop.f32.mrb[0].mxu0
        %v1008 = vadd.f32 0.0, %v1007
        %v1009 = vpop.f32.mrb[0].mxu0
        %1010 = vmatprep.mubr.bf16.mxu0 0
        %1011 = vmatmul.mubr.bf16.gmra.mrb[0].mxu0 %v867
        %v1012 = vpop.f32.mrb[0].mxu0
        %v1013 = vadd.f32 0.0, %v1012
        %v1014 = vpop.f32.mrb[0].mxu0
        %v1015 = vpop.f32.mrb[0].mxu0
        %v1016 = vadd.f32 0.0, %v1015
        %v1017 = vpop.f32.mrb[0].mxu0
        %1018 = vmatprep.mubr.bf16.mxu0 0
        %1019 = vmatmul.mubr.bf16.gmra.mrb[0].mxu0 %v870
        %v1020 = vpop.f32.mrb[0].mxu0
        %v1021 = vadd.f32 0.0, %v1020
        %v1022 = vpop.f32.mrb[0].mxu0
        %v1023 = vpop.f32.mrb[0].mxu0
        %v1024 = vadd.f32 0.0, %v1023
        %v1025 = vpop.f32.mrb[0].mxu0
        %1026 = vmatprep.mubr.bf16.mxu0 0
        %1027 = vmatmul.mubr.bf16.gmra.mrb[0].mxu0 %v873
        %v1028 = vpop.f32.mrb[0].mxu0
        %v1029 = vadd.f32 0.0, %v1028
        %v1030 = vpop.f32.mrb[0].mxu0
        %v1031 = vpop.f32.mrb[0].mxu0
        %v1032 = vadd.f32 0.0, %v1031
        %v1033 = vpop.f32.mrb[0].mxu0
        %1034 = vmatprep.mubr.bf16.mxu0 0
        %1035 = vmatmul.mubr.bf16.gmra.mrb[0].mxu0 %v876
        %v1036 = vpop.f32.mrb[0].mxu0
        %v1037 = vadd.f32 0.0, %v1036
        %v1038 = vpop.f32.mrb[0].mxu0
        %v1039 = vpop.f32.mrb[0].mxu0
        %v1040 = vadd.f32 0.0, %v1039
        %v1041 = vpop.f32.mrb[0].mxu0
        %1042 = vdwg.mxu0
        %v1075 = vunpack.c.l.b16 %v337
        %v1076 = vunpack.c.l.b16 %v338
        %v1077 = vunpack.c.l.b16 %v340
        %v1078 = vunpack.c.l.b16 %v341
        %v1079 = vunpack.c.l.b16 %v343
        %v1080 = vunpack.c.l.b16 %v344
        %v1081 = vunpack.c.l.b16 %v346
        %v1082 = vunpack.c.l.b16 %v347
        %v1083 = vunpack.c.l.b16 %v349
        %v1084 = vunpack.c.l.b16 %v350
        %v1085 = vunpack.c.l.b16 %v352
        %v1086 = vunpack.c.l.b16 %v353
        %v1087 = vunpack.c.l.b16 %v355
        %v1088 = vunpack.c.l.b16 %v356
        %v1089 = vunpack.c.l.b16 %v358
        %v1090 = vunpack.c.l.b16 %v359
        %v1091 = vunpack.c.l.b16 %v361
        %v1092 = vunpack.c.l.b16 %v362
        %v1093 = vunpack.c.l.b16 %v364
        %v1094 = vunpack.c.l.b16 %v365
        %v1095 = vunpack.c.l.b16 %v367
        %v1096 = vunpack.c.l.b16 %v368
        %v1097 = vunpack.c.l.b16 %v370
        %v1098 = vunpack.c.l.b16 %v371
        %v1099 = vunpack.c.l.b16 %v373
        %v1100 = vunpack.c.l.b16 %v374
        %v1101 = vunpack.c.l.b16 %v376
        %v1102 = vunpack.c.l.b16 %v377
        %v1103 = vunpack.c.l.b16 %v379
        %v1104 = vunpack.c.l.b16 %v380
        %v1105 = vunpack.c.l.b16 %v382
        %v1106 = vunpack.c.l.b16 %v383
        %v1107 = vpack.c.b16 %v1076, %v1075
        %v1108 = vpack.c.b16 %v1078, %v1077
        %v1109 = vpack.c.b16 %v1080, %v1079
        %v1110 = vpack.c.b16 %v1082, %v1081
        %v1111 = vpack.c.b16 %v1084, %v1083
        %v1112 = vpack.c.b16 %v1086, %v1085
        %v1113 = vpack.c.b16 %v1088, %v1087
        %v1114 = vpack.c.b16 %v1090, %v1089
        %v1115 = vpack.c.b16 %v1092, %v1091
        %v1116 = vpack.c.b16 %v1094, %v1093
        %v1117 = vpack.c.b16 %v1096, %v1095
        %v1118 = vpack.c.b16 %v1098, %v1097
        %v1119 = vpack.c.b16 %v1100, %v1099
        %v1120 = vpack.c.b16 %v1102, %v1101
        %v1121 = vpack.c.b16 %v1104, %v1103
        %v1122 = vpack.c.b16 %v1106, %v1105
        %v1124 = vsel %vm829, %v1107, 0
        %v1127 = vsel %vm829, %v1108, 0
        %v1130 = vsel %vm829, %v1109, 0
        %v1133 = vsel %vm829, %v1110, 0
        %v1136 = vsel %vm829, %v1111, 0
        %v1139 = vsel %vm829, %v1112, 0
        %v1142 = vsel %vm829, %v1113, 0
        %v1145 = vsel %vm829, %v1114, 0
        %v1148 = vsel %vm829, %v1115, 0
        %v1151 = vsel %vm829, %v1116, 0
        %v1154 = vsel %vm829, %v1117, 0
        %v1157 = vsel %vm829, %v1118, 0
        %v1160 = vsel %vm829, %v1119, 0
        %v1163 = vsel %vm829, %v1120, 0
        %v1166 = vsel %vm829, %v1121, 0
        %v1169 = vsel %vm829, %v1122, 0
        %v1172 = vsel %vm878, %v391, 0
        %1174 = vmatprep.subr.bf16.mxu0 0
        %1175 = vmatpush1.bf16.msra.mxu0 %v1172
        %1176 = vmatprep.subr.bf16.mxu0 0
        %1177 = vmatpush1.bf16.msra.mxu0 0
        %1178 = vmatprep.subr.bf16.mxu0 0
        %1179 = vmatpush1.bf16.msra.mxu0 0
        %1180 = vmatprep.subr.bf16.mxu0 0
        %1181 = vmatpush1.bf16.msra.mxu0 0
        %1182 = vmatprep.subr.bf16.mxu0 0
        %1183 = vmatpush1.bf16.msra.mxu0 0
        %1184 = vmatprep.subr.bf16.mxu0 0
        %1185 = vmatpush1.bf16.msra.mxu0 0
        %1186 = vmatprep.subr.bf16.mxu0 0
        %1187 = vmatpush1.bf16.msra.mxu0 0
        %1188 = vmatprep.subr.bf16.mxu0 0
        %1189 = vmatpush1.bf16.msra.mxu0 0
        %1190 = vmatprep.subr.bf16.mxu0 0
        %1191 = vmatpush1.bf16.msra.mxu0 0
        %1192 = vmatprep.subr.bf16.mxu0 0
        %1193 = vmatpush1.bf16.msra.mxu0 0
        %1194 = vmatprep.subr.bf16.mxu0 0
        %1195 = vmatpush1.bf16.msra.mxu0 0
        %1196 = vmatprep.subr.bf16.mxu0 0
        %1197 = vmatpush1.bf16.msra.mxu0 0
        %1198 = vmatprep.subr.bf16.mxu0 0
        %1199 = vmatpush1.bf16.msra.mxu0 0
        %1200 = vmatprep.subr.bf16.mxu0 0
        %1201 = vmatpush1.bf16.msra.mxu0 0
        %1202 = vmatprep.subr.bf16.mxu0 0
        %1203 = vmatpush1.bf16.msra.mxu0 0
        %1204 = vmatprep.subr.bf16.mxu0 0
        %1205 = vmatpush1.bf16.msra.mxu0 0
        %1206 = vmatprep.mubr.bf16.mxu0 0
        %1207 = vmatmul.mubr.bf16.gmra.mrb[0].mxu0 %v1124
        %v1208 = vpop.f32.mrb[0].mxu0
        %v1209 = vadd.f32 %v917, %v1208
        %v1210 = vpop.f32.mrb[0].mxu0
        %v1211 = vpop.f32.mrb[0].mxu0
        %v1212 = vadd.f32 %v920, %v1211
        %v1213 = vpop.f32.mrb[0].mxu0
        %1214 = vmatprep.mubr.bf16.mxu0 0
        %1215 = vmatmul.mubr.bf16.gmra.mrb[0].mxu0 %v1127
        %v1216 = vpop.f32.mrb[0].mxu0
        %v1217 = vadd.f32 %v925, %v1216
        %v1218 = vpop.f32.mrb[0].mxu0
        %v1219 = vpop.f32.mrb[0].mxu0
        %v1220 = vadd.f32 %v928, %v1219
        %v1221 = vpop.f32.mrb[0].mxu0
        %1222 = vmatprep.mubr.bf16.mxu0 0
        %1223 = vmatmul.mubr.bf16.gmra.mrb[0].mxu0 %v1130
        %v1224 = vpop.f32.mrb[0].mxu0
        %v1225 = vadd.f32 %v933, %v1224
        %v1226 = vpop.f32.mrb[0].mxu0
        %v1227 = vpop.f32.mrb[0].mxu0
        %v1228 = vadd.f32 %v936, %v1227
        %v1229 = vpop.f32.mrb[0].mxu0
        %1230 = vmatprep.mubr.bf16.mxu0 0
        %1231 = vmatmul.mubr.bf16.gmra.mrb[0].mxu0 %v1133
        %v1232 = vpop.f32.mrb[0].mxu0
        %v1233 = vadd.f32 %v941, %v1232
        %v1234 = vpop.f32.mrb[0].mxu0
        %v1235 = vpop.f32.mrb[0].mxu0
        %v1236 = vadd.f32 %v944, %v1235
        %v1237 = vpop.f32.mrb[0].mxu0
        %1238 = vmatprep.mubr.bf16.mxu0 0
        %1239 = vmatmul.mubr.bf16.gmra.mrb[0].mxu0 %v1136
        %v1240 = vpop.f32.mrb[0].mxu0
        %v1241 = vadd.f32 %v949, %v1240
        %v1242 = vpop.f32.mrb[0].mxu0
        %v1243 = vpop.f32.mrb[0].mxu0
        %v1244 = vadd.f32 %v952, %v1243
        %v1245 = vpop.f32.mrb[0].mxu0
        %1246 = vmatprep.mubr.bf16.mxu0 0
        %1247 = vmatmul.mubr.bf16.gmra.mrb[0].mxu0 %v1139
        %v1248 = vpop.f32.mrb[0].mxu0
        %v1249 = vadd.f32 %v957, %v1248
        %v1250 = vpop.f32.mrb[0].mxu0
        %v1251 = vpop.f32.mrb[0].mxu0
        %v1252 = vadd.f32 %v960, %v1251
        %v1253 = vpop.f32.mrb[0].mxu0
        %1254 = vmatprep.mubr.bf16.mxu0 0
        %1255 = vmatmul.mubr.bf16.gmra.mrb[0].mxu0 %v1142
        %v1256 = vpop.f32.mrb[0].mxu0
        %v1257 = vadd.f32 %v965, %v1256
        %v1258 = vpop.f32.mrb[0].mxu0
        %v1259 = vpop.f32.mrb[0].mxu0
        %v1260 = vadd.f32 %v968, %v1259
        %v1261 = vpop.f32.mrb[0].mxu0
        %1262 = vmatprep.mubr.bf16.mxu0 0
        %1263 = vmatmul.mubr.bf16.gmra.mrb[0].mxu0 %v1145
        %v1264 = vpop.f32.mrb[0].mxu0
        %v1265 = vadd.f32 %v973, %v1264
        %v1266 = vpop.f32.mrb[0].mxu0
        %v1267 = vpop.f32.mrb[0].mxu0
        %v1268 = vadd.f32 %v976, %v1267
        %v1269 = vpop.f32.mrb[0].mxu0
        %1270 = vmatprep.mubr.bf16.mxu0 0
        %1271 = vmatmul.mubr.bf16.gmra.mrb[0].mxu0 %v1148
        %v1272 = vpop.f32.mrb[0].mxu0
        %v1273 = vadd.f32 %v981, %v1272
        %v1274 = vpop.f32.mrb[0].mxu0
        %v1275 = vpop.f32.mrb[0].mxu0
        %v1276 = vadd.f32 %v984, %v1275
        %v1277 = vpop.f32.mrb[0].mxu0
        %1278 = vmatprep.mubr.bf16.mxu0 0
        %1279 = vmatmul.mubr.bf16.gmra.mrb[0].mxu0 %v1151
        %v1280 = vpop.f32.mrb[0].mxu0
        %v1281 = vadd.f32 %v989, %v1280
        %v1282 = vpop.f32.mrb[0].mxu0
        %v1283 = vpop.f32.mrb[0].mxu0
        %v1284 = vadd.f32 %v992, %v1283
        %v1285 = vpop.f32.mrb[0].mxu0
        %1286 = vmatprep.mubr.bf16.mxu0 0
        %1287 = vmatmul.mubr.bf16.gmra.mrb[0].mxu0 %v1154
        %v1288 = vpop.f32.mrb[0].mxu0
        %v1289 = vadd.f32 %v997, %v1288
        %v1290 = vpop.f32.mrb[0].mxu0
        %v1291 = vpop.f32.mrb[0].mxu0
        %v1292 = vadd.f32 %v1000, %v1291
        %v1293 = vpop.f32.mrb[0].mxu0
        %1294 = vmatprep.mubr.bf16.mxu0 0
        %1295 = vmatmul.mubr.bf16.gmra.mrb[0].mxu0 %v1157
        %v1296 = vpop.f32.mrb[0].mxu0
        %v1297 = vadd.f32 %v1005, %v1296
        %v1298 = vpop.f32.mrb[0].mxu0
        %v1299 = vpop.f32.mrb[0].mxu0
        %v1300 = vadd.f32 %v1008, %v1299
        %v1301 = vpop.f32.mrb[0].mxu0
        %1302 = vmatprep.mubr.bf16.mxu0 0
        %1303 = vmatmul.mubr.bf16.gmra.mrb[0].mxu0 %v1160
        %v1304 = vpop.f32.mrb[0].mxu0
        %v1305 = vadd.f32 %v1013, %v1304
        %v1306 = vpop.f32.mrb[0].mxu0
        %v1307 = vpop.f32.mrb[0].mxu0
        %v1308 = vadd.f32 %v1016, %v1307
        %v1309 = vpop.f32.mrb[0].mxu0
        %1310 = vmatprep.mubr.bf16.mxu0 0
        %1311 = vmatmul.mubr.bf16.gmra.mrb[0].mxu0 %v1163
        %v1312 = vpop.f32.mrb[0].mxu0
        %v1313 = vadd.f32 %v1021, %v1312
        %v1314 = vpop.f32.mrb[0].mxu0
        %v1315 = vpop.f32.mrb[0].mxu0
        %v1316 = vadd.f32 %v1024, %v1315
        %v1317 = vpop.f32.mrb[0].mxu0
        %1318 = vmatprep.mubr.bf16.mxu0 0
        %1319 = vmatmul.mubr.bf16.gmra.mrb[0].mxu0 %v1166
        %v1320 = vpop.f32.mrb[0].mxu0
        %v1321 = vadd.f32 %v1029, %v1320
        %v1322 = vpop.f32.mrb[0].mxu0
        %v1323 = vpop.f32.mrb[0].mxu0
        %v1324 = vadd.f32 %v1032, %v1323
        %v1325 = vpop.f32.mrb[0].mxu0
        %1326 = vmatprep.mubr.bf16.mxu0 0
        %1327 = vmatmul.mubr.bf16.gmra.mrb[0].mxu0 %v1169
        %v1328 = vpop.f32.mrb[0].mxu0
        %v1329 = vadd.f32 %v1037, %v1328
        %v1330 = vpop.f32.mrb[0].mxu0
        %v1331 = vpop.f32.mrb[0].mxu0
        %v1332 = vadd.f32 %v1040, %v1331
        %v1333 = vpop.f32.mrb[0].mxu0
        %1334 = vdwg.mxu0
        %vm1351 = vcmask 1042432
        %vm1352 = vcmask 1046532
        %vm1353 = vmor %vm1351, %vm1352
        %v1354 = vrot.slane %v337, 5
        %v1355 = vrot.slane %v1354, 4
        %v1356 = vrot.slane %v338, 5
        %v1357 = vsel %vm1353, %v1355, %v1356
        %v1358 = vrot.slane %v1356, 4
        %v1359 = vrot.slane %v339, 5
        %v1360 = vsel %vm1353, %v1358, %v1359
        %v1361 = vrot.slane %v340, 5
        %v1362 = vrot.slane %v1361, 4
        %v1363 = vrot.slane %v341, 5
        %v1364 = vsel %vm1353, %v1362, %v1363
        %v1365 = vrot.slane %v1363, 4
        %v1366 = vrot.slane %v342, 5
        %v1367 = vsel %vm1353, %v1365, %v1366
        %v1368 = vrot.slane %v343, 5
        %v1369 = vrot.slane %v1368, 4
        %v1370 = vrot.slane %v344, 5
        %v1371 = vsel %vm1353, %v1369, %v1370
        %v1372 = vrot.slane %v1370, 4
        %v1373 = vrot.slane %v345, 5
        %v1374 = vsel %vm1353, %v1372, %v1373
        %v1375 = vrot.slane %v346, 5
        %v1376 = vrot.slane %v1375, 4
        %v1377 = vrot.slane %v347, 5
        %v1378 = vsel %vm1353, %v1376, %v1377
        %v1379 = vrot.slane %v1377, 4
        %v1380 = vrot.slane %v348, 5
        %v1381 = vsel %vm1353, %v1379, %v1380
        %v1382 = vrot.slane %v349, 5
        %v1383 = vrot.slane %v1382, 4
        %v1384 = vrot.slane %v350, 5
        %v1385 = vsel %vm1353, %v1383, %v1384
        %v1386 = vrot.slane %v1384, 4
        %v1387 = vrot.slane %v351, 5
        %v1388 = vsel %vm1353, %v1386, %v1387
        %v1389 = vrot.slane %v352, 5
        %v1390 = vrot.slane %v1389, 4
        %v1391 = vrot.slane %v353, 5
        %v1392 = vsel %vm1353, %v1390, %v1391
        %v1393 = vrot.slane %v1391, 4
        %v1394 = vrot.slane %v354, 5
        %v1395 = vsel %vm1353, %v1393, %v1394
        %v1396 = vrot.slane %v355, 5
        %v1397 = vrot.slane %v1396, 4
        %v1398 = vrot.slane %v356, 5
        %v1399 = vsel %vm1353, %v1397, %v1398
        %v1400 = vrot.slane %v1398, 4
        %v1401 = vrot.slane %v357, 5
        %v1402 = vsel %vm1353, %v1400, %v1401
        %v1403 = vrot.slane %v358, 5
        %v1404 = vrot.slane %v1403, 4
        %v1405 = vrot.slane %v359, 5
        %v1406 = vsel %vm1353, %v1404, %v1405
        %v1407 = vrot.slane %v1405, 4
        %v1408 = vrot.slane %v360, 5
        %v1409 = vsel %vm1353, %v1407, %v1408
        %v1410 = vrot.slane %v361, 5
        %v1411 = vrot.slane %v1410, 4
        %v1412 = vrot.slane %v362, 5
        %v1413 = vsel %vm1353, %v1411, %v1412
        %v1414 = vrot.slane %v1412, 4
        %v1415 = vrot.slane %v363, 5
        %v1416 = vsel %vm1353, %v1414, %v1415
        %v1417 = vrot.slane %v364, 5
        %v1418 = vrot.slane %v1417, 4
        %v1419 = vrot.slane %v365, 5
        %v1420 = vsel %vm1353, %v1418, %v1419
        %v1421 = vrot.slane %v1419, 4
        %v1422 = vrot.slane %v366, 5
        %v1423 = vsel %vm1353, %v1421, %v1422
        %v1424 = vrot.slane %v367, 5
        %v1425 = vrot.slane %v1424, 4
        %v1426 = vrot.slane %v368, 5
        %v1427 = vsel %vm1353, %v1425, %v1426
        %v1428 = vrot.slane %v1426, 4
        %v1429 = vrot.slane %v369, 5
        %v1430 = vsel %vm1353, %v1428, %v1429
        %v1431 = vrot.slane %v370, 5
        %v1432 = vrot.slane %v1431, 4
        %v1433 = vrot.slane %v371, 5
        %v1434 = vsel %vm1353, %v1432, %v1433
        %v1435 = vrot.slane %v1433, 4
        %v1436 = vrot.slane %v372, 5
        %v1437 = vsel %vm1353, %v1435, %v1436
        %v1438 = vrot.slane %v373, 5
        %v1439 = vrot.slane %v1438, 4
        %v1440 = vrot.slane %v374, 5
        %v1441 = vsel %vm1353, %v1439, %v1440
        %v1442 = vrot.slane %v1440, 4
        %v1443 = vrot.slane %v375, 5
        %v1444 = vsel %vm1353, %v1442, %v1443
        %v1445 = vrot.slane %v376, 5
        %v1446 = vrot.slane %v1445, 4
        %v1447 = vrot.slane %v377, 5
        %v1448 = vsel %vm1353, %v1446, %v1447
        %v1449 = vrot.slane %v1447, 4
        %v1450 = vrot.slane %v378, 5
        %v1451 = vsel %vm1353, %v1449, %v1450
        %v1452 = vrot.slane %v379, 5
        %v1453 = vrot.slane %v1452, 4
        %v1454 = vrot.slane %v380, 5
        %v1455 = vsel %vm1353, %v1453, %v1454
        %v1456 = vrot.slane %v1454, 4
        %v1457 = vrot.slane %v381, 5
        %v1458 = vsel %vm1353, %v1456, %v1457
        %v1459 = vrot.slane %v382, 5
        %v1460 = vrot.slane %v1459, 4
        %v1461 = vrot.slane %v383, 5
        %v1462 = vsel %vm1353, %v1460, %v1461
        %v1463 = vrot.slane %v1461, 4
        %v1464 = vrot.slane %v384, 5
        %v1465 = vsel %vm1353, %v1463, %v1464
        %s1466 = scalar_lea.vmem [#allocation5], 4
        %v1467 = vld [vmem:[%s1466] sm:$0x3]
        %v1468 = vunpack.c.l.b16 %v1357
        %v1469 = vunpack.c.l.b16 %v1360
        %v1470 = vunpack.c.l.b16 %v1364
        %v1471 = vunpack.c.l.b16 %v1367
        %v1472 = vunpack.c.l.b16 %v1371
        %v1473 = vunpack.c.l.b16 %v1374
        %v1474 = vunpack.c.l.b16 %v1378
        %v1475 = vunpack.c.l.b16 %v1381
        %v1476 = vunpack.c.l.b16 %v1385
        %v1477 = vunpack.c.l.b16 %v1388
        %v1478 = vunpack.c.l.b16 %v1392
        %v1479 = vunpack.c.l.b16 %v1395
        %v1480 = vunpack.c.l.b16 %v1399
        %v1481 = vunpack.c.l.b16 %v1402
        %v1482 = vunpack.c.l.b16 %v1406
        %v1483 = vunpack.c.l.b16 %v1409
        %v1484 = vunpack.c.l.b16 %v1413
        %v1485 = vunpack.c.l.b16 %v1416
        %v1486 = vunpack.c.l.b16 %v1420
        %v1487 = vunpack.c.l.b16 %v1423
        %v1488 = vunpack.c.l.b16 %v1427
        %v1489 = vunpack.c.l.b16 %v1430
        %v1490 = vunpack.c.l.b16 %v1434
        %v1491 = vunpack.c.l.b16 %v1437
        %v1492 = vunpack.c.l.b16 %v1441
        %v1493 = vunpack.c.l.b16 %v1444
        %v1494 = vunpack.c.l.b16 %v1448
        %v1495 = vunpack.c.l.b16 %v1451
        %v1496 = vunpack.c.l.b16 %v1455
        %v1497 = vunpack.c.l.b16 %v1458
        %v1498 = vunpack.c.l.b16 %v1462
        %v1499 = vunpack.c.l.b16 %v1465
        %v1500 = vpack.c.b16 %v1469, %v1468
        %v1501 = vpack.c.b16 %v1471, %v1470
        %v1502 = vpack.c.b16 %v1473, %v1472
        %v1503 = vpack.c.b16 %v1475, %v1474
        %v1504 = vpack.c.b16 %v1477, %v1476
        %v1505 = vpack.c.b16 %v1479, %v1478
        %v1506 = vpack.c.b16 %v1481, %v1480
        %v1507 = vpack.c.b16 %v1483, %v1482
        %v1508 = vpack.c.b16 %v1485, %v1484
        %v1509 = vpack.c.b16 %v1487, %v1486
        %v1510 = vpack.c.b16 %v1489, %v1488
        %v1511 = vpack.c.b16 %v1491, %v1490
        %v1512 = vpack.c.b16 %v1493, %v1492
        %v1513 = vpack.c.b16 %v1495, %v1494
        %v1514 = vpack.c.b16 %v1497, %v1496
        %v1515 = vpack.c.b16 %v1499, %v1498
        %v1517 = vsel %vm829, %v1500, 0
        %v1520 = vsel %vm829, %v1501, 0
        %v1523 = vsel %vm829, %v1502, 0
        %v1526 = vsel %vm829, %v1503, 0
        %v1529 = vsel %vm829, %v1504, 0
        %v1532 = vsel %vm829, %v1505, 0
        %v1535 = vsel %vm829, %v1506, 0
        %v1538 = vsel %vm829, %v1507, 0
        %v1541 = vsel %vm829, %v1508, 0
        %v1544 = vsel %vm829, %v1509, 0
        %v1547 = vsel %vm829, %v1510, 0
        %v1550 = vsel %vm829, %v1511, 0
        %v1553 = vsel %vm829, %v1512, 0
        %v1556 = vsel %vm829, %v1513, 0
        %v1559 = vsel %vm829, %v1514, 0
        %v1562 = vsel %vm829, %v1515, 0
        %v1565 = vsel %vm878, %v1467, 0
        %1567 = vmatprep.subr.bf16.mxu0 0
        %1568 = vmatpush1.bf16.msra.mxu0 %v1565
        %1569 = vmatprep.subr.bf16.mxu0 0
        %1570 = vmatpush1.bf16.msra.mxu0 0
        %1571 = vmatprep.subr.bf16.mxu0 0
        %1572 = vmatpush1.bf16.msra.mxu0 0
        %1573 = vmatprep.subr.bf16.mxu0 0
        %1574 = vmatpush1.bf16.msra.mxu0 0
        %1575 = vmatprep.subr.bf16.mxu0 0
        %1576 = vmatpush1.bf16.msra.mxu0 0
        %1577 = vmatprep.subr.bf16.mxu0 0
        %1578 = vmatpush1.bf16.msra.mxu0 0
        %1579 = vmatprep.subr.bf16.mxu0 0
        %1580 = vmatpush1.bf16.msra.mxu0 0
        %1581 = vmatprep.subr.bf16.mxu0 0
        %1582 = vmatpush1.bf16.msra.mxu0 0
        %1583 = vmatprep.subr.bf16.mxu0 0
        %1584 = vmatpush1.bf16.msra.mxu0 0
        %1585 = vmatprep.subr.bf16.mxu0 0
        %1586 = vmatpush1.bf16.msra.mxu0 0
        %1587 = vmatprep.subr.bf16.mxu0 0
        %1588 = vmatpush1.bf16.msra.mxu0 0
        %1589 = vmatprep.subr.bf16.mxu0 0
        %1590 = vmatpush1.bf16.msra.mxu0 0
        %1591 = vmatprep.subr.bf16.mxu0 0
        %1592 = vmatpush1.bf16.msra.mxu0 0
        %1593 = vmatprep.subr.bf16.mxu0 0
        %1594 = vmatpush1.bf16.msra.mxu0 0
        %1595 = vmatprep.subr.bf16.mxu0 0
        %1596 = vmatpush1.bf16.msra.mxu0 0
        %1597 = vmatprep.subr.bf16.mxu0 0
        %1598 = vmatpush1.bf16.msra.mxu0 0
        %1599 = vmatprep.mubr.bf16.mxu0 0
        %1600 = vmatmul.mubr.bf16.gmra.mrb[0].mxu0 %v1517
        %v1601 = vpop.f32.mrb[0].mxu0
        %v1602 = vadd.f32 0.0, %v1601
        %v1603 = vpop.f32.mrb[0].mxu0
        %v1604 = vpop.f32.mrb[0].mxu0
        %v1605 = vadd.f32 0.0, %v1604
        %v1606 = vpop.f32.mrb[0].mxu0
        %1607 = vmatprep.mubr.bf16.mxu0 0
        %1608 = vmatmul.mubr.bf16.gmra.mrb[0].mxu0 %v1520
        %v1609 = vpop.f32.mrb[0].mxu0
        %v1610 = vadd.f32 0.0, %v1609
        %v1611 = vpop.f32.mrb[0].mxu0
        %v1612 = vpop.f32.mrb[0].mxu0
        %v1613 = vadd.f32 0.0, %v1612
        %v1614 = vpop.f32.mrb[0].mxu0
        %1615 = vmatprep.mubr.bf16.mxu0 0
        %1616 = vmatmul.mubr.bf16.gmra.mrb[0].mxu0 %v1523
        %v1617 = vpop.f32.mrb[0].mxu0
        %v1618 = vadd.f32 0.0, %v1617
        %v1619 = vpop.f32.mrb[0].mxu0
        %v1620 = vpop.f32.mrb[0].mxu0
        %v1621 = vadd.f32 0.0, %v1620
        %v1622 = vpop.f32.mrb[0].mxu0
        %1623 = vmatprep.mubr.bf16.mxu0 0
        %1624 = vmatmul.mubr.bf16.gmra.mrb[0].mxu0 %v1526
        %v1625 = vpop.f32.mrb[0].mxu0
        %v1626 = vadd.f32 0.0, %v1625
        %v1627 = vpop.f32.mrb[0].mxu0
        %v1628 = vpop.f32.mrb[0].mxu0
        %v1629 = vadd.f32 0.0, %v1628
        %v1630 = vpop.f32.mrb[0].mxu0
        %1631 = vmatprep.mubr.bf16.mxu0 0
        %1632 = vmatmul.mubr.bf16.gmra.mrb[0].mxu0 %v1529
        %v1633 = vpop.f32.mrb[0].mxu0
        %v1634 = vadd.f32 0.0, %v1633
        %v1635 = vpop.f32.mrb[0].mxu0
        %v1636 = vpop.f32.mrb[0].mxu0
        %v1637 = vadd.f32 0.0, %v1636
        %v1638 = vpop.f32.mrb[0].mxu0
        %1639 = vmatprep.mubr.bf16.mxu0 0
        %1640 = vmatmul.mubr.bf16.gmra.mrb[0].mxu0 %v1532
        %v1641 = vpop.f32.mrb[0].mxu0
        %v1642 = vadd.f32 0.0, %v1641
        %v1643 = vpop.f32.mrb[0].mxu0
        %v1644 = vpop.f32.mrb[0].mxu0
        %v1645 = vadd.f32 0.0, %v1644
        %v1646 = vpop.f32.mrb[0].mxu0
        %1647 = vmatprep.mubr.bf16.mxu0 0
        %1648 = vmatmul.mubr.bf16.gmra.mrb[0].mxu0 %v1535
        %v1649 = vpop.f32.mrb[0].mxu0
        %v1650 = vadd.f32 0.0, %v1649
        %v1651 = vpop.f32.mrb[0].mxu0
        %v1652 = vpop.f32.mrb[0].mxu0
        %v1653 = vadd.f32 0.0, %v1652
        %v1654 = vpop.f32.mrb[0].mxu0
        %1655 = vmatprep.mubr.bf16.mxu0 0
        %1656 = vmatmul.mubr.bf16.gmra.mrb[0].mxu0 %v1538
        %v1657 = vpop.f32.mrb[0].mxu0
        %v1658 = vadd.f32 0.0, %v1657
        %v1659 = vpop.f32.mrb[0].mxu0
        %v1660 = vpop.f32.mrb[0].mxu0
        %v1661 = vadd.f32 0.0, %v1660
        %v1662 = vpop.f32.mrb[0].mxu0
        %1663 = vmatprep.mubr.bf16.mxu0 0
        %1664 = vmatmul.mubr.bf16.gmra.mrb[0].mxu0 %v1541
        %v1665 = vpop.f32.mrb[0].mxu0
        %v1666 = vadd.f32 0.0, %v1665
        %v1667 = vpop.f32.mrb[0].mxu0
        %v1668 = vpop.f32.mrb[0].mxu0
        %v1669 = vadd.f32 0.0, %v1668
        %v1670 = vpop.f32.mrb[0].mxu0
        %1671 = vmatprep.mubr.bf16.mxu0 0
        %1672 = vmatmul.mubr.bf16.gmra.mrb[0].mxu0 %v1544
        %v1673 = vpop.f32.mrb[0].mxu0
        %v1674 = vadd.f32 0.0, %v1673
        %v1675 = vpop.f32.mrb[0].mxu0
        %v1676 = vpop.f32.mrb[0].mxu0
        %v1677 = vadd.f32 0.0, %v1676
        %v1678 = vpop.f32.mrb[0].mxu0
        %1679 = vmatprep.mubr.bf16.mxu0 0
        %1680 = vmatmul.mubr.bf16.gmra.mrb[0].mxu0 %v1547
        %v1681 = vpop.f32.mrb[0].mxu0
        %v1682 = vadd.f32 0.0, %v1681
        %v1683 = vpop.f32.mrb[0].mxu0
        %v1684 = vpop.f32.mrb[0].mxu0
        %v1685 = vadd.f32 0.0, %v1684
        %v1686 = vpop.f32.mrb[0].mxu0
        %1687 = vmatprep.mubr.bf16.mxu0 0
        %1688 = vmatmul.mubr.bf16.gmra.mrb[0].mxu0 %v1550
        %v1689 = vpop.f32.mrb[0].mxu0
        %v1690 = vadd.f32 0.0, %v1689
        %v1691 = vpop.f32.mrb[0].mxu0
        %v1692 = vpop.f32.mrb[0].mxu0
        %v1693 = vadd.f32 0.0, %v1692
        %v1694 = vpop.f32.mrb[0].mxu0
        %1695 = vmatprep.mubr.bf16.mxu0 0
        %1696 = vmatmul.mubr.bf16.gmra.mrb[0].mxu0 %v1553
        %v1697 = vpop.f32.mrb[0].mxu0
        %v1698 = vadd.f32 0.0, %v1697
        %v1699 = vpop.f32.mrb[0].mxu0
        %v1700 = vpop.f32.mrb[0].mxu0
        %v1701 = vadd.f32 0.0, %v1700
        %v1702 = vpop.f32.mrb[0].mxu0
        %1703 = vmatprep.mubr.bf16.mxu0 0
        %1704 = vmatmul.mubr.bf16.gmra.mrb[0].mxu0 %v1556
        %v1705 = vpop.f32.mrb[0].mxu0
        %v1706 = vadd.f32 0.0, %v1705
        %v1707 = vpop.f32.mrb[0].mxu0
        %v1708 = vpop.f32.mrb[0].mxu0
        %v1709 = vadd.f32 0.0, %v1708
        %v1710 = vpop.f32.mrb[0].mxu0
        %1711 = vmatprep.mubr.bf16.mxu0 0
        %1712 = vmatmul.mubr.bf16.gmra.mrb[0].mxu0 %v1559
        %v1713 = vpop.f32.mrb[0].mxu0
        %v1714 = vadd.f32 0.0, %v1713
        %v1715 = vpop.f32.mrb[0].mxu0
        %v1716 = vpop.f32.mrb[0].mxu0
        %v1717 = vadd.f32 0.0, %v1716
        %v1718 = vpop.f32.mrb[0].mxu0
        %1719 = vmatprep.mubr.bf16.mxu0 0
        %1720 = vmatmul.mubr.bf16.gmra.mrb[0].mxu0 %v1562
        %v1721 = vpop.f32.mrb[0].mxu0
        %v1722 = vadd.f32 0.0, %v1721
        %v1723 = vpop.f32.mrb[0].mxu0
        %v1724 = vpop.f32.mrb[0].mxu0
        %v1725 = vadd.f32 0.0, %v1724
        %v1726 = vpop.f32.mrb[0].mxu0
        %1727 = vdwg.mxu0
        %v1728 = vadd.f32 %v1209, %v1602
        %v1729 = vadd.f32 %v1212, %v1605
        %v1730 = vadd.f32 %v1217, %v1610
        %v1731 = vadd.f32 %v1220, %v1613
        %v1732 = vadd.f32 %v1225, %v1618
        %v1733 = vadd.f32 %v1228, %v1621
        %v1734 = vadd.f32 %v1233, %v1626
        %v1735 = vadd.f32 %v1236, %v1629
        %v1736 = vadd.f32 %v1241, %v1634
        %v1737 = vadd.f32 %v1244, %v1637
        %v1738 = vadd.f32 %v1249, %v1642
        %v1739 = vadd.f32 %v1252, %v1645
        %v1740 = vadd.f32 %v1257, %v1650
        %v1741 = vadd.f32 %v1260, %v1653
        %v1742 = vadd.f32 %v1265, %v1658
        %v1743 = vadd.f32 %v1268, %v1661
        %v1744 = vadd.f32 %v1273, %v1666
        %v1745 = vadd.f32 %v1276, %v1669
        %v1746 = vadd.f32 %v1281, %v1674
        %v1747 = vadd.f32 %v1284, %v1677
        %v1748 = vadd.f32 %v1289, %v1682
        %v1749 = vadd.f32 %v1292, %v1685
        %v1750 = vadd.f32 %v1297, %v1690
        %v1751 = vadd.f32 %v1300, %v1693
        %v1752 = vadd.f32 %v1305, %v1698
        %v1753 = vadd.f32 %v1308, %v1701
        %v1754 = vadd.f32 %v1313, %v1706
        %v1755 = vadd.f32 %v1316, %v1709
        %v1756 = vadd.f32 %v1321, %v1714
        %v1757 = vadd.f32 %v1324, %v1717
        %v1758 = vadd.f32 %v1329, %v1722
        %v1759 = vadd.f32 %v1332, %v1725
        %s1760 = scalar_lea.vmem [#allocation5], 6
        %v1761 = vld [vmem:[%s1760] sm:$0x3]
        %v1764 = vunpack.c.l.b16 %v385
        %v1765 = vunpack.c.l.b16 %v386
        %v1766 = vpack.c.b16 %v1765, %v1764
        %v1768 = vsel %vm829, %v1766, 0
        %v1771 = vsel %vm878, %v1761, 0
        %1773 = vmatprep.subr.bf16.mxu0 0
        %1774 = vmatpush1.bf16.msra.mxu0 %v1771
        %1775 = vmatprep.subr.bf16.mxu0 0
        %1776 = vmatpush1.bf16.msra.mxu0 0
        %1777 = vmatprep.subr.bf16.mxu0 0
        %1778 = vmatpush1.bf16.msra.mxu0 0
        %1779 = vmatprep.subr.bf16.mxu0 0
        %1780 = vmatpush1.bf16.msra.mxu0 0
        %1781 = vmatprep.subr.bf16.mxu0 0
        %1782 = vmatpush1.bf16.msra.mxu0 0
        %1783 = vmatprep.subr.bf16.mxu0 0
        %1784 = vmatpush1.bf16.msra.mxu0 0
        %1785 = vmatprep.subr.bf16.mxu0 0
        %1786 = vmatpush1.bf16.msra.mxu0 0
        %1787 = vmatprep.subr.bf16.mxu0 0
        %1788 = vmatpush1.bf16.msra.mxu0 0
        %1789 = vmatprep.subr.bf16.mxu0 0
        %1790 = vmatpush1.bf16.msra.mxu0 0
        %1791 = vmatprep.subr.bf16.mxu0 0
        %1792 = vmatpush1.bf16.msra.mxu0 0
        %1793 = vmatprep.subr.bf16.mxu0 0
        %1794 = vmatpush1.bf16.msra.mxu0 0
        %1795 = vmatprep.subr.bf16.mxu0 0
        %1796 = vmatpush1.bf16.msra.mxu0 0
        %1797 = vmatprep.subr.bf16.mxu0 0
        %1798 = vmatpush1.bf16.msra.mxu0 0
        %1799 = vmatprep.subr.bf16.mxu0 0
        %1800 = vmatpush1.bf16.msra.mxu0 0
        %1801 = vmatprep.subr.bf16.mxu0 0
        %1802 = vmatpush1.bf16.msra.mxu0 0
        %1803 = vmatprep.subr.bf16.mxu0 0
        %1804 = vmatpush1.bf16.msra.mxu0 0
        %1805 = vmatprep.mubr.bf16.mxu0 0
        %1806 = vmatmul.mubr.bf16.gmra.mrb[0].mxu0 %v1127
        %v1807 = vpop.f32.mrb[0].mxu0
        %v1808 = vadd.f32 0.0, %v1807
        %v1809 = vpop.f32.mrb[0].mxu0
        %v1810 = vpop.f32.mrb[0].mxu0
        %v1811 = vadd.f32 0.0, %v1810
        %v1812 = vpop.f32.mrb[0].mxu0
        %1813 = vmatprep.mubr.bf16.mxu0 0
        %1814 = vmatmul.mubr.bf16.gmra.mrb[0].mxu0 %v1130
        %v1815 = vpop.f32.mrb[0].mxu0
        %v1816 = vadd.f32 0.0, %v1815
        %v1817 = vpop.f32.mrb[0].mxu0
        %v1818 = vpop.f32.mrb[0].mxu0
        %v1819 = vadd.f32 0.0, %v1818
        %v1820 = vpop.f32.mrb[0].mxu0
        %1821 = vmatprep.mubr.bf16.mxu0 0
        %1822 = vmatmul.mubr.bf16.gmra.mrb[0].mxu0 %v1133
        %v1823 = vpop.f32.mrb[0].mxu0
        %v1824 = vadd.f32 0.0, %v1823
        %v1825 = vpop.f32.mrb[0].mxu0
        %v1826 = vpop.f32.mrb[0].mxu0
        %v1827 = vadd.f32 0.0, %v1826
        %v1828 = vpop.f32.mrb[0].mxu0
        %1829 = vmatprep.mubr.bf16.mxu0 0
        %1830 = vmatmul.mubr.bf16.gmra.mrb[0].mxu0 %v1136
        %v1831 = vpop.f32.mrb[0].mxu0
        %v1832 = vadd.f32 0.0, %v1831
        %v1833 = vpop.f32.mrb[0].mxu0
        %v1834 = vpop.f32.mrb[0].mxu0
        %v1835 = vadd.f32 0.0, %v1834
        %v1836 = vpop.f32.mrb[0].mxu0
        %1837 = vmatprep.mubr.bf16.mxu0 0
        %1838 = vmatmul.mubr.bf16.gmra.mrb[0].mxu0 %v1139
        %v1839 = vpop.f32.mrb[0].mxu0
        %v1840 = vadd.f32 0.0, %v1839
        %v1841 = vpop.f32.mrb[0].mxu0
        %v1842 = vpop.f32.mrb[0].mxu0
        %v1843 = vadd.f32 0.0, %v1842
        %v1844 = vpop.f32.mrb[0].mxu0
        %1845 = vmatprep.mubr.bf16.mxu0 0
        %1846 = vmatmul.mubr.bf16.gmra.mrb[0].mxu0 %v1142
        %v1847 = vpop.f32.mrb[0].mxu0
        %v1848 = vadd.f32 0.0, %v1847
        %v1849 = vpop.f32.mrb[0].mxu0
        %v1850 = vpop.f32.mrb[0].mxu0
        %v1851 = vadd.f32 0.0, %v1850
        %v1852 = vpop.f32.mrb[0].mxu0
        %1853 = vmatprep.mubr.bf16.mxu0 0
        %1854 = vmatmul.mubr.bf16.gmra.mrb[0].mxu0 %v1145
        %v1855 = vpop.f32.mrb[0].mxu0
        %v1856 = vadd.f32 0.0, %v1855
        %v1857 = vpop.f32.mrb[0].mxu0
        %v1858 = vpop.f32.mrb[0].mxu0
        %v1859 = vadd.f32 0.0, %v1858
        %v1860 = vpop.f32.mrb[0].mxu0
        %1861 = vmatprep.mubr.bf16.mxu0 0
        %1862 = vmatmul.mubr.bf16.gmra.mrb[0].mxu0 %v1148
        %v1863 = vpop.f32.mrb[0].mxu0
        %v1864 = vadd.f32 0.0, %v1863
        %v1865 = vpop.f32.mrb[0].mxu0
        %v1866 = vpop.f32.mrb[0].mxu0
        %v1867 = vadd.f32 0.0, %v1866
        %v1868 = vpop.f32.mrb[0].mxu0
        %1869 = vmatprep.mubr.bf16.mxu0 0
        %1870 = vmatmul.mubr.bf16.gmra.mrb[0].mxu0 %v1151
        %v1871 = vpop.f32.mrb[0].mxu0
        %v1872 = vadd.f32 0.0, %v1871
        %v1873 = vpop.f32.mrb[0].mxu0
        %v1874 = vpop.f32.mrb[0].mxu0
        %v1875 = vadd.f32 0.0, %v1874
        %v1876 = vpop.f32.mrb[0].mxu0
        %1877 = vmatprep.mubr.bf16.mxu0 0
        %1878 = vmatmul.mubr.bf16.gmra.mrb[0].mxu0 %v1154
        %v1879 = vpop.f32.mrb[0].mxu0
        %v1880 = vadd.f32 0.0, %v1879
        %v1881 = vpop.f32.mrb[0].mxu0
        %v1882 = vpop.f32.mrb[0].mxu0
        %v1883 = vadd.f32 0.0, %v1882
        %v1884 = vpop.f32.mrb[0].mxu0
        %1885 = vmatprep.mubr.bf16.mxu0 0
        %1886 = vmatmul.mubr.bf16.gmra.mrb[0].mxu0 %v1157
        %v1887 = vpop.f32.mrb[0].mxu0
        %v1888 = vadd.f32 0.0, %v1887
        %v1889 = vpop.f32.mrb[0].mxu0
        %v1890 = vpop.f32.mrb[0].mxu0
        %v1891 = vadd.f32 0.0, %v1890
        %v1892 = vpop.f32.mrb[0].mxu0
        %1893 = vmatprep.mubr.bf16.mxu0 0
        %1894 = vmatmul.mubr.bf16.gmra.mrb[0].mxu0 %v1160
        %v1895 = vpop.f32.mrb[0].mxu0
        %v1896 = vadd.f32 0.0, %v1895
        %v1897 = vpop.f32.mrb[0].mxu0
        %v1898 = vpop.f32.mrb[0].mxu0
        %v1899 = vadd.f32 0.0, %v1898
        %v1900 = vpop.f32.mrb[0].mxu0
        %1901 = vmatprep.mubr.bf16.mxu0 0
        %1902 = vmatmul.mubr.bf16.gmra.mrb[0].mxu0 %v1163
        %v1903 = vpop.f32.mrb[0].mxu0
        %v1904 = vadd.f32 0.0, %v1903
        %v1905 = vpop.f32.mrb[0].mxu0
        %v1906 = vpop.f32.mrb[0].mxu0
        %v1907 = vadd.f32 0.0, %v1906
        %v1908 = vpop.f32.mrb[0].mxu0
        %1909 = vmatprep.mubr.bf16.mxu0 0
        %1910 = vmatmul.mubr.bf16.gmra.mrb[0].mxu0 %v1166
        %v1911 = vpop.f32.mrb[0].mxu0
        %v1912 = vadd.f32 0.0, %v1911
        %v1913 = vpop.f32.mrb[0].mxu0
        %v1914 = vpop.f32.mrb[0].mxu0
        %v1915 = vadd.f32 0.0, %v1914
        %v1916 = vpop.f32.mrb[0].mxu0
        %1917 = vmatprep.mubr.bf16.mxu0 0
        %1918 = vmatmul.mubr.bf16.gmra.mrb[0].mxu0 %v1169
        %v1919 = vpop.f32.mrb[0].mxu0
        %v1920 = vadd.f32 0.0, %v1919
        %v1921 = vpop.f32.mrb[0].mxu0
        %v1922 = vpop.f32.mrb[0].mxu0
        %v1923 = vadd.f32 0.0, %v1922
        %v1924 = vpop.f32.mrb[0].mxu0
        %1925 = vmatprep.mubr.bf16.mxu0 0
        %1926 = vmatmul.mubr.bf16.gmra.mrb[0].mxu0 %v1768
        %v1927 = vpop.f32.mrb[0].mxu0
        %v1928 = vadd.f32 0.0, %v1927
        %v1929 = vpop.f32.mrb[0].mxu0
        %v1930 = vpop.f32.mrb[0].mxu0
        %v1931 = vadd.f32 0.0, %v1930
        %v1932 = vpop.f32.mrb[0].mxu0
        %1933 = vdwg.mxu0
        %v1934 = vadd.f32 %v1728, %v1808
        %v1935 = vadd.f32 %v1729, %v1811
        %v1936 = vadd.f32 %v1730, %v1816
        %v1937 = vadd.f32 %v1731, %v1819
        %v1938 = vadd.f32 %v1732, %v1824
        %v1939 = vadd.f32 %v1733, %v1827
        %v1940 = vadd.f32 %v1734, %v1832
        %v1941 = vadd.f32 %v1735, %v1835
        %v1942 = vadd.f32 %v1736, %v1840
        %v1943 = vadd.f32 %v1737, %v1843
        %v1944 = vadd.f32 %v1738, %v1848
        %v1945 = vadd.f32 %v1739, %v1851
        %v1946 = vadd.f32 %v1740, %v1856
        %v1947 = vadd.f32 %v1741, %v1859
        %v1948 = vadd.f32 %v1742, %v1864
        %v1949 = vadd.f32 %v1743, %v1867
        %v1950 = vadd.f32 %v1744, %v1872
        %v1951 = vadd.f32 %v1745, %v1875
        %v1952 = vadd.f32 %v1746, %v1880
        %v1953 = vadd.f32 %v1747, %v1883
        %v1954 = vadd.f32 %v1748, %v1888
        %v1955 = vadd.f32 %v1749, %v1891
        %v1956 = vadd.f32 %v1750, %v1896
        %v1957 = vadd.f32 %v1751, %v1899
        %v1958 = vadd.f32 %v1752, %v1904
        %v1959 = vadd.f32 %v1753, %v1907
        %v1960 = vadd.f32 %v1754, %v1912
        %v1961 = vadd.f32 %v1755, %v1915
        %v1962 = vadd.f32 %v1756, %v1920
        %v1963 = vadd.f32 %v1757, %v1923
        %v1964 = vadd.f32 %v1758, %v1928
        %v1965 = vadd.f32 %v1759, %v1931
        %v1967 = vshrl.u32 %v385, 16
        %v1969 = vrot.slane %v1967, 4
        %v1970 = vshll.u32 %v385, 16
        %v1972 = vrot.slane %v1970, 5
        %v1973 = vor.u32 %v1969, %v1972
        %v1974 = vrot.slane %v1973, 4
        %v1976 = vshll.u32 %v386, 16
        %v1978 = vrot.slane %v1976, 5
        %v1979 = vsel %vm394, %v1974, %v1978
        %v1980 = vshrl.u32 %v386, 16
        %v1982 = vrot.slane %v1980, 4
        %v1983 = vor.u32 %v1982, %v1978
        %v1984 = vrot.slane %v1983, 4
        %v1986 = vshll.u32 %v387, 16
        %v1988 = vrot.slane %v1986, 5
        %v1989 = vsel %vm394, %v1984, %v1988
        %s1990 = scalar_lea.vmem [#allocation5], 8
        %v1991 = vld [vmem:[%s1990] sm:$0x3]
        %v1992 = vunpack.c.l.b16 %v1979
        %v1993 = vunpack.c.l.b16 %v1989
        %v1994 = vpack.c.b16 %v1993, %v1992
        %v1996 = vsel %vm829, %v1994, 0
        %v1999 = vsel %vm878, %v1991, 0
        %2001 = vmatprep.subr.bf16.mxu0 0
        %2002 = vmatpush1.bf16.msra.mxu0 %v1999
        %2003 = vmatprep.subr.bf16.mxu0 0
        %2004 = vmatpush1.bf16.msra.mxu0 0
        %2005 = vmatprep.subr.bf16.mxu0 0
        %2006 = vmatpush1.bf16.msra.mxu0 0
        %2007 = vmatprep.subr.bf16.mxu0 0
        %2008 = vmatpush1.bf16.msra.mxu0 0
        %2009 = vmatprep.subr.bf16.mxu0 0
        %2010 = vmatpush1.bf16.msra.mxu0 0
        %2011 = vmatprep.subr.bf16.mxu0 0
        %2012 = vmatpush1.bf16.msra.mxu0 0
        %2013 = vmatprep.subr.bf16.mxu0 0
        %2014 = vmatpush1.bf16.msra.mxu0 0
        %2015 = vmatprep.subr.bf16.mxu0 0
        %2016 = vmatpush1.bf16.msra.mxu0 0
        %2017 = vmatprep.subr.bf16.mxu0 0
        %2018 = vmatpush1.bf16.msra.mxu0 0
        %2019 = vmatprep.subr.bf16.mxu0 0
        %2020 = vmatpush1.bf16.msra.mxu0 0
        %2021 = vmatprep.subr.bf16.mxu0 0
        %2022 = vmatpush1.bf16.msra.mxu0 0
        %2023 = vmatprep.subr.bf16.mxu0 0
        %2024 = vmatpush1.bf16.msra.mxu0 0
        %2025 = vmatprep.subr.bf16.mxu0 0
        %2026 = vmatpush1.bf16.msra.mxu0 0
        %2027 = vmatprep.subr.bf16.mxu0 0
        %2028 = vmatpush1.bf16.msra.mxu0 0
        %2029 = vmatprep.subr.bf16.mxu0 0
        %2030 = vmatpush1.bf16.msra.mxu0 0
        %2031 = vmatprep.subr.bf16.mxu0 0
        %2032 = vmatpush1.bf16.msra.mxu0 0
        %2033 = vmatprep.mubr.bf16.mxu0 0
        %2034 = vmatmul.mubr.bf16.gmra.mrb[0].mxu0 %v834
        %v2035 = vpop.f32.mrb[0].mxu0
        %v2036 = vadd.f32 0.0, %v2035
        %v2037 = vpop.f32.mrb[0].mxu0
        %v2038 = vpop.f32.mrb[0].mxu0
        %v2039 = vadd.f32 0.0, %v2038
        %v2040 = vpop.f32.mrb[0].mxu0
        %2041 = vmatprep.mubr.bf16.mxu0 0
        %2042 = vmatmul.mubr.bf16.gmra.mrb[0].mxu0 %v837
        %v2043 = vpop.f32.mrb[0].mxu0
        %v2044 = vadd.f32 0.0, %v2043
        %v2045 = vpop.f32.mrb[0].mxu0
        %v2046 = vpop.f32.mrb[0].mxu0
        %v2047 = vadd.f32 0.0, %v2046
        %v2048 = vpop.f32.mrb[0].mxu0
        %2049 = vmatprep.mubr.bf16.mxu0 0
        %2050 = vmatmul.mubr.bf16.gmra.mrb[0].mxu0 %v840
        %v2051 = vpop.f32.mrb[0].mxu0
        %v2052 = vadd.f32 0.0, %v2051
        %v2053 = vpop.f32.mrb[0].mxu0
        %v2054 = vpop.f32.mrb[0].mxu0
        %v2055 = vadd.f32 0.0, %v2054
        %v2056 = vpop.f32.mrb[0].mxu0
        %2057 = vmatprep.mubr.bf16.mxu0 0
        %2058 = vmatmul.mubr.bf16.gmra.mrb[0].mxu0 %v843
        %v2059 = vpop.f32.mrb[0].mxu0
        %v2060 = vadd.f32 0.0, %v2059
        %v2061 = vpop.f32.mrb[0].mxu0
        %v2062 = vpop.f32.mrb[0].mxu0
        %v2063 = vadd.f32 0.0, %v2062
        %v2064 = vpop.f32.mrb[0].mxu0
        %2065 = vmatprep.mubr.bf16.mxu0 0
        %2066 = vmatmul.mubr.bf16.gmra.mrb[0].mxu0 %v846
        %v2067 = vpop.f32.mrb[0].mxu0
        %v2068 = vadd.f32 0.0, %v2067
        %v2069 = vpop.f32.mrb[0].mxu0
        %v2070 = vpop.f32.mrb[0].mxu0
        %v2071 = vadd.f32 0.0, %v2070
        %v2072 = vpop.f32.mrb[0].mxu0
        %2073 = vmatprep.mubr.bf16.mxu0 0
        %2074 = vmatmul.mubr.bf16.gmra.mrb[0].mxu0 %v849
        %v2075 = vpop.f32.mrb[0].mxu0
        %v2076 = vadd.f32 0.0, %v2075
        %v2077 = vpop.f32.mrb[0].mxu0
        %v2078 = vpop.f32.mrb[0].mxu0
        %v2079 = vadd.f32 0.0, %v2078
        %v2080 = vpop.f32.mrb[0].mxu0
        %2081 = vmatprep.mubr.bf16.mxu0 0
        %2082 = vmatmul.mubr.bf16.gmra.mrb[0].mxu0 %v852
        %v2083 = vpop.f32.mrb[0].mxu0
        %v2084 = vadd.f32 0.0, %v2083
        %v2085 = vpop.f32.mrb[0].mxu0
        %v2086 = vpop.f32.mrb[0].mxu0
        %v2087 = vadd.f32 0.0, %v2086
        %v2088 = vpop.f32.mrb[0].mxu0
        %2089 = vmatprep.mubr.bf16.mxu0 0
        %2090 = vmatmul.mubr.bf16.gmra.mrb[0].mxu0 %v855
        %v2091 = vpop.f32.mrb[0].mxu0
        %v2092 = vadd.f32 0.0, %v2091
        %v2093 = vpop.f32.mrb[0].mxu0
        %v2094 = vpop.f32.mrb[0].mxu0
        %v2095 = vadd.f32 0.0, %v2094
        %v2096 = vpop.f32.mrb[0].mxu0
        %2097 = vmatprep.mubr.bf16.mxu0 0
        %2098 = vmatmul.mubr.bf16.gmra.mrb[0].mxu0 %v858
        %v2099 = vpop.f32.mrb[0].mxu0
        %v2100 = vadd.f32 0.0, %v2099
        %v2101 = vpop.f32.mrb[0].mxu0
        %v2102 = vpop.f32.mrb[0].mxu0
        %v2103 = vadd.f32 0.0, %v2102
        %v2104 = vpop.f32.mrb[0].mxu0
        %2105 = vmatprep.mubr.bf16.mxu0 0
        %2106 = vmatmul.mubr.bf16.gmra.mrb[0].mxu0 %v861
        %v2107 = vpop.f32.mrb[0].mxu0
        %v2108 = vadd.f32 0.0, %v2107
        %v2109 = vpop.f32.mrb[0].mxu0
        %v2110 = vpop.f32.mrb[0].mxu0
        %v2111 = vadd.f32 0.0, %v2110
        %v2112 = vpop.f32.mrb[0].mxu0
        %2113 = vmatprep.mubr.bf16.mxu0 0
        %2114 = vmatmul.mubr.bf16.gmra.mrb[0].mxu0 %v864
        %v2115 = vpop.f32.mrb[0].mxu0
        %v2116 = vadd.f32 0.0, %v2115
        %v2117 = vpop.f32.mrb[0].mxu0
        %v2118 = vpop.f32.mrb[0].mxu0
        %v2119 = vadd.f32 0.0, %v2118
        %v2120 = vpop.f32.mrb[0].mxu0
        %2121 = vmatprep.mubr.bf16.mxu0 0
        %2122 = vmatmul.mubr.bf16.gmra.mrb[0].mxu0 %v867
        %v2123 = vpop.f32.mrb[0].mxu0
        %v2124 = vadd.f32 0.0, %v2123
        %v2125 = vpop.f32.mrb[0].mxu0
        %v2126 = vpop.f32.mrb[0].mxu0
        %v2127 = vadd.f32 0.0, %v2126
        %v2128 = vpop.f32.mrb[0].mxu0
        %2129 = vmatprep.mubr.bf16.mxu0 0
        %2130 = vmatmul.mubr.bf16.gmra.mrb[0].mxu0 %v870
        %v2131 = vpop.f32.mrb[0].mxu0
        %v2132 = vadd.f32 0.0, %v2131
        %v2133 = vpop.f32.mrb[0].mxu0
        %v2134 = vpop.f32.mrb[0].mxu0
        %v2135 = vadd.f32 0.0, %v2134
        %v2136 = vpop.f32.mrb[0].mxu0
        %2137 = vmatprep.mubr.bf16.mxu0 0
        %2138 = vmatmul.mubr.bf16.gmra.mrb[0].mxu0 %v873
        %v2139 = vpop.f32.mrb[0].mxu0
        %v2140 = vadd.f32 0.0, %v2139
        %v2141 = vpop.f32.mrb[0].mxu0
        %v2142 = vpop.f32.mrb[0].mxu0
        %v2143 = vadd.f32 0.0, %v2142
        %v2144 = vpop.f32.mrb[0].mxu0
        %2145 = vmatprep.mubr.bf16.mxu0 0
        %2146 = vmatmul.mubr.bf16.gmra.mrb[0].mxu0 %v876
        %v2147 = vpop.f32.mrb[0].mxu0
        %v2148 = vadd.f32 0.0, %v2147
        %v2149 = vpop.f32.mrb[0].mxu0
        %v2150 = vpop.f32.mrb[0].mxu0
        %v2151 = vadd.f32 0.0, %v2150
        %v2152 = vpop.f32.mrb[0].mxu0
        %2153 = vmatprep.mubr.bf16.mxu0 0
        %2154 = vmatmul.mubr.bf16.gmra.mrb[0].mxu0 %v1996
        %v2155 = vpop.f32.mrb[0].mxu0
        %v2156 = vadd.f32 0.0, %v2155
        %v2157 = vpop.f32.mrb[0].mxu0
        %v2158 = vpop.f32.mrb[0].mxu0
        %v2159 = vadd.f32 0.0, %v2158
        %v2160 = vpop.f32.mrb[0].mxu0
        %2161 = vdwg.mxu0
        %v2162 = vadd.f32 %v1934, %v2036
        %v2163 = vadd.f32 %v1935, %v2039
        %v2164 = vadd.f32 %v1936, %v2044
        %v2165 = vadd.f32 %v1937, %v2047
        %v2166 = vadd.f32 %v1938, %v2052
        %v2167 = vadd.f32 %v1939, %v2055
        %v2168 = vadd.f32 %v1940, %v2060
        %v2169 = vadd.f32 %v1941, %v2063
        %v2170 = vadd.f32 %v1942, %v2068
        %v2171 = vadd.f32 %v1943, %v2071
        %v2172 = vadd.f32 %v1944, %v2076
        %v2173 = vadd.f32 %v1945, %v2079
        %v2174 = vadd.f32 %v1946, %v2084
        %v2175 = vadd.f32 %v1947, %v2087
        %v2176 = vadd.f32 %v1948, %v2092
        %v2177 = vadd.f32 %v1949, %v2095
        %v2178 = vadd.f32 %v1950, %v2100
        %v2179 = vadd.f32 %v1951, %v2103
        %v2180 = vadd.f32 %v1952, %v2108
        %v2181 = vadd.f32 %v1953, %v2111
        %v2182 = vadd.f32 %v1954, %v2116
        %v2183 = vadd.f32 %v1955, %v2119
        %v2184 = vadd.f32 %v1956, %v2124
        %v2185 = vadd.f32 %v1957, %v2127
        %v2186 = vadd.f32 %v1958, %v2132
        %v2187 = vadd.f32 %v1959, %v2135
        %v2188 = vadd.f32 %v1960, %v2140
        %v2189 = vadd.f32 %v1961, %v2143
        %v2190 = vadd.f32 %v1962, %v2148
        %v2191 = vadd.f32 %v1963, %v2151
        %v2192 = vadd.f32 %v1964, %v2156
        %v2193 = vadd.f32 %v1965, %v2159
        %v2195 = vrot.slane %v385, 5
        %v2196 = vrot.slane %v2195, 4
        %v2197 = vrot.slane %v386, 5
        %v2198 = vsel %vm1353, %v2196, %v2197
        %v2199 = vrot.slane %v2197, 4
        %v2200 = vrot.slane %v387, 5
        %v2201 = vsel %vm1353, %v2199, %v2200
        %s2202 = scalar_lea.vmem [#allocation5], 10
        %v2203 = vld [vmem:[%s2202] sm:$0x3]
        %v2204 = vunpack.c.l.b16 %v2198
        %v2205 = vunpack.c.l.b16 %v2201
        %v2206 = vpack.c.b16 %v2205, %v2204
        %v2208 = vsel %vm829, %v2206, 0
        %v2211 = vsel %vm878, %v2203, 0
        %2213 = vmatprep.subr.bf16.mxu0 0
        %2214 = vmatpush1.bf16.msra.mxu0 %v2211
        %2215 = vmatprep.subr.bf16.mxu0 0
        %2216 = vmatpush1.bf16.msra.mxu0 0
        %2217 = vmatprep.subr.bf16.mxu0 0
        %2218 = vmatpush1.bf16.msra.mxu0 0
        %2219 = vmatprep.subr.bf16.mxu0 0
        %2220 = vmatpush1.bf16.msra.mxu0 0
        %2221 = vmatprep.subr.bf16.mxu0 0
        %2222 = vmatpush1.bf16.msra.mxu0 0
        %2223 = vmatprep.subr.bf16.mxu0 0
        %2224 = vmatpush1.bf16.msra.mxu0 0
        %2225 = vmatprep.subr.bf16.mxu0 0
        %2226 = vmatpush1.bf16.msra.mxu0 0
        %2227 = vmatprep.subr.bf16.mxu0 0
        %2228 = vmatpush1.bf16.msra.mxu0 0
        %2229 = vmatprep.subr.bf16.mxu0 0
        %2230 = vmatpush1.bf16.msra.mxu0 0
        %2231 = vmatprep.subr.bf16.mxu0 0
        %2232 = vmatpush1.bf16.msra.mxu0 0
        %2233 = vmatprep.subr.bf16.mxu0 0
        %2234 = vmatpush1.bf16.msra.mxu0 0
        %2235 = vmatprep.subr.bf16.mxu0 0
        %2236 = vmatpush1.bf16.msra.mxu0 0
        %2237 = vmatprep.subr.bf16.mxu0 0
        %2238 = vmatpush1.bf16.msra.mxu0 0
        %2239 = vmatprep.subr.bf16.mxu0 0
        %2240 = vmatpush1.bf16.msra.mxu0 0
        %2241 = vmatprep.subr.bf16.mxu0 0
        %2242 = vmatpush1.bf16.msra.mxu0 0
        %2243 = vmatprep.subr.bf16.mxu0 0
        %2244 = vmatpush1.bf16.msra.mxu0 0
        %2245 = vmatprep.mubr.bf16.mxu0 0
        %2246 = vmatmul.mubr.bf16.gmra.mrb[0].mxu0 %v1520
        %v2247 = vpop.f32.mrb[0].mxu0
        %v2248 = vadd.f32 0.0, %v2247
        %v2249 = vpop.f32.mrb[0].mxu0
        %v2250 = vpop.f32.mrb[0].mxu0
        %v2251 = vadd.f32 0.0, %v2250
        %v2252 = vpop.f32.mrb[0].mxu0
        %2253 = vmatprep.mubr.bf16.mxu0 0
        %2254 = vmatmul.mubr.bf16.gmra.mrb[0].mxu0 %v1523
        %v2255 = vpop.f32.mrb[0].mxu0
        %v2256 = vadd.f32 0.0, %v2255
        %v2257 = vpop.f32.mrb[0].mxu0
        %v2258 = vpop.f32.mrb[0].mxu0
        %v2259 = vadd.f32 0.0, %v2258
        %v2260 = vpop.f32.mrb[0].mxu0
        %2261 = vmatprep.mubr.bf16.mxu0 0
        %2262 = vmatmul.mubr.bf16.gmra.mrb[0].mxu0 %v1526
        %v2263 = vpop.f32.mrb[0].mxu0
        %v2264 = vadd.f32 0.0, %v2263
        %v2265 = vpop.f32.mrb[0].mxu0
        %v2266 = vpop.f32.mrb[0].mxu0
        %v2267 = vadd.f32 0.0, %v2266
        %v2268 = vpop.f32.mrb[0].mxu0
        %2269 = vmatprep.mubr.bf16.mxu0 0
        %2270 = vmatmul.mubr.bf16.gmra.mrb[0].mxu0 %v1529
        %v2271 = vpop.f32.mrb[0].mxu0
        %v2272 = vadd.f32 0.0, %v2271
        %v2273 = vpop.f32.mrb[0].mxu0
        %v2274 = vpop.f32.mrb[0].mxu0
        %v2275 = vadd.f32 0.0, %v2274
        %v2276 = vpop.f32.mrb[0].mxu0
        %2277 = vmatprep.mubr.bf16.mxu0 0
        %2278 = vmatmul.mubr.bf16.gmra.mrb[0].mxu0 %v1532
        %v2279 = vpop.f32.mrb[0].mxu0
        %v2280 = vadd.f32 0.0, %v2279
        %v2281 = vpop.f32.mrb[0].mxu0
        %v2282 = vpop.f32.mrb[0].mxu0
        %v2283 = vadd.f32 0.0, %v2282
        %v2284 = vpop.f32.mrb[0].mxu0
        %2285 = vmatprep.mubr.bf16.mxu0 0
        %2286 = vmatmul.mubr.bf16.gmra.mrb[0].mxu0 %v1535
        %v2287 = vpop.f32.mrb[0].mxu0
        %v2288 = vadd.f32 0.0, %v2287
        %v2289 = vpop.f32.mrb[0].mxu0
        %v2290 = vpop.f32.mrb[0].mxu0
        %v2291 = vadd.f32 0.0, %v2290
        %v2292 = vpop.f32.mrb[0].mxu0
        %2293 = vmatprep.mubr.bf16.mxu0 0
        %2294 = vmatmul.mubr.bf16.gmra.mrb[0].mxu0 %v1538
        %v2295 = vpop.f32.mrb[0].mxu0
        %v2296 = vadd.f32 0.0, %v2295
        %v2297 = vpop.f32.mrb[0].mxu0
        %v2298 = vpop.f32.mrb[0].mxu0
        %v2299 = vadd.f32 0.0, %v2298
        %v2300 = vpop.f32.mrb[0].mxu0
        %2301 = vmatprep.mubr.bf16.mxu0 0
        %2302 = vmatmul.mubr.bf16.gmra.mrb[0].mxu0 %v1541
        %v2303 = vpop.f32.mrb[0].mxu0
        %v2304 = vadd.f32 0.0, %v2303
        %v2305 = vpop.f32.mrb[0].mxu0
        %v2306 = vpop.f32.mrb[0].mxu0
        %v2307 = vadd.f32 0.0, %v2306
        %v2308 = vpop.f32.mrb[0].mxu0
        %2309 = vmatprep.mubr.bf16.mxu0 0
        %2310 = vmatmul.mubr.bf16.gmra.mrb[0].mxu0 %v1544
        %v2311 = vpop.f32.mrb[0].mxu0
        %v2312 = vadd.f32 0.0, %v2311
        %v2313 = vpop.f32.mrb[0].mxu0
        %v2314 = vpop.f32.mrb[0].mxu0
        %v2315 = vadd.f32 0.0, %v2314
        %v2316 = vpop.f32.mrb[0].mxu0
        %2317 = vmatprep.mubr.bf16.mxu0 0
        %2318 = vmatmul.mubr.bf16.gmra.mrb[0].mxu0 %v1547
        %v2319 = vpop.f32.mrb[0].mxu0
        %v2320 = vadd.f32 0.0, %v2319
        %v2321 = vpop.f32.mrb[0].mxu0
        %v2322 = vpop.f32.mrb[0].mxu0
        %v2323 = vadd.f32 0.0, %v2322
        %v2324 = vpop.f32.mrb[0].mxu0
        %2325 = vmatprep.mubr.bf16.mxu0 0
        %2326 = vmatmul.mubr.bf16.gmra.mrb[0].mxu0 %v1550
        %v2327 = vpop.f32.mrb[0].mxu0
        %v2328 = vadd.f32 0.0, %v2327
        %v2329 = vpop.f32.mrb[0].mxu0
        %v2330 = vpop.f32.mrb[0].mxu0
        %v2331 = vadd.f32 0.0, %v2330
        %v2332 = vpop.f32.mrb[0].mxu0
        %2333 = vmatprep.mubr.bf16.mxu0 0
        %2334 = vmatmul.mubr.bf16.gmra.mrb[0].mxu0 %v1553
        %v2335 = vpop.f32.mrb[0].mxu0
        %v2336 = vadd.f32 0.0, %v2335
        %v2337 = vpop.f32.mrb[0].mxu0
        %v2338 = vpop.f32.mrb[0].mxu0
        %v2339 = vadd.f32 0.0, %v2338
        %v2340 = vpop.f32.mrb[0].mxu0
        %2341 = vmatprep.mubr.bf16.mxu0 0
        %2342 = vmatmul.mubr.bf16.gmra.mrb[0].mxu0 %v1556
        %v2343 = vpop.f32.mrb[0].mxu0
        %v2344 = vadd.f32 0.0, %v2343
        %v2345 = vpop.f32.mrb[0].mxu0
        %v2346 = vpop.f32.mrb[0].mxu0
        %v2347 = vadd.f32 0.0, %v2346
        %v2348 = vpop.f32.mrb[0].mxu0
        %2349 = vmatprep.mubr.bf16.mxu0 0
        %2350 = vmatmul.mubr.bf16.gmra.mrb[0].mxu0 %v1559
        %v2351 = vpop.f32.mrb[0].mxu0
        %v2352 = vadd.f32 0.0, %v2351
        %v2353 = vpop.f32.mrb[0].mxu0
        %v2354 = vpop.f32.mrb[0].mxu0
        %v2355 = vadd.f32 0.0, %v2354
        %v2356 = vpop.f32.mrb[0].mxu0
        %2357 = vmatprep.mubr.bf16.mxu0 0
        %2358 = vmatmul.mubr.bf16.gmra.mrb[0].mxu0 %v1562
        %v2359 = vpop.f32.mrb[0].mxu0
        %v2360 = vadd.f32 0.0, %v2359
        %v2361 = vpop.f32.mrb[0].mxu0
        %v2362 = vpop.f32.mrb[0].mxu0
        %v2363 = vadd.f32 0.0, %v2362
        %v2364 = vpop.f32.mrb[0].mxu0
        %2365 = vmatprep.mubr.bf16.mxu0 0
        %2366 = vmatmul.mubr.bf16.gmra.mrb[0].mxu0 %v2208
        %v2367 = vpop.f32.mrb[0].mxu0
        %v2368 = vadd.f32 0.0, %v2367
        %v2369 = vpop.f32.mrb[0].mxu0
        %v2370 = vpop.f32.mrb[0].mxu0
        %v2371 = vadd.f32 0.0, %v2370
        %v2372 = vpop.f32.mrb[0].mxu0
        %2373 = vdwg.mxu0
        %v2374 = vadd.f32 %v2162, %v2248
        %v2375 = vadd.f32 %v2163, %v2251
        %v2376 = vadd.f32 %v2164, %v2256
        %v2377 = vadd.f32 %v2165, %v2259
        %v2378 = vadd.f32 %v2166, %v2264
        %v2379 = vadd.f32 %v2167, %v2267
        %v2380 = vadd.f32 %v2168, %v2272
        %v2381 = vadd.f32 %v2169, %v2275
        %v2382 = vadd.f32 %v2170, %v2280
        %v2383 = vadd.f32 %v2171, %v2283
        %v2384 = vadd.f32 %v2172, %v2288
        %v2385 = vadd.f32 %v2173, %v2291
        %v2386 = vadd.f32 %v2174, %v2296
        %v2387 = vadd.f32 %v2175, %v2299
        %v2388 = vadd.f32 %v2176, %v2304
        %v2389 = vadd.f32 %v2177, %v2307
        %v2390 = vadd.f32 %v2178, %v2312
        %v2391 = vadd.f32 %v2179, %v2315
        %v2392 = vadd.f32 %v2180, %v2320
        %v2393 = vadd.f32 %v2181, %v2323
        %v2394 = vadd.f32 %v2182, %v2328
        %v2395 = vadd.f32 %v2183, %v2331
        %v2396 = vadd.f32 %v2184, %v2336
        %v2397 = vadd.f32 %v2185, %v2339
        %v2398 = vadd.f32 %v2186, %v2344
        %v2399 = vadd.f32 %v2187, %v2347
        %v2400 = vadd.f32 %v2188, %v2352
        %v2401 = vadd.f32 %v2189, %v2355
        %v2402 = vadd.f32 %v2190, %v2360
        %v2403 = vadd.f32 %v2191, %v2363
        %v2404 = vadd.f32 %v2192, %v2368
        %v2405 = vadd.f32 %v2193, %v2371
        %s2406 = scalar_lea.vmem [#allocation5], 12
        %v2407 = vld [vmem:[%s2406] sm:$0x3]
        %v2410 = vunpack.c.l.b16 %v388
        %v2411 = vunpack.c.l.b16 %v389
        %v2412 = vpack.c.b16 %v2411, %v2410
        %v2414 = vsel %vm829, %v2412, 0
        %v2417 = vsel %vm878, %v2407, 0
        %2419 = vmatprep.subr.bf16.mxu0 0
        %2420 = vmatpush1.bf16.msra.mxu0 %v2417
        %2421 = vmatprep.subr.bf16.mxu0 0
        %2422 = vmatpush1.bf16.msra.mxu0 0
        %2423 = vmatprep.subr.bf16.mxu0 0
        %2424 = vmatpush1.bf16.msra.mxu0 0
        %2425 = vmatprep.subr.bf16.mxu0 0
        %2426 = vmatpush1.bf16.msra.mxu0 0
        %2427 = vmatprep.subr.bf16.mxu0 0
        %2428 = vmatpush1.bf16.msra.mxu0 0
        %2429 = vmatprep.subr.bf16.mxu0 0
        %2430 = vmatpush1.bf16.msra.mxu0 0
        %2431 = vmatprep.subr.bf16.mxu0 0
        %2432 = vmatpush1.bf16.msra.mxu0 0
        %2433 = vmatprep.subr.bf16.mxu0 0
        %2434 = vmatpush1.bf16.msra.mxu0 0
        %2435 = vmatprep.subr.bf16.mxu0 0
        %2436 = vmatpush1.bf16.msra.mxu0 0
        %2437 = vmatprep.subr.bf16.mxu0 0
        %2438 = vmatpush1.bf16.msra.mxu0 0
        %2439 = vmatprep.subr.bf16.mxu0 0
        %2440 = vmatpush1.bf16.msra.mxu0 0
        %2441 = vmatprep.subr.bf16.mxu0 0
        %2442 = vmatpush1.bf16.msra.mxu0 0
        %2443 = vmatprep.subr.bf16.mxu0 0
        %2444 = vmatpush1.bf16.msra.mxu0 0
        %2445 = vmatprep.subr.bf16.mxu0 0
        %2446 = vmatpush1.bf16.msra.mxu0 0
        %2447 = vmatprep.subr.bf16.mxu0 0
        %2448 = vmatpush1.bf16.msra.mxu0 0
        %2449 = vmatprep.subr.bf16.mxu0 0
        %2450 = vmatpush1.bf16.msra.mxu0 0
        %2451 = vmatprep.mubr.bf16.mxu0 0
        %2452 = vmatmul.mubr.bf16.gmra.mrb[0].mxu0 %v1130
        %v2453 = vpop.f32.mrb[0].mxu0
        %v2454 = vadd.f32 0.0, %v2453
        %v2455 = vpop.f32.mrb[0].mxu0
        %v2456 = vpop.f32.mrb[0].mxu0
        %v2457 = vadd.f32 0.0, %v2456
        %v2458 = vpop.f32.mrb[0].mxu0
        %2459 = vmatprep.mubr.bf16.mxu0 0
        %2460 = vmatmul.mubr.bf16.gmra.mrb[0].mxu0 %v1133
        %v2461 = vpop.f32.mrb[0].mxu0
        %v2462 = vadd.f32 0.0, %v2461
        %v2463 = vpop.f32.mrb[0].mxu0
        %v2464 = vpop.f32.mrb[0].mxu0
        %v2465 = vadd.f32 0.0, %v2464
        %v2466 = vpop.f32.mrb[0].mxu0
        %2467 = vmatprep.mubr.bf16.mxu0 0
        %2468 = vmatmul.mubr.bf16.gmra.mrb[0].mxu0 %v1136
        %v2469 = vpop.f32.mrb[0].mxu0
        %v2470 = vadd.f32 0.0, %v2469
        %v2471 = vpop.f32.mrb[0].mxu0
        %v2472 = vpop.f32.mrb[0].mxu0
        %v2473 = vadd.f32 0.0, %v2472
        %v2474 = vpop.f32.mrb[0].mxu0
        %2475 = vmatprep.mubr.bf16.mxu0 0
        %2476 = vmatmul.mubr.bf16.gmra.mrb[0].mxu0 %v1139
        %v2477 = vpop.f32.mrb[0].mxu0
        %v2478 = vadd.f32 0.0, %v2477
        %v2479 = vpop.f32.mrb[0].mxu0
        %v2480 = vpop.f32.mrb[0].mxu0
        %v2481 = vadd.f32 0.0, %v2480
        %v2482 = vpop.f32.mrb[0].mxu0
        %2483 = vmatprep.mubr.bf16.mxu0 0
        %2484 = vmatmul.mubr.bf16.gmra.mrb[0].mxu0 %v1142
        %v2485 = vpop.f32.mrb[0].mxu0
        %v2486 = vadd.f32 0.0, %v2485
        %v2487 = vpop.f32.mrb[0].mxu0
        %v2488 = vpop.f32.mrb[0].mxu0
        %v2489 = vadd.f32 0.0, %v2488
        %v2490 = vpop.f32.mrb[0].mxu0
        %2491 = vmatprep.mubr.bf16.mxu0 0
        %2492 = vmatmul.mubr.bf16.gmra.mrb[0].mxu0 %v1145
        %v2493 = vpop.f32.mrb[0].mxu0
        %v2494 = vadd.f32 0.0, %v2493
        %v2495 = vpop.f32.mrb[0].mxu0
        %v2496 = vpop.f32.mrb[0].mxu0
        %v2497 = vadd.f32 0.0, %v2496
        %v2498 = vpop.f32.mrb[0].mxu0
        %2499 = vmatprep.mubr.bf16.mxu0 0
        %2500 = vmatmul.mubr.bf16.gmra.mrb[0].mxu0 %v1148
        %v2501 = vpop.f32.mrb[0].mxu0
        %v2502 = vadd.f32 0.0, %v2501
        %v2503 = vpop.f32.mrb[0].mxu0
        %v2504 = vpop.f32.mrb[0].mxu0
        %v2505 = vadd.f32 0.0, %v2504
        %v2506 = vpop.f32.mrb[0].mxu0
        %2507 = vmatprep.mubr.bf16.mxu0 0
        %2508 = vmatmul.mubr.bf16.gmra.mrb[0].mxu0 %v1151
        %v2509 = vpop.f32.mrb[0].mxu0
        %v2510 = vadd.f32 0.0, %v2509
        %v2511 = vpop.f32.mrb[0].mxu0
        %v2512 = vpop.f32.mrb[0].mxu0
        %v2513 = vadd.f32 0.0, %v2512
        %v2514 = vpop.f32.mrb[0].mxu0
        %2515 = vmatprep.mubr.bf16.mxu0 0
        %2516 = vmatmul.mubr.bf16.gmra.mrb[0].mxu0 %v1154
        %v2517 = vpop.f32.mrb[0].mxu0
        %v2518 = vadd.f32 0.0, %v2517
        %v2519 = vpop.f32.mrb[0].mxu0
        %v2520 = vpop.f32.mrb[0].mxu0
        %v2521 = vadd.f32 0.0, %v2520
        %v2522 = vpop.f32.mrb[0].mxu0
        %2523 = vmatprep.mubr.bf16.mxu0 0
        %2524 = vmatmul.mubr.bf16.gmra.mrb[0].mxu0 %v1157
        %v2525 = vpop.f32.mrb[0].mxu0
        %v2526 = vadd.f32 0.0, %v2525
        %v2527 = vpop.f32.mrb[0].mxu0
        %v2528 = vpop.f32.mrb[0].mxu0
        %v2529 = vadd.f32 0.0, %v2528
        %v2530 = vpop.f32.mrb[0].mxu0
        %2531 = vmatprep.mubr.bf16.mxu0 0
        %2532 = vmatmul.mubr.bf16.gmra.mrb[0].mxu0 %v1160
        %v2533 = vpop.f32.mrb[0].mxu0
        %v2534 = vadd.f32 0.0, %v2533
        %v2535 = vpop.f32.mrb[0].mxu0
        %v2536 = vpop.f32.mrb[0].mxu0
        %v2537 = vadd.f32 0.0, %v2536
        %v2538 = vpop.f32.mrb[0].mxu0
        %2539 = vmatprep.mubr.bf16.mxu0 0
        %2540 = vmatmul.mubr.bf16.gmra.mrb[0].mxu0 %v1163
        %v2541 = vpop.f32.mrb[0].mxu0
        %v2542 = vadd.f32 0.0, %v2541
        %v2543 = vpop.f32.mrb[0].mxu0
        %v2544 = vpop.f32.mrb[0].mxu0
        %v2545 = vadd.f32 0.0, %v2544
        %v2546 = vpop.f32.mrb[0].mxu0
        %2547 = vmatprep.mubr.bf16.mxu0 0
        %2548 = vmatmul.mubr.bf16.gmra.mrb[0].mxu0 %v1166
        %v2549 = vpop.f32.mrb[0].mxu0
        %v2550 = vadd.f32 0.0, %v2549
        %v2551 = vpop.f32.mrb[0].mxu0
        %v2552 = vpop.f32.mrb[0].mxu0
        %v2553 = vadd.f32 0.0, %v2552
        %v2554 = vpop.f32.mrb[0].mxu0
        %2555 = vmatprep.mubr.bf16.mxu0 0
        %2556 = vmatmul.mubr.bf16.gmra.mrb[0].mxu0 %v1169
        %v2557 = vpop.f32.mrb[0].mxu0
        %v2558 = vadd.f32 0.0, %v2557
        %v2559 = vpop.f32.mrb[0].mxu0
        %v2560 = vpop.f32.mrb[0].mxu0
        %v2561 = vadd.f32 0.0, %v2560
        %v2562 = vpop.f32.mrb[0].mxu0
        %2563 = vmatprep.mubr.bf16.mxu0 0
        %2564 = vmatmul.mubr.bf16.gmra.mrb[0].mxu0 %v1768
        %v2565 = vpop.f32.mrb[0].mxu0
        %v2566 = vadd.f32 0.0, %v2565
        %v2567 = vpop.f32.mrb[0].mxu0
        %v2568 = vpop.f32.mrb[0].mxu0
        %v2569 = vadd.f32 0.0, %v2568
        %v2570 = vpop.f32.mrb[0].mxu0
        %2571 = vmatprep.mubr.bf16.mxu0 0
        %2572 = vmatmul.mubr.bf16.gmra.mrb[0].mxu0 %v2414
        %v2573 = vpop.f32.mrb[0].mxu0
        %v2574 = vadd.f32 0.0, %v2573
        %v2575 = vpop.f32.mrb[0].mxu0
        %v2576 = vpop.f32.mrb[0].mxu0
        %v2577 = vadd.f32 0.0, %v2576
        %v2578 = vpop.f32.mrb[0].mxu0
        %2579 = vdwg.mxu0
        %v2580 = vadd.f32 %v2374, %v2454
        %v2581 = vadd.f32 %v2375, %v2457
        %v2582 = vadd.f32 %v2376, %v2462
        %v2583 = vadd.f32 %v2377, %v2465
        %v2584 = vadd.f32 %v2378, %v2470
        %v2585 = vadd.f32 %v2379, %v2473
        %v2586 = vadd.f32 %v2380, %v2478
        %v2587 = vadd.f32 %v2381, %v2481
        %v2588 = vadd.f32 %v2382, %v2486
        %v2589 = vadd.f32 %v2383, %v2489
        %v2590 = vadd.f32 %v2384, %v2494
        %v2591 = vadd.f32 %v2385, %v2497
        %v2592 = vadd.f32 %v2386, %v2502
        %v2593 = vadd.f32 %v2387, %v2505
        %v2594 = vadd.f32 %v2388, %v2510
        %v2595 = vadd.f32 %v2389, %v2513
        %v2596 = vadd.f32 %v2390, %v2518
        %v2597 = vadd.f32 %v2391, %v2521
        %v2598 = vadd.f32 %v2392, %v2526
        %v2599 = vadd.f32 %v2393, %v2529
        %v2600 = vadd.f32 %v2394, %v2534
        %v2601 = vadd.f32 %v2395, %v2537
        %v2602 = vadd.f32 %v2396, %v2542
        %v2603 = vadd.f32 %v2397, %v2545
        %v2604 = vadd.f32 %v2398, %v2550
        %v2605 = vadd.f32 %v2399, %v2553
        %v2606 = vadd.f32 %v2400, %v2558
        %v2607 = vadd.f32 %v2401, %v2561
        %v2608 = vadd.f32 %v2402, %v2566
        %v2609 = vadd.f32 %v2403, %v2569
        %v2610 = vadd.f32 %v2404, %v2574
        %v2611 = vadd.f32 %v2405, %v2577
        %v2613 = vshrl.u32 %v388, 16
        %v2615 = vrot.slane %v2613, 4
        %v2616 = vshll.u32 %v388, 16
        %v2618 = vrot.slane %v2616, 5
        %v2619 = vor.u32 %v2615, %v2618
        %v2620 = vrot.slane %v2619, 4
        %v2622 = vshll.u32 %v389, 16
        %v2624 = vrot.slane %v2622, 5
        %v2625 = vsel %vm394, %v2620, %v2624
        %v2626 = vshrl.u32 %v389, 16
        %v2628 = vrot.slane %v2626, 4
        %v2629 = vor.u32 %v2628, %v2624
        %v2630 = vrot.slane %v2629, 4
        %v2632 = vshll.u32 %v390, 16
        %v2634 = vrot.slane %v2632, 5
        %v2635 = vsel %vm394, %v2630, %v2634
        %s2636 = scalar_lea.vmem [#allocation5], 14
        %v2637 = vld [vmem:[%s2636] sm:$0x3]
        %v2638 = vunpack.c.l.b16 %v2625
        %v2639 = vunpack.c.l.b16 %v2635
        %v2640 = vpack.c.b16 %v2639, %v2638
        %v2642 = vsel %vm829, %v2640, 0
        %v2645 = vsel %vm878, %v2637, 0
        %2647 = vmatprep.subr.bf16.mxu0 0
        %2648 = vmatpush1.bf16.msra.mxu0 %v2645
        %2649 = vmatprep.subr.bf16.mxu0 0
        %2650 = vmatpush1.bf16.msra.mxu0 0
        %2651 = vmatprep.subr.bf16.mxu0 0
        %2652 = vmatpush1.bf16.msra.mxu0 0
        %2653 = vmatprep.subr.bf16.mxu0 0
        %2654 = vmatpush1.bf16.msra.mxu0 0
        %2655 = vmatprep.subr.bf16.mxu0 0
        %2656 = vmatpush1.bf16.msra.mxu0 0
        %2657 = vmatprep.subr.bf16.mxu0 0
        %2658 = vmatpush1.bf16.msra.mxu0 0
        %2659 = vmatprep.subr.bf16.mxu0 0
        %2660 = vmatpush1.bf16.msra.mxu0 0
        %2661 = vmatprep.subr.bf16.mxu0 0
        %2662 = vmatpush1.bf16.msra.mxu0 0
        %2663 = vmatprep.subr.bf16.mxu0 0
        %2664 = vmatpush1.bf16.msra.mxu0 0
        %2665 = vmatprep.subr.bf16.mxu0 0
        %2666 = vmatpush1.bf16.msra.mxu0 0
        %2667 = vmatprep.subr.bf16.mxu0 0
        %2668 = vmatpush1.bf16.msra.mxu0 0
        %2669 = vmatprep.subr.bf16.mxu0 0
        %2670 = vmatpush1.bf16.msra.mxu0 0
        %2671 = vmatprep.subr.bf16.mxu0 0
        %2672 = vmatpush1.bf16.msra.mxu0 0
        %2673 = vmatprep.subr.bf16.mxu0 0
        %2674 = vmatpush1.bf16.msra.mxu0 0
        %2675 = vmatprep.subr.bf16.mxu0 0
        %2676 = vmatpush1.bf16.msra.mxu0 0
        %2677 = vmatprep.subr.bf16.mxu0 0
        %2678 = vmatpush1.bf16.msra.mxu0 0
        %2679 = vmatprep.mubr.bf16.mxu0 0
        %2680 = vmatmul.mubr.bf16.gmra.mrb[0].mxu0 %v837
        %v2681 = vpop.f32.mrb[0].mxu0
        %v2682 = vadd.f32 0.0, %v2681
        %v2683 = vpop.f32.mrb[0].mxu0
        %v2684 = vpop.f32.mrb[0].mxu0
        %v2685 = vadd.f32 0.0, %v2684
        %v2686 = vpop.f32.mrb[0].mxu0
        %2687 = vmatprep.mubr.bf16.mxu0 0
        %2688 = vmatmul.mubr.bf16.gmra.mrb[0].mxu0 %v840
        %v2689 = vpop.f32.mrb[0].mxu0
        %v2690 = vadd.f32 0.0, %v2689
        %v2691 = vpop.f32.mrb[0].mxu0
        %v2692 = vpop.f32.mrb[0].mxu0
        %v2693 = vadd.f32 0.0, %v2692
        %v2694 = vpop.f32.mrb[0].mxu0
        %2695 = vmatprep.mubr.bf16.mxu0 0
        %2696 = vmatmul.mubr.bf16.gmra.mrb[0].mxu0 %v843
        %v2697 = vpop.f32.mrb[0].mxu0
        %v2698 = vadd.f32 0.0, %v2697
        %v2699 = vpop.f32.mrb[0].mxu0
        %v2700 = vpop.f32.mrb[0].mxu0
        %v2701 = vadd.f32 0.0, %v2700
        %v2702 = vpop.f32.mrb[0].mxu0
        %2703 = vmatprep.mubr.bf16.mxu0 0
        %2704 = vmatmul.mubr.bf16.gmra.mrb[0].mxu0 %v846
        %v2705 = vpop.f32.mrb[0].mxu0
        %v2706 = vadd.f32 0.0, %v2705
        %v2707 = vpop.f32.mrb[0].mxu0
        %v2708 = vpop.f32.mrb[0].mxu0
        %v2709 = vadd.f32 0.0, %v2708
        %v2710 = vpop.f32.mrb[0].mxu0
        %2711 = vmatprep.mubr.bf16.mxu0 0
        %2712 = vmatmul.mubr.bf16.gmra.mrb[0].mxu0 %v849
        %v2713 = vpop.f32.mrb[0].mxu0
        %v2714 = vadd.f32 0.0, %v2713
        %v2715 = vpop.f32.mrb[0].mxu0
        %v2716 = vpop.f32.mrb[0].mxu0
        %v2717 = vadd.f32 0.0, %v2716
        %v2718 = vpop.f32.mrb[0].mxu0
        %2719 = vmatprep.mubr.bf16.mxu0 0
        %2720 = vmatmul.mubr.bf16.gmra.mrb[0].mxu0 %v852
        %v2721 = vpop.f32.mrb[0].mxu0
        %v2722 = vadd.f32 0.0, %v2721
        %v2723 = vpop.f32.mrb[0].mxu0
        %v2724 = vpop.f32.mrb[0].mxu0
        %v2725 = vadd.f32 0.0, %v2724
        %v2726 = vpop.f32.mrb[0].mxu0
        %2727 = vmatprep.mubr.bf16.mxu0 0
        %2728 = vmatmul.mubr.bf16.gmra.mrb[0].mxu0 %v855
        %v2729 = vpop.f32.mrb[0].mxu0
        %v2730 = vadd.f32 0.0, %v2729
        %v2731 = vpop.f32.mrb[0].mxu0
        %v2732 = vpop.f32.mrb[0].mxu0
        %v2733 = vadd.f32 0.0, %v2732
        %v2734 = vpop.f32.mrb[0].mxu0
        %2735 = vmatprep.mubr.bf16.mxu0 0
        %2736 = vmatmul.mubr.bf16.gmra.mrb[0].mxu0 %v858
        %v2737 = vpop.f32.mrb[0].mxu0
        %v2738 = vadd.f32 0.0, %v2737
        %v2739 = vpop.f32.mrb[0].mxu0
        %v2740 = vpop.f32.mrb[0].mxu0
        %v2741 = vadd.f32 0.0, %v2740
        %v2742 = vpop.f32.mrb[0].mxu0
        %2743 = vmatprep.mubr.bf16.mxu0 0
        %2744 = vmatmul.mubr.bf16.gmra.mrb[0].mxu0 %v861
        %v2745 = vpop.f32.mrb[0].mxu0
        %v2746 = vadd.f32 0.0, %v2745
        %v2747 = vpop.f32.mrb[0].mxu0
        %v2748 = vpop.f32.mrb[0].mxu0
        %v2749 = vadd.f32 0.0, %v2748
        %v2750 = vpop.f32.mrb[0].mxu0
        %2751 = vmatprep.mubr.bf16.mxu0 0
        %2752 = vmatmul.mubr.bf16.gmra.mrb[0].mxu0 %v864
        %v2753 = vpop.f32.mrb[0].mxu0
        %v2754 = vadd.f32 0.0, %v2753
        %v2755 = vpop.f32.mrb[0].mxu0
        %v2756 = vpop.f32.mrb[0].mxu0
        %v2757 = vadd.f32 0.0, %v2756
        %v2758 = vpop.f32.mrb[0].mxu0
        %2759 = vmatprep.mubr.bf16.mxu0 0
        %2760 = vmatmul.mubr.bf16.gmra.mrb[0].mxu0 %v867
        %v2761 = vpop.f32.mrb[0].mxu0
        %v2762 = vadd.f32 0.0, %v2761
        %v2763 = vpop.f32.mrb[0].mxu0
        %v2764 = vpop.f32.mrb[0].mxu0
        %v2765 = vadd.f32 0.0, %v2764
        %v2766 = vpop.f32.mrb[0].mxu0
        %2767 = vmatprep.mubr.bf16.mxu0 0
        %2768 = vmatmul.mubr.bf16.gmra.mrb[0].mxu0 %v870
        %v2769 = vpop.f32.mrb[0].mxu0
        %v2770 = vadd.f32 0.0, %v2769
        %v2771 = vpop.f32.mrb[0].mxu0
        %v2772 = vpop.f32.mrb[0].mxu0
        %v2773 = vadd.f32 0.0, %v2772
        %v2774 = vpop.f32.mrb[0].mxu0
        %2775 = vmatprep.mubr.bf16.mxu0 0
        %2776 = vmatmul.mubr.bf16.gmra.mrb[0].mxu0 %v873
        %v2777 = vpop.f32.mrb[0].mxu0
        %v2778 = vadd.f32 0.0, %v2777
        %v2779 = vpop.f32.mrb[0].mxu0
        %v2780 = vpop.f32.mrb[0].mxu0
        %v2781 = vadd.f32 0.0, %v2780
        %v2782 = vpop.f32.mrb[0].mxu0
        %2783 = vmatprep.mubr.bf16.mxu0 0
        %2784 = vmatmul.mubr.bf16.gmra.mrb[0].mxu0 %v876
        %v2785 = vpop.f32.mrb[0].mxu0
        %v2786 = vadd.f32 0.0, %v2785
        %v2787 = vpop.f32.mrb[0].mxu0
        %v2788 = vpop.f32.mrb[0].mxu0
        %v2789 = vadd.f32 0.0, %v2788
        %v2790 = vpop.f32.mrb[0].mxu0
        %2791 = vmatprep.mubr.bf16.mxu0 0
        %2792 = vmatmul.mubr.bf16.gmra.mrb[0].mxu0 %v1996
        %v2793 = vpop.f32.mrb[0].mxu0
        %v2794 = vadd.f32 0.0, %v2793
        %v2795 = vpop.f32.mrb[0].mxu0
        %v2796 = vpop.f32.mrb[0].mxu0
        %v2797 = vadd.f32 0.0, %v2796
        %v2798 = vpop.f32.mrb[0].mxu0
        %2799 = vmatprep.mubr.bf16.mxu0 0
        %2800 = vmatmul.mubr.bf16.gmra.mrb[0].mxu0 %v2642
        %v2801 = vpop.f32.mrb[0].mxu0
        %v2802 = vadd.f32 0.0, %v2801
        %v2803 = vpop.f32.mrb[0].mxu0
        %v2804 = vpop.f32.mrb[0].mxu0
        %v2805 = vadd.f32 0.0, %v2804
        %v2806 = vpop.f32.mrb[0].mxu0
        %2807 = vdwg.mxu0
        %v2808 = vadd.f32 %v2580, %v2682
        %v2809 = vadd.f32 %v2581, %v2685
        %v2810 = vadd.f32 %v2582, %v2690
        %v2811 = vadd.f32 %v2583, %v2693
        %v2812 = vadd.f32 %v2584, %v2698
        %v2813 = vadd.f32 %v2585, %v2701
        %v2814 = vadd.f32 %v2586, %v2706
        %v2815 = vadd.f32 %v2587, %v2709
        %v2816 = vadd.f32 %v2588, %v2714
        %v2817 = vadd.f32 %v2589, %v2717
        %v2818 = vadd.f32 %v2590, %v2722
        %v2819 = vadd.f32 %v2591, %v2725
        %v2820 = vadd.f32 %v2592, %v2730
        %v2821 = vadd.f32 %v2593, %v2733
        %v2822 = vadd.f32 %v2594, %v2738
        %v2823 = vadd.f32 %v2595, %v2741
        %v2824 = vadd.f32 %v2596, %v2746
        %v2825 = vadd.f32 %v2597, %v2749
        %v2826 = vadd.f32 %v2598, %v2754
        %v2827 = vadd.f32 %v2599, %v2757
        %v2828 = vadd.f32 %v2600, %v2762
        %v2829 = vadd.f32 %v2601, %v2765
        %v2830 = vadd.f32 %v2602, %v2770
        %v2831 = vadd.f32 %v2603, %v2773
        %v2832 = vadd.f32 %v2604, %v2778
        %v2833 = vadd.f32 %v2605, %v2781
        %v2834 = vadd.f32 %v2606, %v2786
        %v2835 = vadd.f32 %v2607, %v2789
        %v2836 = vadd.f32 %v2608, %v2794
        %v2837 = vadd.f32 %v2609, %v2797
        %v2838 = vadd.f32 %v2610, %v2802
        %v2839 = vadd.f32 %v2611, %v2805
        %v2841 = vrot.slane %v388, 5
        %v2842 = vrot.slane %v2841, 4
        %v2843 = vrot.slane %v389, 5
        %v2844 = vsel %vm1353, %v2842, %v2843
        %v2845 = vrot.slane %v2843, 4
        %v2846 = vrot.slane %v390, 5
        %v2847 = vsel %vm1353, %v2845, %v2846
        %s2848 = scalar_lea.vmem [#allocation5], 16
        %v2849 = vld [vmem:[%s2848] sm:$0x3]
        %v2850 = vunpack.c.l.b16 %v2844
        %v2851 = vunpack.c.l.b16 %v2847
        %v2852 = vpack.c.b16 %v2851, %v2850
        %v2854 = vsel %vm829, %v2852, 0
        %v2857 = vsel %vm878, %v2849, 0
        %2859 = vmatprep.subr.bf16.mxu0 0
        %2860 = vmatpush1.bf16.msra.mxu0 %v2857
        %2861 = vmatprep.subr.bf16.mxu0 0
        %2862 = vmatpush1.bf16.msra.mxu0 0
        %2863 = vmatprep.subr.bf16.mxu0 0
        %2864 = vmatpush1.bf16.msra.mxu0 0
        %2865 = vmatprep.subr.bf16.mxu0 0
        %2866 = vmatpush1.bf16.msra.mxu0 0
        %2867 = vmatprep.subr.bf16.mxu0 0
        %2868 = vmatpush1.bf16.msra.mxu0 0
        %2869 = vmatprep.subr.bf16.mxu0 0
        %2870 = vmatpush1.bf16.msra.mxu0 0
        %2871 = vmatprep.subr.bf16.mxu0 0
        %2872 = vmatpush1.bf16.msra.mxu0 0
        %2873 = vmatprep.subr.bf16.mxu0 0
        %2874 = vmatpush1.bf16.msra.mxu0 0
        %2875 = vmatprep.subr.bf16.mxu0 0
        %2876 = vmatpush1.bf16.msra.mxu0 0
        %2877 = vmatprep.subr.bf16.mxu0 0
        %2878 = vmatpush1.bf16.msra.mxu0 0
        %2879 = vmatprep.subr.bf16.mxu0 0
        %2880 = vmatpush1.bf16.msra.mxu0 0
        %2881 = vmatprep.subr.bf16.mxu0 0
        %2882 = vmatpush1.bf16.msra.mxu0 0
        %2883 = vmatprep.subr.bf16.mxu0 0
        %2884 = vmatpush1.bf16.msra.mxu0 0
        %2885 = vmatprep.subr.bf16.mxu0 0
        %2886 = vmatpush1.bf16.msra.mxu0 0
        %2887 = vmatprep.subr.bf16.mxu0 0
        %2888 = vmatpush1.bf16.msra.mxu0 0
        %2889 = vmatprep.subr.bf16.mxu0 0
        %2890 = vmatpush1.bf16.msra.mxu0 0
        %2891 = vmatprep.mubr.bf16.mxu0 0
        %2892 = vmatmul.mubr.bf16.gmra.mrb[0].mxu0 %v1523
        %v2893 = vpop.f32.mrb[0].mxu0
        %v2894 = vadd.f32 0.0, %v2893
        %v2895 = vpop.f32.mrb[0].mxu0
        %v2896 = vpop.f32.mrb[0].mxu0
        %v2897 = vadd.f32 0.0, %v2896
        %v2898 = vpop.f32.mrb[0].mxu0
        %2899 = vmatprep.mubr.bf16.mxu0 0
        %2900 = vmatmul.mubr.bf16.gmra.mrb[0].mxu0 %v1526
        %v2901 = vpop.f32.mrb[0].mxu0
        %v2902 = vadd.f32 0.0, %v2901
        %v2903 = vpop.f32.mrb[0].mxu0
        %v2904 = vpop.f32.mrb[0].mxu0
        %v2905 = vadd.f32 0.0, %v2904
        %v2906 = vpop.f32.mrb[0].mxu0
        %2907 = vmatprep.mubr.bf16.mxu0 0
        %2908 = vmatmul.mubr.bf16.gmra.mrb[0].mxu0 %v1529
        %v2909 = vpop.f32.mrb[0].mxu0
        %v2910 = vadd.f32 0.0, %v2909
        %v2911 = vpop.f32.mrb[0].mxu0
        %v2912 = vpop.f32.mrb[0].mxu0
        %v2913 = vadd.f32 0.0, %v2912
        %v2914 = vpop.f32.mrb[0].mxu0
        %2915 = vmatprep.mubr.bf16.mxu0 0
        %2916 = vmatmul.mubr.bf16.gmra.mrb[0].mxu0 %v1532
        %v2917 = vpop.f32.mrb[0].mxu0
        %v2918 = vadd.f32 0.0, %v2917
        %v2919 = vpop.f32.mrb[0].mxu0
        %v2920 = vpop.f32.mrb[0].mxu0
        %v2921 = vadd.f32 0.0, %v2920
        %v2922 = vpop.f32.mrb[0].mxu0
        %2923 = vmatprep.mubr.bf16.mxu0 0
        %2924 = vmatmul.mubr.bf16.gmra.mrb[0].mxu0 %v1535
        %v2925 = vpop.f32.mrb[0].mxu0
        %v2926 = vadd.f32 0.0, %v2925
        %v2927 = vpop.f32.mrb[0].mxu0
        %v2928 = vpop.f32.mrb[0].mxu0
        %v2929 = vadd.f32 0.0, %v2928
        %v2930 = vpop.f32.mrb[0].mxu0
        %2931 = vmatprep.mubr.bf16.mxu0 0
        %2932 = vmatmul.mubr.bf16.gmra.mrb[0].mxu0 %v1538
        %v2933 = vpop.f32.mrb[0].mxu0
        %v2934 = vadd.f32 0.0, %v2933
        %v2935 = vpop.f32.mrb[0].mxu0
        %v2936 = vpop.f32.mrb[0].mxu0
        %v2937 = vadd.f32 0.0, %v2936
        %v2938 = vpop.f32.mrb[0].mxu0
        %2939 = vmatprep.mubr.bf16.mxu0 0
        %2940 = vmatmul.mubr.bf16.gmra.mrb[0].mxu0 %v1541
        %v2941 = vpop.f32.mrb[0].mxu0
        %v2942 = vadd.f32 0.0, %v2941
        %v2943 = vpop.f32.mrb[0].mxu0
        %v2944 = vpop.f32.mrb[0].mxu0
        %v2945 = vadd.f32 0.0, %v2944
        %v2946 = vpop.f32.mrb[0].mxu0
        %2947 = vmatprep.mubr.bf16.mxu0 0
        %2948 = vmatmul.mubr.bf16.gmra.mrb[0].mxu0 %v1544
        %v2949 = vpop.f32.mrb[0].mxu0
        %v2950 = vadd.f32 0.0, %v2949
        %v2951 = vpop.f32.mrb[0].mxu0
        %v2952 = vpop.f32.mrb[0].mxu0
        %v2953 = vadd.f32 0.0, %v2952
        %v2954 = vpop.f32.mrb[0].mxu0
        %2955 = vmatprep.mubr.bf16.mxu0 0
        %2956 = vmatmul.mubr.bf16.gmra.mrb[0].mxu0 %v1547
        %v2957 = vpop.f32.mrb[0].mxu0
        %v2958 = vadd.f32 0.0, %v2957
        %v2959 = vpop.f32.mrb[0].mxu0
        %v2960 = vpop.f32.mrb[0].mxu0
        %v2961 = vadd.f32 0.0, %v2960
        %v2962 = vpop.f32.mrb[0].mxu0
        %2963 = vmatprep.mubr.bf16.mxu0 0
        %2964 = vmatmul.mubr.bf16.gmra.mrb[0].mxu0 %v1550
        %v2965 = vpop.f32.mrb[0].mxu0
        %v2966 = vadd.f32 0.0, %v2965
        %v2967 = vpop.f32.mrb[0].mxu0
        %v2968 = vpop.f32.mrb[0].mxu0
        %v2969 = vadd.f32 0.0, %v2968
        %v2970 = vpop.f32.mrb[0].mxu0
        %2971 = vmatprep.mubr.bf16.mxu0 0
        %2972 = vmatmul.mubr.bf16.gmra.mrb[0].mxu0 %v1553
        %v2973 = vpop.f32.mrb[0].mxu0
        %v2974 = vadd.f32 0.0, %v2973
        %v2975 = vpop.f32.mrb[0].mxu0
        %v2976 = vpop.f32.mrb[0].mxu0
        %v2977 = vadd.f32 0.0, %v2976
        %v2978 = vpop.f32.mrb[0].mxu0
        %2979 = vmatprep.mubr.bf16.mxu0 0
        %2980 = vmatmul.mubr.bf16.gmra.mrb[0].mxu0 %v1556
        %v2981 = vpop.f32.mrb[0].mxu0
        %v2982 = vadd.f32 0.0, %v2981
        %v2983 = vpop.f32.mrb[0].mxu0
        %v2984 = vpop.f32.mrb[0].mxu0
        %v2985 = vadd.f32 0.0, %v2984
        %v2986 = vpop.f32.mrb[0].mxu0
        %2987 = vmatprep.mubr.bf16.mxu0 0
        %2988 = vmatmul.mubr.bf16.gmra.mrb[0].mxu0 %v1559
        %v2989 = vpop.f32.mrb[0].mxu0
        %v2990 = vadd.f32 0.0, %v2989
        %v2991 = vpop.f32.mrb[0].mxu0
        %v2992 = vpop.f32.mrb[0].mxu0
        %v2993 = vadd.f32 0.0, %v2992
        %v2994 = vpop.f32.mrb[0].mxu0
        %2995 = vmatprep.mubr.bf16.mxu0 0
        %2996 = vmatmul.mubr.bf16.gmra.mrb[0].mxu0 %v1562
        %v2997 = vpop.f32.mrb[0].mxu0
        %v2998 = vadd.f32 0.0, %v2997
        %v2999 = vpop.f32.mrb[0].mxu0
        %v3000 = vpop.f32.mrb[0].mxu0
        %v3001 = vadd.f32 0.0, %v3000
        %v3002 = vpop.f32.mrb[0].mxu0
        %3003 = vmatprep.mubr.bf16.mxu0 0
        %3004 = vmatmul.mubr.bf16.gmra.mrb[0].mxu0 %v2208
        %v3005 = vpop.f32.mrb[0].mxu0
        %v3006 = vadd.f32 0.0, %v3005
        %v3007 = vpop.f32.mrb[0].mxu0
        %v3008 = vpop.f32.mrb[0].mxu0
        %v3009 = vadd.f32 0.0, %v3008
        %v3010 = vpop.f32.mrb[0].mxu0
        %3011 = vmatprep.mubr.bf16.mxu0 0
        %3012 = vmatmul.mubr.bf16.gmra.mrb[0].mxu0 %v2854
        %v3013 = vpop.f32.mrb[0].mxu0
        %v3014 = vadd.f32 0.0, %v3013
        %v3015 = vpop.f32.mrb[0].mxu0
        %v3016 = vpop.f32.mrb[0].mxu0
        %v3017 = vadd.f32 0.0, %v3016
        %v3018 = vpop.f32.mrb[0].mxu0
        %3019 = vdwg.mxu0
        %v3020 = vadd.f32 %v2808, %v2894
        %v3021 = vadd.f32 %v2809, %v2897
        %v3022 = vadd.f32 %v2810, %v2902
        %v3023 = vadd.f32 %v2811, %v2905
        %v3024 = vadd.f32 %v2812, %v2910
        %v3025 = vadd.f32 %v2813, %v2913
        %v3026 = vadd.f32 %v2814, %v2918
        %v3027 = vadd.f32 %v2815, %v2921
        %v3028 = vadd.f32 %v2816, %v2926
        %v3029 = vadd.f32 %v2817, %v2929
        %v3030 = vadd.f32 %v2818, %v2934
        %v3031 = vadd.f32 %v2819, %v2937
        %v3032 = vadd.f32 %v2820, %v2942
        %v3033 = vadd.f32 %v2821, %v2945
        %v3034 = vadd.f32 %v2822, %v2950
        %v3035 = vadd.f32 %v2823, %v2953
        %v3036 = vadd.f32 %v2824, %v2958
        %v3037 = vadd.f32 %v2825, %v2961
        %v3038 = vadd.f32 %v2826, %v2966
        %v3039 = vadd.f32 %v2827, %v2969
        %v3040 = vadd.f32 %v2828, %v2974
        %v3041 = vadd.f32 %v2829, %v2977
        %v3042 = vadd.f32 %v2830, %v2982
        %v3043 = vadd.f32 %v2831, %v2985
        %v3044 = vadd.f32 %v2832, %v2990
        %v3045 = vadd.f32 %v2833, %v2993
        %v3046 = vadd.f32 %v2834, %v2998
        %v3047 = vadd.f32 %v2835, %v3001
        %v3048 = vadd.f32 %v2836, %v3006
        %v3049 = vadd.f32 %v2837, %v3009
        %v3050 = vadd.f32 %v2838, %v3014
        %v3051 = vadd.f32 %v2839, %v3017
        %v3052 = vld [vmem:[#allocation7] sm:$0x1]
        %v3054 = vlaneseq
        %v3055 = vshrl.u32 %v3054, 7
        %v3056 = vsub.s32 0, %v3055
        %v3057 = vrot.slane %v3052, %v3056
        %v3059 = vadd.f32 %v3020, %v3057
        %v3060 = vadd.f32 %v3021, %v3057
        %v3061 = vadd.f32 %v3022, %v3057
        %v3062 = vadd.f32 %v3023, %v3057
        %v3063 = vadd.f32 %v3024, %v3057
        %v3064 = vadd.f32 %v3025, %v3057
        %v3065 = vadd.f32 %v3026, %v3057
        %v3066 = vadd.f32 %v3027, %v3057
        %v3067 = vadd.f32 %v3028, %v3057
        %v3068 = vadd.f32 %v3029, %v3057
        %v3069 = vadd.f32 %v3030, %v3057
        %v3070 = vadd.f32 %v3031, %v3057
        %v3071 = vadd.f32 %v3032, %v3057
        %v3072 = vadd.f32 %v3033, %v3057
        %v3073 = vadd.f32 %v3034, %v3057
        %v3074 = vadd.f32 %v3035, %v3057
        %v3075 = vadd.f32 %v3036, %v3057
        %v3076 = vadd.f32 %v3037, %v3057
        %v3077 = vadd.f32 %v3038, %v3057
        %v3078 = vadd.f32 %v3039, %v3057
        %v3079 = vadd.f32 %v3040, %v3057
        %v3080 = vadd.f32 %v3041, %v3057
        %v3081 = vadd.f32 %v3042, %v3057
        %v3082 = vadd.f32 %v3043, %v3057
        %v3083 = vadd.f32 %v3044, %v3057
        %v3084 = vadd.f32 %v3045, %v3057
        %v3085 = vadd.f32 %v3046, %v3057
        %v3086 = vadd.f32 %v3047, %v3057
        %v3087 = vadd.f32 %v3048, %v3057
        %v3088 = vadd.f32 %v3049, %v3057
        %v3089 = vadd.f32 %v3050, %v3057
        %v3090 = vadd.f32 %v3051, %v3057
        %v3091 = vmax.f32 %v3059, 0.0
        %v3092 = vmax.f32 %v3060, 0.0
        %v3093 = vmax.f32 %v3061, 0.0
        %v3094 = vmax.f32 %v3062, 0.0
        %v3095 = vmax.f32 %v3063, 0.0
        %v3096 = vmax.f32 %v3064, 0.0
        %v3097 = vmax.f32 %v3065, 0.0
        %v3098 = vmax.f32 %v3066, 0.0
        %v3099 = vmax.f32 %v3067, 0.0
        %v3100 = vmax.f32 %v3068, 0.0
        %v3101 = vmax.f32 %v3069, 0.0
        %v3102 = vmax.f32 %v3070, 0.0
        %v3103 = vmax.f32 %v3071, 0.0
        %v3104 = vmax.f32 %v3072, 0.0
        %v3105 = vmax.f32 %v3073, 0.0
        %v3106 = vmax.f32 %v3074, 0.0
        %v3107 = vmax.f32 %v3075, 0.0
        %v3108 = vmax.f32 %v3076, 0.0
        %v3109 = vmax.f32 %v3077, 0.0
        %v3110 = vmax.f32 %v3078, 0.0
        %v3111 = vmax.f32 %v3079, 0.0
        %v3112 = vmax.f32 %v3080, 0.0
        %v3113 = vmax.f32 %v3081, 0.0
        %v3114 = vmax.f32 %v3082, 0.0
        %v3115 = vmax.f32 %v3083, 0.0
        %v3116 = vmax.f32 %v3084, 0.0
        %v3117 = vmax.f32 %v3085, 0.0
        %v3118 = vmax.f32 %v3086, 0.0
        %v3119 = vmax.f32 %v3087, 0.0
        %v3120 = vmax.f32 %v3088, 0.0
        %v3121 = vmax.f32 %v3089, 0.0
        %v3122 = vmax.f32 %v3090, 0.0
        %v3123 = vpack.c.bf16 %v3092, %v3091
        %v3124 = vpack.c.bf16 %v3094, %v3093
        %v3125 = vpack.c.bf16 %v3096, %v3095
        %v3126 = vpack.c.bf16 %v3098, %v3097
        %v3127 = vpack.c.bf16 %v3100, %v3099
        %v3128 = vpack.c.bf16 %v3102, %v3101
        %v3129 = vpack.c.bf16 %v3104, %v3103
        %v3130 = vpack.c.bf16 %v3106, %v3105
        %v3131 = vpack.c.bf16 %v3108, %v3107
        %v3132 = vpack.c.bf16 %v3110, %v3109
        %v3133 = vpack.c.bf16 %v3112, %v3111
        %v3134 = vpack.c.bf16 %v3114, %v3113
        %v3135 = vpack.c.bf16 %v3116, %v3115
        %v3136 = vpack.c.bf16 %v3118, %v3117
        %v3137 = vpack.c.bf16 %v3120, %v3119
        %v3138 = vpack.c.bf16 %v3122, %v3121
        %v3139 = vld [vmem:[#allocation8] sm:$0xf]
        %v3140 = vld [vmem:[#allocation8 + $0x4] sm:$0xf]
        %v3141 = vld [vmem:[#allocation8 + $0x8] sm:$0xf]
        %v3142 = vld [vmem:[#allocation8 + $0xc] sm:$0xf]
        %v3143 = vld [vmem:[#allocation10] sm:$0x1]
        %v3145 = vlaneseq
        %v3146 = vshrl.u32 %v3145, 7
        %v3147 = vsub.s32 0, %v3146
        %v3148 = vrot.slane %v3143, %v3147
        %v3154 = vunpack.c.l.b16 %v3139
        %v3155 = vunpack.c.l.b16 %v3140
        %v3156 = vunpack.c.l.b16 %v3141
        %v3157 = vunpack.c.l.b16 %v3142
        %v3158 = vpack.c.b16 %v3155, %v3154
        %v3159 = vpack.c.b16 %v3157, %v3156
        %vm3162 = vcmask 261120
        %v3164 = vsel %vm3162, %v3123, 0
        %v3167 = vsel %vm3162, %v3124, 0
        %v3170 = vsel %vm3162, %v3125, 0
        %v3173 = vsel %vm3162, %v3126, 0
        %v3176 = vsel %vm3162, %v3127, 0
        %v3179 = vsel %vm3162, %v3128, 0
        %v3182 = vsel %vm3162, %v3129, 0
        %v3185 = vsel %vm3162, %v3130, 0
        %v3188 = vsel %vm3162, %v3131, 0
        %v3191 = vsel %vm3162, %v3132, 0
        %v3194 = vsel %vm3162, %v3133, 0
        %v3197 = vsel %vm3162, %v3134, 0
        %v3200 = vsel %vm3162, %v3135, 0
        %v3203 = vsel %vm3162, %v3136, 0
        %v3206 = vsel %vm3162, %v3137, 0
        %v3209 = vsel %vm3162, %v3138, 0
        %3211 = vmatprep.subr.bf16.mxu0 0
        %3212 = vmatpush1.bf16.msra.mxu0 %v3158
        %3213 = vmatprep.subr.bf16.mxu0 0
        %3214 = vmatpush1.bf16.msra.mxu0 %v3159
        %3215 = vmatprep.subr.bf16.mxu0 0
        %3216 = vmatpush1.bf16.msra.mxu0 0
        %3217 = vmatprep.subr.bf16.mxu0 0
        %3218 = vmatpush1.bf16.msra.mxu0 0
        %3219 = vmatprep.subr.bf16.mxu0 0
        %3220 = vmatpush1.bf16.msra.mxu0 0
        %3221 = vmatprep.subr.bf16.mxu0 0
        %3222 = vmatpush1.bf16.msra.mxu0 0
        %3223 = vmatprep.subr.bf16.mxu0 0
        %3224 = vmatpush1.bf16.msra.mxu0 0
        %3225 = vmatprep.subr.bf16.mxu0 0
        %3226 = vmatpush1.bf16.msra.mxu0 0
        %3227 = vmatprep.subr.bf16.mxu0 0
        %3228 = vmatpush1.bf16.msra.mxu0 0
        %3229 = vmatprep.subr.bf16.mxu0 0
        %3230 = vmatpush1.bf16.msra.mxu0 0
        %3231 = vmatprep.subr.bf16.mxu0 0
        %3232 = vmatpush1.bf16.msra.mxu0 0
        %3233 = vmatprep.subr.bf16.mxu0 0
        %3234 = vmatpush1.bf16.msra.mxu0 0
        %3235 = vmatprep.subr.bf16.mxu0 0
        %3236 = vmatpush1.bf16.msra.mxu0 0
        %3237 = vmatprep.subr.bf16.mxu0 0
        %3238 = vmatpush1.bf16.msra.mxu0 0
        %3239 = vmatprep.subr.bf16.mxu0 0
        %3240 = vmatpush1.bf16.msra.mxu0 0
        %3241 = vmatprep.subr.bf16.mxu0 0
        %3242 = vmatpush1.bf16.msra.mxu0 0
        %3243 = vmatprep.mubr.bf16.mxu0 0
        %3244 = vmatmul.mubr.bf16.gmra.mrb[0].mxu0 %v3164
        %v3245 = vpop.f32.mrb[0].mxu0
        %v3246 = vadd.f32 %v3148, %v3245
        %v3247 = vpop.f32.mrb[0].mxu0
        %v3248 = vpop.f32.mrb[0].mxu0
        %v3249 = vadd.f32 %v3148, %v3248
        %v3250 = vpop.f32.mrb[0].mxu0
        %3251 = vmatprep.mubr.bf16.mxu0 0
        %3252 = vmatmul.mubr.bf16.gmra.mrb[0].mxu0 %v3167
        %v3253 = vpop.f32.mrb[0].mxu0
        %v3254 = vadd.f32 %v3148, %v3253
        %v3255 = vpop.f32.mrb[0].mxu0
        %v3256 = vpop.f32.mrb[0].mxu0
        %v3257 = vadd.f32 %v3148, %v3256
        %v3258 = vpop.f32.mrb[0].mxu0
        %3259 = vmatprep.mubr.bf16.mxu0 0
        %3260 = vmatmul.mubr.bf16.gmra.mrb[0].mxu0 %v3170
        %v3261 = vpop.f32.mrb[0].mxu0
        %v3262 = vadd.f32 %v3148, %v3261
        %v3263 = vpop.f32.mrb[0].mxu0
        %v3264 = vpop.f32.mrb[0].mxu0
        %v3265 = vadd.f32 %v3148, %v3264
        %v3266 = vpop.f32.mrb[0].mxu0
        %3267 = vmatprep.mubr.bf16.mxu0 0
        %3268 = vmatmul.mubr.bf16.gmra.mrb[0].mxu0 %v3173
        %v3269 = vpop.f32.mrb[0].mxu0
        %v3270 = vadd.f32 %v3148, %v3269
        %v3271 = vpop.f32.mrb[0].mxu0
        %v3272 = vpop.f32.mrb[0].mxu0
        %v3273 = vadd.f32 %v3148, %v3272
        %v3274 = vpop.f32.mrb[0].mxu0
        %3275 = vmatprep.mubr.bf16.mxu0 0
        %3276 = vmatmul.mubr.bf16.gmra.mrb[0].mxu0 %v3176
        %v3277 = vpop.f32.mrb[0].mxu0
        %v3278 = vadd.f32 %v3148, %v3277
        %v3279 = vpop.f32.mrb[0].mxu0
        %v3280 = vpop.f32.mrb[0].mxu0
        %v3281 = vadd.f32 %v3148, %v3280
        %v3282 = vpop.f32.mrb[0].mxu0
        %3283 = vmatprep.mubr.bf16.mxu0 0
        %3284 = vmatmul.mubr.bf16.gmra.mrb[0].mxu0 %v3179
        %v3285 = vpop.f32.mrb[0].mxu0
        %v3286 = vadd.f32 %v3148, %v3285
        %v3287 = vpop.f32.mrb[0].mxu0
        %v3288 = vpop.f32.mrb[0].mxu0
        %v3289 = vadd.f32 %v3148, %v3288
        %v3290 = vpop.f32.mrb[0].mxu0
        %3291 = vmatprep.mubr.bf16.mxu0 0
        %3292 = vmatmul.mubr.bf16.gmra.mrb[0].mxu0 %v3182
        %v3293 = vpop.f32.mrb[0].mxu0
        %v3294 = vadd.f32 %v3148, %v3293
        %v3295 = vpop.f32.mrb[0].mxu0
        %v3296 = vpop.f32.mrb[0].mxu0
        %v3297 = vadd.f32 %v3148, %v3296
        %v3298 = vpop.f32.mrb[0].mxu0
        %3299 = vmatprep.mubr.bf16.mxu0 0
        %3300 = vmatmul.mubr.bf16.gmra.mrb[0].mxu0 %v3185
        %v3301 = vpop.f32.mrb[0].mxu0
        %v3302 = vadd.f32 %v3148, %v3301
        %v3303 = vpop.f32.mrb[0].mxu0
        %v3304 = vpop.f32.mrb[0].mxu0
        %v3305 = vadd.f32 %v3148, %v3304
        %v3306 = vpop.f32.mrb[0].mxu0
        %3307 = vmatprep.mubr.bf16.mxu0 0
        %3308 = vmatmul.mubr.bf16.gmra.mrb[0].mxu0 %v3188
        %v3309 = vpop.f32.mrb[0].mxu0
        %v3310 = vadd.f32 %v3148, %v3309
        %v3311 = vpop.f32.mrb[0].mxu0
        %v3312 = vpop.f32.mrb[0].mxu0
        %v3313 = vadd.f32 %v3148, %v3312
        %v3314 = vpop.f32.mrb[0].mxu0
        %3315 = vmatprep.mubr.bf16.mxu0 0
        %3316 = vmatmul.mubr.bf16.gmra.mrb[0].mxu0 %v3191
        %v3317 = vpop.f32.mrb[0].mxu0
        %v3318 = vadd.f32 %v3148, %v3317
        %v3319 = vpop.f32.mrb[0].mxu0
        %v3320 = vpop.f32.mrb[0].mxu0
        %v3321 = vadd.f32 %v3148, %v3320
        %v3322 = vpop.f32.mrb[0].mxu0
        %3323 = vmatprep.mubr.bf16.mxu0 0
        %3324 = vmatmul.mubr.bf16.gmra.mrb[0].mxu0 %v3194
        %v3325 = vpop.f32.mrb[0].mxu0
        %v3326 = vadd.f32 %v3148, %v3325
        %v3327 = vpop.f32.mrb[0].mxu0
        %v3328 = vpop.f32.mrb[0].mxu0
        %v3329 = vadd.f32 %v3148, %v3328
        %v3330 = vpop.f32.mrb[0].mxu0
        %3331 = vmatprep.mubr.bf16.mxu0 0
        %3332 = vmatmul.mubr.bf16.gmra.mrb[0].mxu0 %v3197
        %v3333 = vpop.f32.mrb[0].mxu0
        %v3334 = vadd.f32 %v3148, %v3333
        %v3335 = vpop.f32.mrb[0].mxu0
        %v3336 = vpop.f32.mrb[0].mxu0
        %v3337 = vadd.f32 %v3148, %v3336
        %v3338 = vpop.f32.mrb[0].mxu0
        %3339 = vmatprep.mubr.bf16.mxu0 0
        %3340 = vmatmul.mubr.bf16.gmra.mrb[0].mxu0 %v3200
        %v3341 = vpop.f32.mrb[0].mxu0
        %v3342 = vadd.f32 %v3148, %v3341
        %v3343 = vpop.f32.mrb[0].mxu0
        %v3344 = vpop.f32.mrb[0].mxu0
        %v3345 = vadd.f32 %v3148, %v3344
        %v3346 = vpop.f32.mrb[0].mxu0
        %3347 = vmatprep.mubr.bf16.mxu0 0
        %3348 = vmatmul.mubr.bf16.gmra.mrb[0].mxu0 %v3203
        %v3349 = vpop.f32.mrb[0].mxu0
        %v3350 = vadd.f32 %v3148, %v3349
        %v3351 = vpop.f32.mrb[0].mxu0
        %v3352 = vpop.f32.mrb[0].mxu0
        %v3353 = vadd.f32 %v3148, %v3352
        %v3354 = vpop.f32.mrb[0].mxu0
        %3355 = vmatprep.mubr.bf16.mxu0 0
        %3356 = vmatmul.mubr.bf16.gmra.mrb[0].mxu0 %v3206
        %v3357 = vpop.f32.mrb[0].mxu0
        %v3358 = vadd.f32 %v3148, %v3357
        %v3359 = vpop.f32.mrb[0].mxu0
        %v3360 = vpop.f32.mrb[0].mxu0
        %v3361 = vadd.f32 %v3148, %v3360
        %v3362 = vpop.f32.mrb[0].mxu0
        %3363 = vmatprep.mubr.bf16.mxu0 0
        %3364 = vmatmul.mubr.bf16.gmra.mrb[0].mxu0 %v3209
        %v3365 = vpop.f32.mrb[0].mxu0
        %v3366 = vadd.f32 %v3148, %v3365
        %v3367 = vpop.f32.mrb[0].mxu0
        %v3368 = vpop.f32.mrb[0].mxu0
        %v3369 = vadd.f32 %v3148, %v3368
        %v3370 = vpop.f32.mrb[0].mxu0
        %3371 = vdwg.mxu0
        %v3372 = vld [vmem:[#allocation11] sm:$0x1]
        %v3373 = vmax.f32 %v3246, 1e-06
        %v3374 = vmax.f32 %v3249, 1e-06
        %v3375 = vmax.f32 %v3254, 1e-06
        %v3376 = vmax.f32 %v3257, 1e-06
        %v3377 = vmax.f32 %v3262, 1e-06
        %v3378 = vmax.f32 %v3265, 1e-06
        %v3379 = vmax.f32 %v3270, 1e-06
        %v3380 = vmax.f32 %v3273, 1e-06
        %v3381 = vmax.f32 %v3278, 1e-06
        %v3382 = vmax.f32 %v3281, 1e-06
        %v3383 = vmax.f32 %v3286, 1e-06
        %v3384 = vmax.f32 %v3289, 1e-06
        %v3385 = vmax.f32 %v3294, 1e-06
        %v3386 = vmax.f32 %v3297, 1e-06
        %v3387 = vmax.f32 %v3302, 1e-06
        %v3388 = vmax.f32 %v3305, 1e-06
        %v3389 = vmax.f32 %v3310, 1e-06
        %v3390 = vmax.f32 %v3313, 1e-06
        %v3391 = vmax.f32 %v3318, 1e-06
        %v3392 = vmax.f32 %v3321, 1e-06
        %v3393 = vmax.f32 %v3326, 1e-06
        %v3394 = vmax.f32 %v3329, 1e-06
        %v3395 = vmax.f32 %v3334, 1e-06
        %v3396 = vmax.f32 %v3337, 1e-06
        %v3397 = vmax.f32 %v3342, 1e-06
        %v3398 = vmax.f32 %v3345, 1e-06
        %v3399 = vmax.f32 %v3350, 1e-06
        %v3400 = vmax.f32 %v3353, 1e-06
        %v3401 = vmax.f32 %v3358, 1e-06
        %v3402 = vmax.f32 %v3361, 1e-06
        %v3403 = vmax.f32 %v3366, 1e-06
        %v3404 = vmax.f32 %v3369, 1e-06
        %v3405 = vlog2.pop %v3373
        %v3406 = vmul.f32 %v3405, 0.6931472
        %v3407 = vlog2.pop %v3374
        %v3408 = vmul.f32 %v3407, 0.6931472
        %v3409 = vlog2.pop %v3375
        %v3410 = vmul.f32 %v3409, 0.6931472
        %v3411 = vlog2.pop %v3376
        %v3412 = vmul.f32 %v3411, 0.6931472
        %v3413 = vlog2.pop %v3377
        %v3414 = vmul.f32 %v3413, 0.6931472
        %v3415 = vlog2.pop %v3378
        %v3416 = vmul.f32 %v3415, 0.6931472
        %v3417 = vlog2.pop %v3379
        %v3418 = vmul.f32 %v3417, 0.6931472
        %v3419 = vlog2.pop %v3380
        %v3420 = vmul.f32 %v3419, 0.6931472
        %v3421 = vlog2.pop %v3381
        %v3422 = vmul.f32 %v3421, 0.6931472
        %v3423 = vlog2.pop %v3382
        %v3424 = vmul.f32 %v3423, 0.6931472
        %v3425 = vlog2.pop %v3383
        %v3426 = vmul.f32 %v3425, 0.6931472
        %v3427 = vlog2.pop %v3384
        %v3428 = vmul.f32 %v3427, 0.6931472
        %v3429 = vlog2.pop %v3385
        %v3430 = vmul.f32 %v3429, 0.6931472
        %v3431 = vlog2.pop %v3386
        %v3432 = vmul.f32 %v3431, 0.6931472
        %v3433 = vlog2.pop %v3387
        %v3434 = vmul.f32 %v3433, 0.6931472
        %v3435 = vlog2.pop %v3388
        %v3436 = vmul.f32 %v3435, 0.6931472
        %v3437 = vlog2.pop %v3389
        %v3438 = vmul.f32 %v3437, 0.6931472
        %v3439 = vlog2.pop %v3390
        %v3440 = vmul.f32 %v3439, 0.6931472
        %v3441 = vlog2.pop %v3391
        %v3442 = vmul.f32 %v3441, 0.6931472
        %v3443 = vlog2.pop %v3392
        %v3444 = vmul.f32 %v3443, 0.6931472
        %v3445 = vlog2.pop %v3393
        %v3446 = vmul.f32 %v3445, 0.6931472
        %v3447 = vlog2.pop %v3394
        %v3448 = vmul.f32 %v3447, 0.6931472
        %v3449 = vlog2.pop %v3395
        %v3450 = vmul.f32 %v3449, 0.6931472
        %v3451 = vlog2.pop %v3396
        %v3452 = vmul.f32 %v3451, 0.6931472
        %v3453 = vlog2.pop %v3397
        %v3454 = vmul.f32 %v3453, 0.6931472
        %v3455 = vlog2.pop %v3398
        %v3456 = vmul.f32 %v3455, 0.6931472
        %v3457 = vlog2.pop %v3399
        %v3458 = vmul.f32 %v3457, 0.6931472
        %v3459 = vlog2.pop %v3400
        %v3460 = vmul.f32 %v3459, 0.6931472
        %v3461 = vlog2.pop %v3401
        %v3462 = vmul.f32 %v3461, 0.6931472
        %v3463 = vlog2.pop %v3402
        %v3464 = vmul.f32 %v3463, 0.6931472
        %v3465 = vlog2.pop %v3403
        %v3466 = vmul.f32 %v3465, 0.6931472
        %v3467 = vlog2.pop %v3404
        %v3468 = vmul.f32 %v3467, 0.6931472
        %v3470 = vlaneseq
        %v3471 = vshrl.u32 %v3470, 7
        %v3472 = vsub.s32 0, %v3471
        %v3473 = vrot.slane %v3372, %v3472
        %v3475 = vmul.f32 %v3473, %v3406
        %v3476 = vmul.f32 %v3473, %v3408
        %v3477 = vmul.f32 %v3473, %v3410
        %v3478 = vmul.f32 %v3473, %v3412
        %v3479 = vmul.f32 %v3473, %v3414
        %v3480 = vmul.f32 %v3473, %v3416
        %v3481 = vmul.f32 %v3473, %v3418
        %v3482 = vmul.f32 %v3473, %v3420
        %v3483 = vmul.f32 %v3473, %v3422
        %v3484 = vmul.f32 %v3473, %v3424
        %v3485 = vmul.f32 %v3473, %v3426
        %v3486 = vmul.f32 %v3473, %v3428
        %v3487 = vmul.f32 %v3473, %v3430
        %v3488 = vmul.f32 %v3473, %v3432
        %v3489 = vmul.f32 %v3473, %v3434
        %v3490 = vmul.f32 %v3473, %v3436
        %v3491 = vmul.f32 %v3473, %v3438
        %v3492 = vmul.f32 %v3473, %v3440
        %v3493 = vmul.f32 %v3473, %v3442
        %v3494 = vmul.f32 %v3473, %v3444
        %v3495 = vmul.f32 %v3473, %v3446
        %v3496 = vmul.f32 %v3473, %v3448
        %v3497 = vmul.f32 %v3473, %v3450
        %v3498 = vmul.f32 %v3473, %v3452
        %v3499 = vmul.f32 %v3473, %v3454
        %v3500 = vmul.f32 %v3473, %v3456
        %v3501 = vmul.f32 %v3473, %v3458
        %v3502 = vmul.f32 %v3473, %v3460
        %v3503 = vmul.f32 %v3473, %v3462
        %v3504 = vmul.f32 %v3473, %v3464
        %v3505 = vmul.f32 %v3473, %v3466
        %v3506 = vmul.f32 %v3473, %v3468
        %v3507 = vmul.f32 %v3475, 1.442695
        %v3508 = vpow.pop %v3507
        %v3509 = vmul.f32 %v3476, 1.442695
        %v3510 = vpow.pop %v3509
        %v3511 = vmul.f32 %v3477, 1.442695
        %v3512 = vpow.pop %v3511
        %v3513 = vmul.f32 %v3478, 1.442695
        %v3514 = vpow.pop %v3513
        %v3515 = vmul.f32 %v3479, 1.442695
        %v3516 = vpow.pop %v3515
        %v3517 = vmul.f32 %v3480, 1.442695
        %v3518 = vpow.pop %v3517
        %v3519 = vmul.f32 %v3481, 1.442695
        %v3520 = vpow.pop %v3519
        %v3521 = vmul.f32 %v3482, 1.442695
        %v3522 = vpow.pop %v3521
        %v3523 = vmul.f32 %v3483, 1.442695
        %v3524 = vpow.pop %v3523
        %v3525 = vmul.f32 %v3484, 1.442695
        %v3526 = vpow.pop %v3525
        %v3527 = vmul.f32 %v3485, 1.442695
        %v3528 = vpow.pop %v3527
        %v3529 = vmul.f32 %v3486, 1.442695
        %v3530 = vpow.pop %v3529
        %v3531 = vmul.f32 %v3487, 1.442695
        %v3532 = vpow.pop %v3531
        %v3533 = vmul.f32 %v3488, 1.442695
        %v3534 = vpow.pop %v3533
        %v3535 = vmul.f32 %v3489, 1.442695
        %v3536 = vpow.pop %v3535
        %v3537 = vmul.f32 %v3490, 1.442695
        %v3538 = vpow.pop %v3537
        %v3539 = vmul.f32 %v3491, 1.442695
        %v3540 = vpow.pop %v3539
        %v3541 = vmul.f32 %v3492, 1.442695
        %v3542 = vpow.pop %v3541
        %v3543 = vmul.f32 %v3493, 1.442695
        %v3544 = vpow.pop %v3543
        %v3545 = vmul.f32 %v3494, 1.442695
        %v3546 = vpow.pop %v3545
        %v3547 = vmul.f32 %v3495, 1.442695
        %v3548 = vpow.pop %v3547
        %v3549 = vmul.f32 %v3496, 1.442695
        %v3550 = vpow.pop %v3549
        %v3551 = vmul.f32 %v3497, 1.442695
        %v3552 = vpow.pop %v3551
        %v3553 = vmul.f32 %v3498, 1.442695
        %v3554 = vpow.pop %v3553
        %v3555 = vmul.f32 %v3499, 1.442695
        %v3556 = vpow.pop %v3555
        %v3557 = vmul.f32 %v3500, 1.442695
        %v3558 = vpow.pop %v3557
        %v3559 = vmul.f32 %v3501, 1.442695
        %v3560 = vpow.pop %v3559
        %v3561 = vmul.f32 %v3502, 1.442695
        %v3562 = vpow.pop %v3561
        %v3563 = vmul.f32 %v3503, 1.442695
        %v3564 = vpow.pop %v3563
        %v3565 = vmul.f32 %v3504, 1.442695
        %v3566 = vpow.pop %v3565
        %v3567 = vmul.f32 %v3505, 1.442695
        %v3568 = vpow.pop %v3567
        %v3569 = vmul.f32 %v3506, 1.442695
        %v3570 = vpow.pop %v3569
        %v3571 = vsel %vm3162, %v3508, 0.0
        %v3572 = vsel %vm3162, %v3510, 0.0
        %v3573 = vadd.f32 %v3571, %v3572
        %v3574 = vsel %vm3162, %v3512, 0.0
        %v3575 = vadd.f32 %v3573, %v3574
        %v3576 = vsel %vm3162, %v3514, 0.0
        %v3577 = vadd.f32 %v3575, %v3576
        %v3578 = vsel %vm3162, %v3516, 0.0
        %v3579 = vadd.f32 %v3577, %v3578
        %v3580 = vsel %vm3162, %v3518, 0.0
        %v3581 = vadd.f32 %v3579, %v3580
        %v3582 = vsel %vm3162, %v3520, 0.0
        %v3583 = vadd.f32 %v3581, %v3582
        %v3584 = vsel %vm3162, %v3522, 0.0
        %v3585 = vadd.f32 %v3583, %v3584
        %v3586 = vsel %vm3162, %v3524, 0.0
        %v3587 = vadd.f32 %v3585, %v3586
        %v3588 = vsel %vm3162, %v3526, 0.0
        %v3589 = vadd.f32 %v3587, %v3588
        %v3590 = vsel %vm3162, %v3528, 0.0
        %v3591 = vadd.f32 %v3589, %v3590
        %v3592 = vsel %vm3162, %v3530, 0.0
        %v3593 = vadd.f32 %v3591, %v3592
        %v3594 = vsel %vm3162, %v3532, 0.0
        %v3595 = vadd.f32 %v3593, %v3594
        %v3596 = vsel %vm3162, %v3534, 0.0
        %v3597 = vadd.f32 %v3595, %v3596
        %v3598 = vsel %vm3162, %v3536, 0.0
        %v3599 = vadd.f32 %v3597, %v3598
        %v3600 = vsel %vm3162, %v3538, 0.0
        %v3601 = vadd.f32 %v3599, %v3600
        %v3602 = vsel %vm3162, %v3540, 0.0
        %v3603 = vadd.f32 %v3601, %v3602
        %v3604 = vsel %vm3162, %v3542, 0.0
        %v3605 = vadd.f32 %v3603, %v3604
        %v3606 = vsel %vm3162, %v3544, 0.0
        %v3607 = vadd.f32 %v3605, %v3606
        %v3608 = vsel %vm3162, %v3546, 0.0
        %v3609 = vadd.f32 %v3607, %v3608
        %v3610 = vsel %vm3162, %v3548, 0.0
        %v3611 = vadd.f32 %v3609, %v3610
        %v3612 = vsel %vm3162, %v3550, 0.0
        %v3613 = vadd.f32 %v3611, %v3612
        %v3614 = vsel %vm3162, %v3552, 0.0
        %v3615 = vadd.f32 %v3613, %v3614
        %v3616 = vsel %vm3162, %v3554, 0.0
        %v3617 = vadd.f32 %v3615, %v3616
        %v3618 = vsel %vm3162, %v3556, 0.0
        %v3619 = vadd.f32 %v3617, %v3618
        %v3620 = vsel %vm3162, %v3558, 0.0
        %v3621 = vadd.f32 %v3619, %v3620
        %v3622 = vsel %vm3162, %v3560, 0.0
        %v3623 = vadd.f32 %v3621, %v3622
        %v3624 = vsel %vm3162, %v3562, 0.0
        %v3625 = vadd.f32 %v3623, %v3624
        %v3626 = vsel %vm3162, %v3564, 0.0
        %v3627 = vadd.f32 %v3625, %v3626
        %v3628 = vsel %vm3162, %v3566, 0.0
        %v3629 = vadd.f32 %v3627, %v3628
        %v3630 = vsel %vm3162, %v3568, 0.0
        %v3631 = vadd.f32 %v3629, %v3630
        %v3632 = vsel %vm3162, %v3570, 0.0
        %v3633 = vadd.f32 %v3631, %v3632
        %v3634 = vrot.slane %v3633, 4
        %v3635 = vadd.f32 %v3633, %v3634
        %v3636 = vrot.slane %v3635, 2
        %v3637 = vadd.f32 %v3635, %v3636
        %v3638 = vrot.slane %v3637, 1
        %v3639 = vadd.f32 %v3637, %v3638
        %v3640 = vmul.f32 %v3639, 0.00390625
        %v3641 = vlog2.pop %v3640
        %v3642 = vmul.f32 %v3641, 0.6931472
        %v3643 = vrcp.pop %v3372
        %v3644 = vmul.f32 %v3642, %v3643
        %v3645 = vmul.f32 %v3644, 1.442695
        %v3646 = vpow.pop %v3645
        %vm3647 = vcmask 253952
        %3648 = vst.msk [vmem:[%s335] sm:$0x1] %vm3647, %v3646
        %s3649 = sand.u32 %s165, 1
        %s3650 = scalar_lea.sflag [#allocation4], %s3649
        %s3651 = sand.u32 %s165, 1
        %s3652 = scalar_lea.vmem [#allocation13], %s3651
        // Predicated region
        $region69: #{tpu_custom_call.1} parent=43 // pred_check
          %p3653 = pneg %p175
        $region70: #{tpu_custom_call.1} parent=43 // pred_check_branch
          %3655 = sbr.rel (%p3653) target = $region72
        $region71: #{tpu_custom_call.1} parent=43 // pred_region
          %s3657 = ssub.s32 16, 16
          %3658 = vsyncadd %s3650, %s3657
          %s3659 = smul.addr %s26, 16
          %s3660 = scalar_lea.hbm %s6, %s3659
          %s3662 = sshll.u32 %s3652, 4
          %s3663 = int_to_ptr.vmem [resolvable:$true] %s3662
          %3665 = dma.vmem_to_hbm [thread:$0]  %s3663, 16, %s3660, %s3650
        $region72: #{tpu_custom_call.1} parent=43 // pred_fallthru
          _
      $region44: #{tpu_custom_call.1} parent=5 // pred_fallthru
        _
      %p3666 = scmp.le.s32.totalorder 2, %s21
      // Predicated region
      $region73: #{tpu_custom_call.1} parent=5 // pred_check
        %p3667 = pneg %p3666
      $region74: #{tpu_custom_call.1} parent=5 // pred_check_branch
        %3669 = sbr.rel (%p3667) target = $region76
      $region75: #{tpu_custom_call.1} parent=5 // pred_region
        %s3670 = ssub.s32 %s21, 2
        // Predicated region
        $region77: #{tpu_custom_call.1} parent=75 // pred_check
          %p3671 = pneg %p181
        $region78: #{tpu_custom_call.1} parent=75 // pred_check_branch
          %3673 = sbr.rel (%p3671) target = $region80
        $region79: #{tpu_custom_call.1} parent=75 // pred_region
          %s3674 = sand.u32 %s166, 1
          %s3675 = scalar_lea.sflag [#allocation4], %s3674
          %s3676 = sand.u32 %s166, 1
          %s3677 = scalar_lea.vmem [#allocation13], %s3676
          %3678 = dma.done %s3675, 16
        $region80: #{tpu_custom_call.1} parent=75 // pred_fallthru
          _
      $region76: #{tpu_custom_call.1} parent=5 // pred_fallthru
        _
    $region6: #{tpu_custom_call.1} parent=1 // loop_footer
      %s25 = sadd.s32 1, %s21
    $region7: #{tpu_custom_call.1} parent=1 // loop_footer_branch
      %20 = sbr.rel target = $region3
    $region8: #{tpu_custom_call.1} parent=1 // loop_exit
      _
    %3679 = vsyncpa [#allocation3], 1
    %s3680 = scalar_lea.sflag [#allocation3], 1
    %3681 = vsyncpa %s3680, 1
    %3682 = vsyncpa [#allocation6], 1
    %3683 = vsyncpa [#allocation9], 1
    %3684 = vsyncpa [#allocation12], 1
    %3685 = vsyncpa [#allocation4], 1
    %s3686 = scalar_lea.sflag [#allocation4], 1
    %3687 = vsyncpa %s3686, 1

</llo_original>
